<compile_context>
chip_gen: v5e
topology: v5e:2x2
jax: 0.10.0
libtpu: 0.0.40
codegen_flags: <defaults>
</compile_context>

<pallas_src>
import jax
import jax.numpy as jnp
from jax.experimental import pallas as pl
from jax.experimental.pallas import tpu as pltpu

# ----------------------------- scaled-down config ----------------------------
B = 2              # batch
M = 4              # number of variates (enc_in)
SEQ_LEN = 16       # configs.seq_len
PRED_LEN = 8       # configs.pred_len
PATCH = 4          # configs.patch_size
STRIDE = 4         # configs.stride
D_MODEL = 48       # configs.d_model (stand-in for GPT-2's 768; divisible by 3 and N_HEAD)
N_HEAD = 4
N_LAYER = 2        # configs.gpt_layers
POOL_SIZE = 8      # configs.pool_size
TOP_K = 2          # configs.prompt_length
TREND_LEN = 5      # configs.trend_length (odd -> matches pandas rolling(center=True))
SEASONAL_LEN = 4   # configs.seasonal_length
MAX_POS = 32       # wpe table size

PATCH_NUM = (SEQ_LEN - PATCH) // STRIDE + 1 + 1     # +1 from the replication pad
TOKENS = PATCH_NUM + TOP_K                          # prompt tokens + patch tokens (= 7)
T_PAD = 8                                           # token axis padded to a sublane multiple
OUT_IN_DIM = (D_MODEL // 3) * TOKENS                # int(d_model/3*(patch_num+prompt_len))
LN_EPS = 1e-5
assert TOKENS * D_MODEL == 3 * OUT_IN_DIM           # needed by the out_layer fold


def num_batch_blocks(n):
    """2 batch blocks (one per TensorCore) only on v7x; 1 elsewhere (single-TC chips would
    just re-DMA every layer's weights per block with zero parallelism gain)."""
    try:
        kind = jax.devices()[0].device_kind.lower().replace(" ", "")
    except Exception:
        kind = ""
    two_core = ("v7" in kind) or ("tpu7" in kind) or ("7x" in kind)
    return 2 if (two_core and n % 2 == 0) else 1


# --------------------------------- kernel ------------------------------------
def _ln(x, g, b):
    mu = jnp.mean(x, axis=-1, keepdims=True)
    xc = x - mu
    var = jnp.mean(xc * xc, axis=-1, keepdims=True)
    return xc * jax.lax.rsqrt(var + LN_EPS) * g + b


def gpt2_stack_kernel(h0_ref, stats_ref,
                      ln1g_ref, ln1b_ref,
                      wq_ref, bq_ref, wk_ref, bk_ref, wv_ref, bv_ref,
                      wo_ref, bo_ref,
                      ln2g_ref, ln2b_ref, wfc_ref, bfc_ref, wmp_ref, bmp_ref,
                      lnfg_ref, lnfb_ref, w3_ref, outb_ref,
                      o_ref, h_sc):
    # grid = (batch_blocks ["parallel"], n_layers ["arbitrary"]); h stays in VMEM scratch.
    l = pl.program_id(1)
    last = pl.num_programs(1) - 1

    @pl.when(l == 0)
    def _init():
        h_sc[...] = h0_ref[0]

    h = h_sc[...]                       # (Nb, T_PAD, D) f32
    Nb, T, D = h.shape
    HD = D // N_HEAD

    def mm(a, w_bf16):                  # bf16 MXU matmul, f32 accumulate
        return jnp.dot(a.astype(jnp.bfloat16), w_bf16,
                       preferred_element_type=jnp.float32)

    # ------------------------------- attention --------------------------------
    # T_PAD=8 -> (Nb,T,D)<->(Nb*T,D) reshapes are tile-aligned (free).
    x2 = _ln(h, ln1g_ref[0], ln1b_ref[0]).reshape(Nb * T, D)
    # Three lane-aligned projections (no lane slicing of a fused QKV result at this toy D).
    # TODO(synk): at real GPT-2 scale (D=768) use the fused (D,3D) c_attn; splits are 128-aligned.
    q = (mm(x2, wq_ref[0]) + bq_ref[0]).reshape(Nb, T, D)
    k = (mm(x2, wk_ref[0]) + bk_ref[0]).reshape(Nb, T, D)
    v = (mm(x2, wv_ref[0]) + bv_ref[0]).reshape(Nb, T, D)

    qi = jax.lax.broadcasted_iota(jnp.int32, (T, T), 0)
    kj = jax.lax.broadcasted_iota(jnp.int32, (T, T), 1)
    causal = (kj <= qi)[None, :, :]             # pad token (pos 7) never seen by real tokens
    lane = jax.lax.broadcasted_iota(jnp.int32, (1, 1, D), 2)
    scale = 1.0 / (float(HD) ** 0.5)

    kb = k.astype(jnp.bfloat16)
    # Head-masked full-width attention: no lane-unaligned slices, and the per-head contexts
    # land already concatenated in lanes -> a single full-K matmul against c_proj below.
    ctx = jnp.zeros((Nb, T, D), jnp.float32)
    for hh in range(N_HEAD):                    # static unroll over heads
        m = ((lane >= hh * HD) & (lane < (hh + 1) * HD)).astype(jnp.float32)
        s = jnp.einsum('bqd,bkd->bqk', (q * m).astype(jnp.bfloat16), kb,
                       preferred_element_type=jnp.float32) * scale
        s = jnp.where(causal, s, -1e30)         # finite mask constant
        s = s - jnp.max(s, axis=-1, keepdims=True)
        p = jnp.exp(s)
        p = p * pl.reciprocal(jnp.sum(p, axis=-1, keepdims=True), approx=True)
        ctx = ctx + jnp.einsum('bqk,bkd->bqd', p.astype(jnp.bfloat16),
                               (v * m).astype(jnp.bfloat16),
                               preferred_element_type=jnp.float32)
    attn = mm(ctx.reshape(Nb * T, D), wo_ref[0]) + bo_ref[0]    # single K=D c_proj matmul
    h = h + attn.reshape(Nb, T, D)
    # TODO(synk): GPT-2 train-mode dropout omitted (stochastic; eval semantics used).

    # ---------------------------------- MLP ------------------------------------
    xm = _ln(h, ln2g_ref[0], ln2b_ref[0]).reshape(Nb * T, D)
    fc = mm(xm, wfc_ref[0]) + bfc_ref[0]
    # gelu_new (tanh approximation), as in GPT-2
    act = 0.5 * fc * (1.0 + jnp.tanh(0.7978845608028654 *
                                     (fc + 0.044715 * fc * fc * fc)))
    h = h + (mm(act, wmp_ref[0]) + bmp_ref[0]).reshape(Nb, T, D)
    h_sc[...] = h

    # ------- epilogue (last layer): ln_f + out_layer (folded with sum-over-c) + denorm -------
    @pl.when(l == last)
    def _fin():
        hf = _ln(h, lnfg_ref[...], lnfb_ref[...])                # (Nb, T_PAD, D)
        # One MXU contraction with K=T_PAD*D (pad-token rows of W3 are zero).
        acc = jnp.dot(hf.reshape(Nb, T * D), w3_ref[...],
                      preferred_element_type=jnp.float32)        # (Nb, PRED_LEN)
        acc = acc + 3.0 * outb_ref[...]                          # bias added once per component
        st = stats_ref[0]                                        # (Nb, 2) = [mean | std]
        # TODO(synk): output stays (Nb, PRED_LEN=8) lanes — 256 B total; pad to 128 lanes only
        #             at real pred_len (>=96) where lane-dense stores matter.
        o_ref[0] = acc * st[:, 1:2] + st[:, 0:1]


# ------------------------------ glue (plain JAX) ------------------------------
def rolling_center_mean(x, w):
    # pandas df.rolling(window=w, center=True).mean().fillna(bfill).fillna(ffill), odd w
    N, L = x.shape
    half = (w - 1) // 2
    csum = jnp.cumsum(jnp.pad(x, ((0, 0), (1, 0))), axis=1)              # (N, L+1)
    idx = jnp.arange(half, L - half)
    means = (csum[:, idx + half + 1] - csum[:, idx - half]) / w          # (N, L-2*half)
    trend = jnp.concatenate(
        [jnp.repeat(means[:, :1], half, axis=1), means,
         jnp.repeat(means[:, -1:], half, axis=1)], axis=1)
    return trend


def seasonal_mean(detrended, s):
    # pandas groupby(index % s).transform('mean')
    N, L = detrended.shape
    idx = jnp.arange(L) % s
    onehot = (idx[None, :] == jnp.arange(s)[:, None]).astype(detrended.dtype)  # (s, L)
    counts = jnp.sum(onehot, axis=1)
    means = (detrended @ onehot.T) / counts                              # (N, s)
    return means[:, idx]                                                 # (N, L)


# --------------------------------- parameters ---------------------------------
def init_params(seed=0):
    # TODO(synk): pretrained GPT-2 weights / tokenizer cannot be loaded in-script;
    #             deterministic random weights with the same structure are used instead.
    key = jax.random.PRNGKey(seed)

    def nxt():
        nonlocal key
        key, sub = jax.random.split(key)
        return sub

    def normal(shape, std=0.02):
        return (std * jax.random.normal(nxt(), shape)).astype(jnp.float32)

    zeros = lambda shape: jnp.zeros(shape, jnp.float32)
    ones = lambda shape: jnp.ones(shape, jnp.float32)

    p = {
        "in_w": normal((3 * PATCH, D_MODEL)),          # nn.Linear(patch_size*3, d_model)
        "in_b": zeros((1, D_MODEL)),
        "prompt_key": jax.random.uniform(nxt(), (POOL_SIZE, D_MODEL),
                                         jnp.float32, -1.0, 1.0),
        "wpe": normal((MAX_POS, D_MODEL)),             # GPT-2 position embeddings
        "lnf_g": ones((1, D_MODEL)), "lnf_b": zeros((1, D_MODEL)),
        "out_w": normal((OUT_IN_DIM, PRED_LEN)),       # nn.Linear(d_model/3*(pn+pl), pred_len)
        "out_b": zeros((1, PRED_LEN)),
        "blocks": [],
    }
    for _ in range(N_LAYER):
        p["blocks"].append(dict(
            ln1g=ones((1, D_MODEL)), ln1b=zeros((1, D_MODEL)),
            wq=normal((D_MODEL, D_MODEL)), bq=zeros((1, D_MODEL)),
            wk=normal((D_MODEL, D_MODEL)), bk=zeros((1, D_MODEL)),
            wv=normal((D_MODEL, D_MODEL)), bv=zeros((1, D_MODEL)),
            wo=normal((D_MODEL, D_MODEL)), bo=zeros((1, D_MODEL)),
            ln2g=ones((1, D_MODEL)), ln2b=zeros((1, D_MODEL)),
            wfc=normal((D_MODEL, 4 * D_MODEL)), bfc=zeros((1, 4 * D_MODEL)),
            wmp=normal((4 * D_MODEL, D_MODEL)), bmp=zeros((1, D_MODEL)),
        ))
    return p


def prepare_params(params):
    """Hoisted weight packing (done once per weight set): per-layer stacking, bf16 casts for
    MXU operands, and the out_layer weight folded with the later sum-over-3-components
    (W3[t*D+d, :] = out_w[(t*D+d) % OUT_IN_DIM, :]; zero rows for the pad token)."""
    blocks = params["blocks"]

    def stack(name, dt=jnp.float32):
        return jnp.stack([blk[name] for blk in blocks], axis=0).astype(dt)

    gp = dict(
        ln1g=stack("ln1g"), ln1b=stack("ln1b"),
        wq=stack("wq", jnp.bfloat16), bq=stack("bq"),
        wk=stack("wk", jnp.bfloat16), bk=stack("bk"),
        wv=stack("wv", jnp.bfloat16), bv=stack("bv"),
        wo=stack("wo", jnp.bfloat16), bo=stack("bo"),
        ln2g=stack("ln2g"), ln2b=stack("ln2b"),
        wfc=stack("wfc", jnp.bfloat16), bfc=stack("bfc"),
        wmp=stack("wmp", jnp.bfloat16), bmp=stack("bmp"),
    )
    e = jnp.arange(TOKENS * D_MODEL) % OUT_IN_DIM
    w3 = params["out_w"][e]                                               # (TOKENS*D, PRED_LEN)
    w3 = jnp.concatenate(
        [w3, jnp.zeros(((T_PAD - TOKENS) * D_MODEL, PRED_LEN), jnp.float32)], axis=0)
    return dict(in_w=params["in_w"], in_b=params["in_b"],
                prompt_key=params["prompt_key"], wpe=params["wpe"],
                lnf_g=params["lnf_g"], lnf_b=params["lnf_b"],
                out_b=params["out_b"], w3=w3, gpt2=gp)


# ------------------------- fused GPT-2 stack pallas_call ----------------------
def gpt2_stack(h0, stats, prep, nb_blocks):
    N = h0.shape[0]
    NB = nb_blocks
    n_blk = N // NB
    gp = prep["gpt2"]
    h0r = h0.reshape(NB, n_blk, T_PAD, D_MODEL)
    statsr = stats.reshape(NB, n_blk, 2)

    def wspec(arr):           # per-layer weight: block index follows the layer axis
        nd = arr.ndim
        return pl.BlockSpec((1,) + arr.shape[1:],
                            lambda b, l, nd=nd: (l,) + (0,) * (nd - 1))

    def cspec(arr):           # layer-independent constant
        nd = arr.ndim
        return pl.BlockSpec(arr.shape, lambda b, l, nd=nd: (0,) * nd)

    layer_names = ["ln1g", "ln1b", "wq", "bq", "wk", "bk", "wv", "bv", "wo", "bo",
                   "ln2g", "ln2b", "wfc", "bfc", "wmp", "bmp"]
    layer_args = [gp[n] for n in layer_names]
    const_args = [prep["lnf_g"], prep["lnf_b"], prep["w3"], prep["out_b"]]

    in_specs = ([pl.BlockSpec((1, n_blk, T_PAD, D_MODEL), lambda b, l: (b, 0, 0, 0)),
                 pl.BlockSpec((1, n_blk, 2), lambda b, l: (b, 0, 0))]
                + [wspec(a) for a in layer_args]
                + [cspec(a) for a in const_args])

    out = pl.pallas_call(
        gpt2_stack_kernel,
        grid=(NB, N_LAYER),
        in_specs=in_specs,
        out_specs=pl.BlockSpec((1, n_blk, PRED_LEN), lambda b, l: (b, 0, 0)),
        out_shape=jax.ShapeDtypeStruct((NB, n_blk, PRED_LEN), jnp.float32),
        scratch_shapes=[pltpu.VMEM((n_blk, T_PAD, D_MODEL), jnp.float32)],
        compiler_params=pltpu.CompilerParams(
            dimension_semantics=("parallel", "arbitrary"),
            vmem_limit_bytes=32 * 1024 * 1024),
    )(h0r, statsr, *layer_args, *const_args)
    return out.reshape(N, PRED_LEN)


# --------------------------------- forward ------------------------------------
def forecast(prep, x_enc, nb_blocks):
    Bb, L, Mm = x_enc.shape
    N = Bb * Mm

    # RevIN normalization + 'b l m -> (b m) l'  (plain JAX: a few KB of work, per review)
    x = jnp.transpose(x_enc, (0, 2, 1)).reshape(N, L).astype(jnp.float32)
    mean = jnp.mean(x, axis=1, keepdims=True)
    xc = x - mean
    var = jnp.mean(xc * xc, axis=1, keepdims=True)                       # unbiased=False
    std = jnp.sqrt(var + 1e-5)
    xn = xc / std
    stats = jnp.concatenate([mean, std], axis=1)                         # (N, 2)

    # trend / seasonal / residual decomposition (pandas semantics, plain JAX glue)
    trend = rolling_center_mean(xn, TREND_LEN)
    seas = seasonal_mean(xn - trend, SEASONAL_LEN)
    resid = xn - trend - seas
    x3 = jnp.stack([trend, seas, resid], axis=1)                         # (N, 3, L)

    # ReplicationPad1d((0, stride)) + unfold(size=patch, step=stride)
    x3 = jnp.concatenate([x3, jnp.repeat(x3[:, :, -1:], STRIDE, axis=-1)], axis=-1)
    starts = list(range(0, L + STRIDE - PATCH + 1, STRIDE))              # PATCH_NUM windows
    patches = jnp.stack([x3[:, :, s:s + PATCH] for s in starts], axis=2)  # (N, 3, PN, P)
    x_p = jnp.transpose(patches, (0, 2, 1, 3)).reshape(N, PATCH_NUM, 3 * PATCH)

    # in_layer + L2P prompt-key similarity (plain JAX, per review)
    pre = (x_p.reshape(N * PATCH_NUM, 3 * PATCH) @ prep["in_w"]
           + prep["in_b"]).reshape(N, PATCH_NUM, D_MODEL)
    eps = 1e-12
    xm = jnp.mean(pre, axis=1)                                           # (N, D)
    x_norm = xm * jax.lax.rsqrt(jnp.maximum(jnp.sum(xm * xm, axis=1, keepdims=True), eps))
    pk = prep["prompt_key"]
    key_norm = pk * jax.lax.rsqrt(jnp.maximum(jnp.sum(pk * pk, axis=1, keepdims=True), eps))
    sim = x_norm @ key_norm.T                                            # (N, POOL)

    # top-k / gather / reduce_sim (data-dependent gather stays in glue)
    _, idx = jax.lax.top_k(sim, TOP_K)                                   # (N, top_k)
    batched_key_norm = jnp.take(key_norm, idx, axis=0)                   # (N, top_k, D)
    reduce_sim = jnp.sum(batched_key_norm * x_norm[:, None, :]) / N
    prompted = jnp.concatenate([batched_key_norm, pre], axis=1)          # (N, TOKENS, D)

    # GPT-2 position embeddings; pad the token axis to a sublane multiple (T_PAD=8).
    h0 = prompted + prep["wpe"][:TOKENS][None, :, :]
    h0 = jnp.pad(h0, ((0, 0), (0, T_PAD - TOKENS), (0, 0)))              # (N, T_PAD, D)

    # Fused transformer stack (+ ln_f, out_layer, component sum, RevIN denorm), one pallas_call.
    out = gpt2_stack(h0, stats, prep, nb_blocks)                         # (N, PRED_LEN)

    # '(b m) h -> b m h' then 'b m l -> b l m'  (denorm already applied in-kernel)
    outputs = jnp.transpose(out.reshape(Bb, Mm, PRED_LEN), (0, 2, 1))    # (B, pred_len, M)
    return outputs, {"simlarity_loss": reduce_sim}


def model_forward(prep, x_enc, x_mark_enc, x_dec, x_mark_dec, mask=None, nb_blocks=1):
    # task_name == 'long_term_forecast'
    dec_out, res = forecast(prep, x_enc, nb_blocks)
    return dec_out[:, -PRED_LEN:, :], res


# ----------------------------------- main --------------------------------------
if __name__ == "__main__":
    params = init_params(seed=0)
    prep = prepare_params(params)          # weight packing hoisted: once per set of weights

    key = jax.random.PRNGKey(0)
    k1, k2, k3, k4 = jax.random.split(key, 4)
    x_enc = jax.random.normal(k1, (B, SEQ_LEN, M), jnp.float32)
    x_mark_enc = jax.random.normal(k2, (B, SEQ_LEN, M), jnp.float32)     # unused by forward
    x_dec = jax.random.normal(k3, (B, PRED_LEN, M), jnp.float32)          # unused by forward
    x_mark_dec = jax.random.normal(k4, (B, PRED_LEN, M), jnp.float32)     # unused by forward

    nb = num_batch_blocks(B * M)           # 2 only on v7x (2 TensorCores), else 1
    fwd = jax.jit(lambda p, xe, xme, xd, xmd:
                  model_forward(p, xe, xme, xd, xmd, nb_blocks=nb))

    dec_out, res = fwd(prep, x_enc, x_mark_enc, x_dec, x_mark_dec)
    jax.block_until_ready(dec_out)
    jax.block_until_ready(res["simlarity_loss"])
    assert dec_out.shape == (B, PRED_LEN, M)
    print("KERNEL_OK")
</pallas_src>

<mosaic_0001>
module attributes {stable_mosaic.version = 11 : i64} {
  func.func @gpt2_stack_kernel(%arg0: i32, %arg1: i32, %arg2: memref<1x8x8x48xf32, #tpu.memory_space<vmem>>, %arg3: memref<1x8x2xf32, #tpu.memory_space<vmem>>, %arg4: memref<1x1x48xf32, #tpu.memory_space<vmem>>, %arg5: memref<1x1x48xf32, #tpu.memory_space<vmem>>, %arg6: memref<1x48x48xbf16, #tpu.memory_space<vmem>>, %arg7: memref<1x1x48xf32, #tpu.memory_space<vmem>>, %arg8: memref<1x48x48xbf16, #tpu.memory_space<vmem>>, %arg9: memref<1x1x48xf32, #tpu.memory_space<vmem>>, %arg10: memref<1x48x48xbf16, #tpu.memory_space<vmem>>, %arg11: memref<1x1x48xf32, #tpu.memory_space<vmem>>, %arg12: memref<1x48x48xbf16, #tpu.memory_space<vmem>>, %arg13: memref<1x1x48xf32, #tpu.memory_space<vmem>>, %arg14: memref<1x1x48xf32, #tpu.memory_space<vmem>>, %arg15: memref<1x1x48xf32, #tpu.memory_space<vmem>>, %arg16: memref<1x48x192xbf16, #tpu.memory_space<vmem>>, %arg17: memref<1x1x192xf32, #tpu.memory_space<vmem>>, %arg18: memref<1x192x48xbf16, #tpu.memory_space<vmem>>, %arg19: memref<1x1x48xf32, #tpu.memory_space<vmem>>, %arg20: memref<1x48xf32, #tpu.memory_space<vmem>>, %arg21: memref<1x48xf32, #tpu.memory_space<vmem>>, %arg22: memref<384x8xf32, #tpu.memory_space<vmem>>, %arg23: memref<1x8xf32, #tpu.memory_space<vmem>>, %arg24: memref<1x8x8xf32, #tpu.memory_space<vmem>>, %arg25: memref<8x8x48xf32, #tpu.memory_space<vmem>>) attributes {dimension_semantics = [#tpu.dimension_semantics<parallel>, #tpu.dimension_semantics<arbitrary>], iteration_bounds = array<i64: 1, 2>, scalar_prefetch = 0 : i64, scratch_operands = 1 : i64, tpu.core_type = #tpu.core_type<tc>, window_params = [{transform_indices = @transform_0, window_bounds = array<i64: 1, 8, 8, 48>}, {transform_indices = @transform_1, window_bounds = array<i64: 1, 8, 2>}, {transform_indices = @transform_2, window_bounds = array<i64: 1, 1, 48>}, {transform_indices = @transform_3, window_bounds = array<i64: 1, 1, 48>}, {transform_indices = @transform_4, window_bounds = array<i64: 1, 48, 48>}, {transform_indices = @transform_5, window_bounds = array<i64: 1, 1, 48>}, {transform_indices = @transform_6, window_bounds = array<i64: 1, 48, 48>}, {transform_indices = @transform_7, window_bounds = array<i64: 1, 1, 48>}, {transform_indices = @transform_8, window_bounds = array<i64: 1, 48, 48>}, {transform_indices = @transform_9, window_bounds = array<i64: 1, 1, 48>}, {transform_indices = @transform_10, window_bounds = array<i64: 1, 48, 48>}, {transform_indices = @transform_11, window_bounds = array<i64: 1, 1, 48>}, {transform_indices = @transform_12, window_bounds = array<i64: 1, 1, 48>}, {transform_indices = @transform_13, window_bounds = array<i64: 1, 1, 48>}, {transform_indices = @transform_14, window_bounds = array<i64: 1, 48, 192>}, {transform_indices = @transform_15, window_bounds = array<i64: 1, 1, 192>}, {transform_indices = @transform_16, window_bounds = array<i64: 1, 192, 48>}, {transform_indices = @transform_17, window_bounds = array<i64: 1, 1, 48>}, {pipeline_mode = #tpu.pipeline_mode<synchronous>, transform_indices = @transform_18, window_bounds = array<i64: 1, 48>}, {pipeline_mode = #tpu.pipeline_mode<synchronous>, transform_indices = @transform_19, window_bounds = array<i64: 1, 48>}, {pipeline_mode = #tpu.pipeline_mode<synchronous>, transform_indices = @transform_20, window_bounds = array<i64: 384, 8>}, {pipeline_mode = #tpu.pipeline_mode<synchronous>, transform_indices = @transform_21, window_bounds = array<i64: 1, 8>}, {transform_indices = @transform_22, window_bounds = array<i64: 1, 8, 8>}]} {
    %c0_i32 = arith.constant 0 : i32
    %0 = arith.cmpi eq, %arg1, %c0_i32 : i32
    %1 = arith.extui %0 : i1 to i32
    %c0_i32_0 = arith.constant 0 : i32
    %2 = arith.cmpi ne, %1, %c0_i32_0 : i32
    scf.if %2 {
      %c0_103 = arith.constant 0 : index
      %c0_104 = arith.constant 0 : index
      %c0_105 = arith.constant 0 : index
      %c0_106 = arith.constant 0 : index
      %270 = vector.load %arg2[%c0_103, %c0_104, %c0_105, %c0_106] : memref<1x8x8x48xf32, #tpu.memory_space<vmem>>, vector<1x8x8x48xf32>
      %271 = vector.shape_cast %270 : vector<1x8x8x48xf32> to vector<8x8x48xf32>
      %c0_107 = arith.constant 0 : index
      %c0_108 = arith.constant 0 : index
      %c0_109 = arith.constant 0 : index
      %272 = vector.load %arg25[%c0_107, %c0_108, %c0_109] : memref<8x8x48xf32, #tpu.memory_space<vmem>>, vector<8x8x48xf32>
      tpu.vector_store %arg25[%c0_107, %c0_108, %c0_109], %271 {strides = array<i32>} : memref<8x8x48xf32, #tpu.memory_space<vmem>>, vector<8x8x48xf32>,
    } else {
    }
    %c0 = arith.constant 0 : index
    %c0_1 = arith.constant 0 : index
    %c0_2 = arith.constant 0 : index
    %3 = vector.load %arg25[%c0, %c0_1, %c0_2] : memref<8x8x48xf32, #tpu.memory_space<vmem>>, vector<8x8x48xf32>
    %c0_3 = arith.constant 0 : index
    %c0_4 = arith.constant 0 : index
    %c0_5 = arith.constant 0 : index
    %4 = vector.load %arg4[%c0_3, %c0_4, %c0_5] : memref<1x1x48xf32, #tpu.memory_space<vmem>>, vector<1x1x48xf32>
    %5 = vector.shape_cast %4 : vector<1x1x48xf32> to vector<1x48xf32>
    %c0_6 = arith.constant 0 : index
    %c0_7 = arith.constant 0 : index
    %c0_8 = arith.constant 0 : index
    %6 = vector.load %arg5[%c0_6, %c0_7, %c0_8] : memref<1x1x48xf32, #tpu.memory_space<vmem>>, vector<1x1x48xf32>
    %7 = vector.shape_cast %6 : vector<1x1x48xf32> to vector<1x48xf32>
    %cst = arith.constant dense<0.000000e+00> : vector<8x8xf32>
    %8 = vector.multi_reduction <add>, %3, %cst [2] : vector<8x8x48xf32> to vector<8x8xf32>
    %9 = vector.shape_cast %8 : vector<8x8xf32> to vector<8x8x1xf32>
    %cst_9 = arith.constant 4.800000e+01 : f32
    %10 = vector.broadcast %cst_9 : f32 to vector<8x8x1xf32>
    %11 = arith.divf %9, %10 : vector<8x8x1xf32>
    %12 = vector.broadcast %11 : vector<8x8x1xf32> to vector<8x8x48xf32>
    %13 = arith.subf %3, %12 : vector<8x8x48xf32>
    %14 = arith.mulf %13, %13 : vector<8x8x48xf32>
    %cst_10 = arith.constant dense<0.000000e+00> : vector<8x8xf32>
    %15 = vector.multi_reduction <add>, %14, %cst_10 [2] : vector<8x8x48xf32> to vector<8x8xf32>
    %16 = vector.shape_cast %15 : vector<8x8xf32> to vector<8x8x1xf32>
    %cst_11 = arith.constant 4.800000e+01 : f32
    %17 = vector.broadcast %cst_11 : f32 to vector<8x8x1xf32>
    %18 = arith.divf %16, %17 : vector<8x8x1xf32>
    %cst_12 = arith.constant 9.99999974E-6 : f32
    %19 = vector.broadcast %cst_12 : f32 to vector<8x8x1xf32>
    %20 = arith.addf %18, %19 : vector<8x8x1xf32>
    %21 = math.rsqrt %20 : vector<8x8x1xf32>
    %22 = vector.broadcast %21 : vector<8x8x1xf32> to vector<8x8x48xf32>
    %23 = arith.mulf %13, %22 : vector<8x8x48xf32>
    %24 = vector.shape_cast %5 : vector<1x48xf32> to vector<1x1x48xf32>
    %25 = vector.broadcast %24 : vector<1x1x48xf32> to vector<8x8x48xf32>
    %26 = arith.mulf %23, %25 : vector<8x8x48xf32>
    %27 = vector.shape_cast %7 : vector<1x48xf32> to vector<1x1x48xf32>
    %28 = vector.broadcast %27 : vector<1x1x48xf32> to vector<8x8x48xf32>
    %29 = arith.addf %26, %28 : vector<8x8x48xf32>
    %30 = vector.shape_cast %29 : vector<8x8x48xf32> to vector<64x48xf32>
    %c0_13 = arith.constant 0 : index
    %c0_14 = arith.constant 0 : index
    %c0_15 = arith.constant 0 : index
    %31 = vector.load %arg6[%c0_13, %c0_14, %c0_15] : memref<1x48x48xbf16, #tpu.memory_space<vmem>>, vector<1x48x48xbf16>
    %32 = vector.shape_cast %31 : vector<1x48x48xbf16> to vector<48x48xbf16>
    %33 = arith.truncf %30 : vector<64x48xf32> to vector<64x48xbf16>
    %cst_16 = arith.constant dense<0.000000e+00> : vector<64x48xf32>
    %34 = tpu.matmul %33, %32, %cst_16 {dimension_numbers = #tpu.dot_dimension_numbers<[1], [0], [0], [1], [0, 0, 1, 1], [], []>} : vector<64x48xbf16>, vector<48x48xbf16>, vector<64x48xf32> -> vector<64x48xf32>
    %c0_17 = arith.constant 0 : index
    %c0_18 = arith.constant 0 : index
    %c0_19 = arith.constant 0 : index
    %35 = vector.load %arg7[%c0_17, %c0_18, %c0_19] : memref<1x1x48xf32, #tpu.memory_space<vmem>>, vector<1x1x48xf32>
    %36 = vector.shape_cast %35 : vector<1x1x48xf32> to vector<1x48xf32>
    %37 = vector.broadcast %36 : vector<1x48xf32> to vector<64x48xf32>
    %38 = arith.addf %34, %37 : vector<64x48xf32>
    %39 = vector.shape_cast %38 : vector<64x48xf32> to vector<8x8x48xf32>
    %c0_20 = arith.constant 0 : index
    %c0_21 = arith.constant 0 : index
    %c0_22 = arith.constant 0 : index
    %40 = vector.load %arg8[%c0_20, %c0_21, %c0_22] : memref<1x48x48xbf16, #tpu.memory_space<vmem>>, vector<1x48x48xbf16>
    %41 = vector.shape_cast %40 : vector<1x48x48xbf16> to vector<48x48xbf16>
    %42 = arith.truncf %30 : vector<64x48xf32> to vector<64x48xbf16>
    %cst_23 = arith.constant dense<0.000000e+00> : vector<64x48xf32>
    %43 = tpu.matmul %42, %41, %cst_23 {dimension_numbers = #tpu.dot_dimension_numbers<[1], [0], [0], [1], [0, 0, 1, 1], [], []>} : vector<64x48xbf16>, vector<48x48xbf16>, vector<64x48xf32> -> vector<64x48xf32>
    %c0_24 = arith.constant 0 : index
    %c0_25 = arith.constant 0 : index
    %c0_26 = arith.constant 0 : index
    %44 = vector.load %arg9[%c0_24, %c0_25, %c0_26] : memref<1x1x48xf32, #tpu.memory_space<vmem>>, vector<1x1x48xf32>
    %45 = vector.shape_cast %44 : vector<1x1x48xf32> to vector<1x48xf32>
    %46 = vector.broadcast %45 : vector<1x48xf32> to vector<64x48xf32>
    %47 = arith.addf %43, %46 : vector<64x48xf32>
    %48 = vector.shape_cast %47 : vector<64x48xf32> to vector<8x8x48xf32>
    %c0_27 = arith.constant 0 : index
    %c0_28 = arith.constant 0 : index
    %c0_29 = arith.constant 0 : index
    %49 = vector.load %arg10[%c0_27, %c0_28, %c0_29] : memref<1x48x48xbf16, #tpu.memory_space<vmem>>, vector<1x48x48xbf16>
    %50 = vector.shape_cast %49 : vector<1x48x48xbf16> to vector<48x48xbf16>
    %51 = arith.truncf %30 : vector<64x48xf32> to vector<64x48xbf16>
    %cst_30 = arith.constant dense<0.000000e+00> : vector<64x48xf32>
    %52 = tpu.matmul %51, %50, %cst_30 {dimension_numbers = #tpu.dot_dimension_numbers<[1], [0], [0], [1], [0, 0, 1, 1], [], []>} : vector<64x48xbf16>, vector<48x48xbf16>, vector<64x48xf32> -> vector<64x48xf32>
    %c0_31 = arith.constant 0 : index
    %c0_32 = arith.constant 0 : index
    %c0_33 = arith.constant 0 : index
    %53 = vector.load %arg11[%c0_31, %c0_32, %c0_33] : memref<1x1x48xf32, #tpu.memory_space<vmem>>, vector<1x1x48xf32>
    %54 = vector.shape_cast %53 : vector<1x1x48xf32> to vector<1x48xf32>
    %55 = vector.broadcast %54 : vector<1x48xf32> to vector<64x48xf32>
    %56 = arith.addf %52, %55 : vector<64x48xf32>
    %57 = vector.shape_cast %56 : vector<64x48xf32> to vector<8x8x48xf32>
    %58 = tpu.iota {dimensions = array<i32: 0>} : vector<8x8xi32>
    %59 = tpu.iota {dimensions = array<i32: 1>} : vector<8x8xi32>
    %60 = arith.cmpi sle, %59, %58 : vector<8x8xi32>
    %61 = vector.shape_cast %60 : vector<8x8xi1> to vector<1x8x8xi1>
    %62 = tpu.iota {dimensions = array<i32: 2>} : vector<1x1x48xi32>
    %63 = arith.truncf %48 : vector<8x8x48xf32> to vector<8x8x48xbf16>
    %cst_34 = arith.constant 0.000000e+00 : f32
    %64 = vector.broadcast %cst_34 : f32 to vector<8x8x48xf32>
    %c0_i32_35 = arith.constant 0 : i32
    %65 = vector.broadcast %c0_i32_35 : i32 to vector<1x1x48xi32>
    %66 = arith.cmpi sge, %62, %65 : vector<1x1x48xi32>
    %c12_i32 = arith.constant 12 : i32
    %67 = vector.broadcast %c12_i32 : i32 to vector<1x1x48xi32>
    %68 = arith.cmpi slt, %62, %67 : vector<1x1x48xi32>
    %69 = arith.andi %66, %68 : vector<1x1x48xi1>
    %70 = arith.extui %69 : vector<1x1x48xi1> to vector<1x1x48xi32>
    %71 = arith.sitofp %70 : vector<1x1x48xi32> to vector<1x1x48xf32>
    %72 = vector.broadcast %71 : vector<1x1x48xf32> to vector<8x8x48xf32>
    %73 = arith.mulf %39, %72 : vector<8x8x48xf32>
    %74 = arith.truncf %73 : vector<8x8x48xf32> to vector<8x8x48xbf16>
    "tpu.trace_start"() <{level = 10 : i32, message = "bqd,bkd->bqk"}> : () -> ()
    %cst_36 = arith.constant dense<0.000000e+00> : vector<8x8x8xf32>
    %75 = tpu.matmul %74, %63, %cst_36 {dimension_numbers = #tpu.dot_dimension_numbers<[2], [2], [1], [1], [0, 0, 0, 1, 1, 1], [0], [0]>} : vector<8x8x48xbf16>, vector<8x8x48xbf16>, vector<8x8x8xf32> -> vector<8x8x8xf32>
    "tpu.trace_stop"() : () -> ()
    %cst_37 = arith.constant 0.288675129 : f32
    %76 = vector.broadcast %cst_37 : f32 to vector<8x8x8xf32>
    %77 = arith.mulf %75, %76 : vector<8x8x8xf32>
    %cst_38 = arith.constant -1.000000e+30 : f32
    %78 = vector.shape_cast %61 : vector<1x8x8xi1> to vector<1x8x8xi1>
    %79 = vector.broadcast %78 : vector<1x8x8xi1> to vector<8x8x8xi1>
    %80 = vector.broadcast %cst_38 : f32 to vector<8x8x8xf32>
    %81 = arith.select %79, %77, %80 : vector<8x8x8xi1>, vector<8x8x8xf32>
    %cst_39 = arith.constant dense<0xFF800000> : vector<8x8xf32>
    %82 = vector.multi_reduction <maximumf>, %81, %cst_39 [2] : vector<8x8x8xf32> to vector<8x8xf32>
    %83 = vector.shape_cast %82 : vector<8x8xf32> to vector<8x8x1xf32>
    %84 = vector.broadcast %83 : vector<8x8x1xf32> to vector<8x8x8xf32>
    %85 = arith.subf %81, %84 : vector<8x8x8xf32>
    %86 = math.exp %85 : vector<8x8x8xf32>
    %cst_40 = arith.constant dense<0.000000e+00> : vector<8x8xf32>
    %87 = vector.multi_reduction <add>, %86, %cst_40 [2] : vector<8x8x8xf32> to vector<8x8xf32>
    %88 = vector.shape_cast %87 : vector<8x8xf32> to vector<8x8x1xf32>
    %89 = tpu.reciprocal %88 {approx = true} : vector<8x8x1xf32> -> vector<8x8x1xf32>
    %90 = vector.broadcast %89 : vector<8x8x1xf32> to vector<8x8x8xf32>
    %91 = arith.mulf %86, %90 : vector<8x8x8xf32>
    %92 = arith.truncf %91 : vector<8x8x8xf32> to vector<8x8x8xbf16>
    %93 = vector.broadcast %71 : vector<1x1x48xf32> to vector<8x8x48xf32>
    %94 = arith.mulf %57, %93 : vector<8x8x48xf32>
    %95 = arith.truncf %94 : vector<8x8x48xf32> to vector<8x8x48xbf16>
    "tpu.trace_start"() <{level = 10 : i32, message = "bqk,bkd->bqd"}> : () -> ()
    %cst_41 = arith.constant dense<0.000000e+00> : vector<8x8x48xf32>
    %96 = tpu.matmul %92, %95, %cst_41 {dimension_numbers = #tpu.dot_dimension_numbers<[2], [1], [1], [2], [0, 0, 0, 1, 1, 2], [0], [0]>} : vector<8x8x8xbf16>, vector<8x8x48xbf16>, vector<8x8x48xf32> -> vector<8x8x48xf32>
    "tpu.trace_stop"() : () -> ()
    %97 = arith.addf %64, %96 : vector<8x8x48xf32>
    %c12_i32_42 = arith.constant 12 : i32
    %98 = vector.broadcast %c12_i32_42 : i32 to vector<1x1x48xi32>
    %99 = arith.cmpi sge, %62, %98 : vector<1x1x48xi32>
    %c24_i32 = arith.constant 24 : i32
    %100 = vector.broadcast %c24_i32 : i32 to vector<1x1x48xi32>
    %101 = arith.cmpi slt, %62, %100 : vector<1x1x48xi32>
    %102 = arith.andi %99, %101 : vector<1x1x48xi1>
    %103 = arith.extui %102 : vector<1x1x48xi1> to vector<1x1x48xi32>
    %104 = arith.sitofp %103 : vector<1x1x48xi32> to vector<1x1x48xf32>
    %105 = vector.broadcast %104 : vector<1x1x48xf32> to vector<8x8x48xf32>
    %106 = arith.mulf %39, %105 : vector<8x8x48xf32>
    %107 = arith.truncf %106 : vector<8x8x48xf32> to vector<8x8x48xbf16>
    "tpu.trace_start"() <{level = 10 : i32, message = "bqd,bkd->bqk"}> : () -> ()
    %cst_43 = arith.constant dense<0.000000e+00> : vector<8x8x8xf32>
    %108 = tpu.matmul %107, %63, %cst_43 {dimension_numbers = #tpu.dot_dimension_numbers<[2], [2], [1], [1], [0, 0, 0, 1, 1, 1], [0], [0]>} : vector<8x8x48xbf16>, vector<8x8x48xbf16>, vector<8x8x8xf32> -> vector<8x8x8xf32>
    "tpu.trace_stop"() : () -> ()
    %cst_44 = arith.constant 0.288675129 : f32
    %109 = vector.broadcast %cst_44 : f32 to vector<8x8x8xf32>
    %110 = arith.mulf %108, %109 : vector<8x8x8xf32>
    %cst_45 = arith.constant -1.000000e+30 : f32
    %111 = vector.shape_cast %61 : vector<1x8x8xi1> to vector<1x8x8xi1>
    %112 = vector.broadcast %111 : vector<1x8x8xi1> to vector<8x8x8xi1>
    %113 = vector.broadcast %cst_45 : f32 to vector<8x8x8xf32>
    %114 = arith.select %112, %110, %113 : vector<8x8x8xi1>, vector<8x8x8xf32>
    %cst_46 = arith.constant dense<0xFF800000> : vector<8x8xf32>
    %115 = vector.multi_reduction <maximumf>, %114, %cst_46 [2] : vector<8x8x8xf32> to vector<8x8xf32>
    %116 = vector.shape_cast %115 : vector<8x8xf32> to vector<8x8x1xf32>
    %117 = vector.broadcast %116 : vector<8x8x1xf32> to vector<8x8x8xf32>
    %118 = arith.subf %114, %117 : vector<8x8x8xf32>
    %119 = math.exp %118 : vector<8x8x8xf32>
    %cst_47 = arith.constant dense<0.000000e+00> : vector<8x8xf32>
    %120 = vector.multi_reduction <add>, %119, %cst_47 [2] : vector<8x8x8xf32> to vector<8x8xf32>
    %121 = vector.shape_cast %120 : vector<8x8xf32> to vector<8x8x1xf32>
    %122 = tpu.reciprocal %121 {approx = true} : vector<8x8x1xf32> -> vector<8x8x1xf32>
    %123 = vector.broadcast %122 : vector<8x8x1xf32> to vector<8x8x8xf32>
    %124 = arith.mulf %119, %123 : vector<8x8x8xf32>
    %125 = arith.truncf %124 : vector<8x8x8xf32> to vector<8x8x8xbf16>
    %126 = vector.broadcast %104 : vector<1x1x48xf32> to vector<8x8x48xf32>
    %127 = arith.mulf %57, %126 : vector<8x8x48xf32>
    %128 = arith.truncf %127 : vector<8x8x48xf32> to vector<8x8x48xbf16>
    "tpu.trace_start"() <{level = 10 : i32, message = "bqk,bkd->bqd"}> : () -> ()
    %cst_48 = arith.constant dense<0.000000e+00> : vector<8x8x48xf32>
    %129 = tpu.matmul %125, %128, %cst_48 {dimension_numbers = #tpu.dot_dimension_numbers<[2], [1], [1], [2], [0, 0, 0, 1, 1, 2], [0], [0]>} : vector<8x8x8xbf16>, vector<8x8x48xbf16>, vector<8x8x48xf32> -> vector<8x8x48xf32>
    "tpu.trace_stop"() : () -> ()
    %130 = arith.addf %97, %129 : vector<8x8x48xf32>
    %c24_i32_49 = arith.constant 24 : i32
    %131 = vector.broadcast %c24_i32_49 : i32 to vector<1x1x48xi32>
    %132 = arith.cmpi sge, %62, %131 : vector<1x1x48xi32>
    %c36_i32 = arith.constant 36 : i32
    %133 = vector.broadcast %c36_i32 : i32 to vector<1x1x48xi32>
    %134 = arith.cmpi slt, %62, %133 : vector<1x1x48xi32>
    %135 = arith.andi %132, %134 : vector<1x1x48xi1>
    %136 = arith.extui %135 : vector<1x1x48xi1> to vector<1x1x48xi32>
    %137 = arith.sitofp %136 : vector<1x1x48xi32> to vector<1x1x48xf32>
    %138 = vector.broadcast %137 : vector<1x1x48xf32> to vector<8x8x48xf32>
    %139 = arith.mulf %39, %138 : vector<8x8x48xf32>
    %140 = arith.truncf %139 : vector<8x8x48xf32> to vector<8x8x48xbf16>
    "tpu.trace_start"() <{level = 10 : i32, message = "bqd,bkd->bqk"}> : () -> ()
    %cst_50 = arith.constant dense<0.000000e+00> : vector<8x8x8xf32>
    %141 = tpu.matmul %140, %63, %cst_50 {dimension_numbers = #tpu.dot_dimension_numbers<[2], [2], [1], [1], [0, 0, 0, 1, 1, 1], [0], [0]>} : vector<8x8x48xbf16>, vector<8x8x48xbf16>, vector<8x8x8xf32> -> vector<8x8x8xf32>
    "tpu.trace_stop"() : () -> ()
    %cst_51 = arith.constant 0.288675129 : f32
    %142 = vector.broadcast %cst_51 : f32 to vector<8x8x8xf32>
    %143 = arith.mulf %141, %142 : vector<8x8x8xf32>
    %cst_52 = arith.constant -1.000000e+30 : f32
    %144 = vector.shape_cast %61 : vector<1x8x8xi1> to vector<1x8x8xi1>
    %145 = vector.broadcast %144 : vector<1x8x8xi1> to vector<8x8x8xi1>
    %146 = vector.broadcast %cst_52 : f32 to vector<8x8x8xf32>
    %147 = arith.select %145, %143, %146 : vector<8x8x8xi1>, vector<8x8x8xf32>
    %cst_53 = arith.constant dense<0xFF800000> : vector<8x8xf32>
    %148 = vector.multi_reduction <maximumf>, %147, %cst_53 [2] : vector<8x8x8xf32> to vector<8x8xf32>
    %149 = vector.shape_cast %148 : vector<8x8xf32> to vector<8x8x1xf32>
    %150 = vector.broadcast %149 : vector<8x8x1xf32> to vector<8x8x8xf32>
    %151 = arith.subf %147, %150 : vector<8x8x8xf32>
    %152 = math.exp %151 : vector<8x8x8xf32>
    %cst_54 = arith.constant dense<0.000000e+00> : vector<8x8xf32>
    %153 = vector.multi_reduction <add>, %152, %cst_54 [2] : vector<8x8x8xf32> to vector<8x8xf32>
    %154 = vector.shape_cast %153 : vector<8x8xf32> to vector<8x8x1xf32>
    %155 = tpu.reciprocal %154 {approx = true} : vector<8x8x1xf32> -> vector<8x8x1xf32>
    %156 = vector.broadcast %155 : vector<8x8x1xf32> to vector<8x8x8xf32>
    %157 = arith.mulf %152, %156 : vector<8x8x8xf32>
    %158 = arith.truncf %157 : vector<8x8x8xf32> to vector<8x8x8xbf16>
    %159 = vector.broadcast %137 : vector<1x1x48xf32> to vector<8x8x48xf32>
    %160 = arith.mulf %57, %159 : vector<8x8x48xf32>
    %161 = arith.truncf %160 : vector<8x8x48xf32> to vector<8x8x48xbf16>
    "tpu.trace_start"() <{level = 10 : i32, message = "bqk,bkd->bqd"}> : () -> ()
    %cst_55 = arith.constant dense<0.000000e+00> : vector<8x8x48xf32>
    %162 = tpu.matmul %158, %161, %cst_55 {dimension_numbers = #tpu.dot_dimension_numbers<[2], [1], [1], [2], [0, 0, 0, 1, 1, 2], [0], [0]>} : vector<8x8x8xbf16>, vector<8x8x48xbf16>, vector<8x8x48xf32> -> vector<8x8x48xf32>
    "tpu.trace_stop"() : () -> ()
    %163 = arith.addf %130, %162 : vector<8x8x48xf32>
    %c36_i32_56 = arith.constant 36 : i32
    %164 = vector.broadcast %c36_i32_56 : i32 to vector<1x1x48xi32>
    %165 = arith.cmpi sge, %62, %164 : vector<1x1x48xi32>
    %c48_i32 = arith.constant 48 : i32
    %166 = vector.broadcast %c48_i32 : i32 to vector<1x1x48xi32>
    %167 = arith.cmpi slt, %62, %166 : vector<1x1x48xi32>
    %168 = arith.andi %165, %167 : vector<1x1x48xi1>
    %169 = arith.extui %168 : vector<1x1x48xi1> to vector<1x1x48xi32>
    %170 = arith.sitofp %169 : vector<1x1x48xi32> to vector<1x1x48xf32>
    %171 = vector.broadcast %170 : vector<1x1x48xf32> to vector<8x8x48xf32>
    %172 = arith.mulf %39, %171 : vector<8x8x48xf32>
    %173 = arith.truncf %172 : vector<8x8x48xf32> to vector<8x8x48xbf16>
    "tpu.trace_start"() <{level = 10 : i32, message = "bqd,bkd->bqk"}> : () -> ()
    %cst_57 = arith.constant dense<0.000000e+00> : vector<8x8x8xf32>
    %174 = tpu.matmul %173, %63, %cst_57 {dimension_numbers = #tpu.dot_dimension_numbers<[2], [2], [1], [1], [0, 0, 0, 1, 1, 1], [0], [0]>} : vector<8x8x48xbf16>, vector<8x8x48xbf16>, vector<8x8x8xf32> -> vector<8x8x8xf32>
    "tpu.trace_stop"() : () -> ()
    %cst_58 = arith.constant 0.288675129 : f32
    %175 = vector.broadcast %cst_58 : f32 to vector<8x8x8xf32>
    %176 = arith.mulf %174, %175 : vector<8x8x8xf32>
    %cst_59 = arith.constant -1.000000e+30 : f32
    %177 = vector.shape_cast %61 : vector<1x8x8xi1> to vector<1x8x8xi1>
    %178 = vector.broadcast %177 : vector<1x8x8xi1> to vector<8x8x8xi1>
    %179 = vector.broadcast %cst_59 : f32 to vector<8x8x8xf32>
    %180 = arith.select %178, %176, %179 : vector<8x8x8xi1>, vector<8x8x8xf32>
    %cst_60 = arith.constant dense<0xFF800000> : vector<8x8xf32>
    %181 = vector.multi_reduction <maximumf>, %180, %cst_60 [2] : vector<8x8x8xf32> to vector<8x8xf32>
    %182 = vector.shape_cast %181 : vector<8x8xf32> to vector<8x8x1xf32>
    %183 = vector.broadcast %182 : vector<8x8x1xf32> to vector<8x8x8xf32>
    %184 = arith.subf %180, %183 : vector<8x8x8xf32>
    %185 = math.exp %184 : vector<8x8x8xf32>
    %cst_61 = arith.constant dense<0.000000e+00> : vector<8x8xf32>
    %186 = vector.multi_reduction <add>, %185, %cst_61 [2] : vector<8x8x8xf32> to vector<8x8xf32>
    %187 = vector.shape_cast %186 : vector<8x8xf32> to vector<8x8x1xf32>
    %188 = tpu.reciprocal %187 {approx = true} : vector<8x8x1xf32> -> vector<8x8x1xf32>
    %189 = vector.broadcast %188 : vector<8x8x1xf32> to vector<8x8x8xf32>
    %190 = arith.mulf %185, %189 : vector<8x8x8xf32>
    %191 = arith.truncf %190 : vector<8x8x8xf32> to vector<8x8x8xbf16>
    %192 = vector.broadcast %170 : vector<1x1x48xf32> to vector<8x8x48xf32>
    %193 = arith.mulf %57, %192 : vector<8x8x48xf32>
    %194 = arith.truncf %193 : vector<8x8x48xf32> to vector<8x8x48xbf16>
    "tpu.trace_start"() <{level = 10 : i32, message = "bqk,bkd->bqd"}> : () -> ()
    %cst_62 = arith.constant dense<0.000000e+00> : vector<8x8x48xf32>
    %195 = tpu.matmul %191, %194, %cst_62 {dimension_numbers = #tpu.dot_dimension_numbers<[2], [1], [1], [2], [0, 0, 0, 1, 1, 2], [0], [0]>} : vector<8x8x8xbf16>, vector<8x8x48xbf16>, vector<8x8x48xf32> -> vector<8x8x48xf32>
    "tpu.trace_stop"() : () -> ()
    %196 = arith.addf %163, %195 : vector<8x8x48xf32>
    %197 = vector.shape_cast %196 : vector<8x8x48xf32> to vector<64x48xf32>
    %c0_63 = arith.constant 0 : index
    %c0_64 = arith.constant 0 : index
    %c0_65 = arith.constant 0 : index
    %198 = vector.load %arg12[%c0_63, %c0_64, %c0_65] : memref<1x48x48xbf16, #tpu.memory_space<vmem>>, vector<1x48x48xbf16>
    %199 = vector.shape_cast %198 : vector<1x48x48xbf16> to vector<48x48xbf16>
    %200 = arith.truncf %197 : vector<64x48xf32> to vector<64x48xbf16>
    %cst_66 = arith.constant dense<0.000000e+00> : vector<64x48xf32>
    %201 = tpu.matmul %200, %199, %cst_66 {dimension_numbers = #tpu.dot_dimension_numbers<[1], [0], [0], [1], [0, 0, 1, 1], [], []>} : vector<64x48xbf16>, vector<48x48xbf16>, vector<64x48xf32> -> vector<64x48xf32>
    %c0_67 = arith.constant 0 : index
    %c0_68 = arith.constant 0 : index
    %c0_69 = arith.constant 0 : index
    %202 = vector.load %arg13[%c0_67, %c0_68, %c0_69] : memref<1x1x48xf32, #tpu.memory_space<vmem>>, vector<1x1x48xf32>
    %203 = vector.shape_cast %202 : vector<1x1x48xf32> to vector<1x48xf32>
    %204 = vector.broadcast %203 : vector<1x48xf32> to vector<64x48xf32>
    %205 = arith.addf %201, %204 : vector<64x48xf32>
    %206 = vector.shape_cast %205 : vector<64x48xf32> to vector<8x8x48xf32>
    %207 = arith.addf %3, %206 : vector<8x8x48xf32>
    %c0_70 = arith.constant 0 : index
    %c0_71 = arith.constant 0 : index
    %c0_72 = arith.constant 0 : index
    %208 = vector.load %arg14[%c0_70, %c0_71, %c0_72] : memref<1x1x48xf32, #tpu.memory_space<vmem>>, vector<1x1x48xf32>
    %209 = vector.shape_cast %208 : vector<1x1x48xf32> to vector<1x48xf32>
    %c0_73 = arith.constant 0 : index
    %c0_74 = arith.constant 0 : index
    %c0_75 = arith.constant 0 : index
    %210 = vector.load %arg15[%c0_73, %c0_74, %c0_75] : memref<1x1x48xf32, #tpu.memory_space<vmem>>, vector<1x1x48xf32>
    %211 = vector.shape_cast %210 : vector<1x1x48xf32> to vector<1x48xf32>
    %cst_76 = arith.constant dense<0.000000e+00> : vector<8x8xf32>
    %212 = vector.multi_reduction <add>, %207, %cst_76 [2] : vector<8x8x48xf32> to vector<8x8xf32>
    %213 = vector.shape_cast %212 : vector<8x8xf32> to vector<8x8x1xf32>
    %cst_77 = arith.constant 4.800000e+01 : f32
    %214 = vector.broadcast %cst_77 : f32 to vector<8x8x1xf32>
    %215 = arith.divf %213, %214 : vector<8x8x1xf32>
    %216 = vector.broadcast %215 : vector<8x8x1xf32> to vector<8x8x48xf32>
    %217 = arith.subf %207, %216 : vector<8x8x48xf32>
    %218 = arith.mulf %217, %217 : vector<8x8x48xf32>
    %cst_78 = arith.constant dense<0.000000e+00> : vector<8x8xf32>
    %219 = vector.multi_reduction <add>, %218, %cst_78 [2] : vector<8x8x48xf32> to vector<8x8xf32>
    %220 = vector.shape_cast %219 : vector<8x8xf32> to vector<8x8x1xf32>
    %cst_79 = arith.constant 4.800000e+01 : f32
    %221 = vector.broadcast %cst_79 : f32 to vector<8x8x1xf32>
    %222 = arith.divf %220, %221 : vector<8x8x1xf32>
    %cst_80 = arith.constant 9.99999974E-6 : f32
    %223 = vector.broadcast %cst_80 : f32 to vector<8x8x1xf32>
    %224 = arith.addf %222, %223 : vector<8x8x1xf32>
    %225 = math.rsqrt %224 : vector<8x8x1xf32>
    %226 = vector.broadcast %225 : vector<8x8x1xf32> to vector<8x8x48xf32>
    %227 = arith.mulf %217, %226 : vector<8x8x48xf32>
    %228 = vector.shape_cast %209 : vector<1x48xf32> to vector<1x1x48xf32>
    %229 = vector.broadcast %228 : vector<1x1x48xf32> to vector<8x8x48xf32>
    %230 = arith.mulf %227, %229 : vector<8x8x48xf32>
    %231 = vector.shape_cast %211 : vector<1x48xf32> to vector<1x1x48xf32>
    %232 = vector.broadcast %231 : vector<1x1x48xf32> to vector<8x8x48xf32>
    %233 = arith.addf %230, %232 : vector<8x8x48xf32>
    %234 = vector.shape_cast %233 : vector<8x8x48xf32> to vector<64x48xf32>
    %c0_81 = arith.constant 0 : index
    %c0_82 = arith.constant 0 : index
    %c0_83 = arith.constant 0 : index
    %235 = vector.load %arg16[%c0_81, %c0_82, %c0_83] : memref<1x48x192xbf16, #tpu.memory_space<vmem>>, vector<1x48x192xbf16>
    %236 = vector.shape_cast %235 : vector<1x48x192xbf16> to vector<48x192xbf16>
    %237 = arith.truncf %234 : vector<64x48xf32> to vector<64x48xbf16>
    %cst_84 = arith.constant dense<0.000000e+00> : vector<64x192xf32>
    %238 = tpu.matmul %237, %236, %cst_84 {dimension_numbers = #tpu.dot_dimension_numbers<[1], [0], [0], [1], [0, 0, 1, 1], [], []>} : vector<64x48xbf16>, vector<48x192xbf16>, vector<64x192xf32> -> vector<64x192xf32>
    %c0_85 = arith.constant 0 : index
    %c0_86 = arith.constant 0 : index
    %c0_87 = arith.constant 0 : index
    %239 = vector.load %arg17[%c0_85, %c0_86, %c0_87] : memref<1x1x192xf32, #tpu.memory_space<vmem>>, vector<1x1x192xf32>
    %240 = vector.shape_cast %239 : vector<1x1x192xf32> to vector<1x192xf32>
    %241 = vector.broadcast %240 : vector<1x192xf32> to vector<64x192xf32>
    %242 = arith.addf %238, %241 : vector<64x192xf32>
    %cst_88 = arith.constant 5.000000e-01 : f32
    %243 = vector.broadcast %cst_88 : f32 to vector<64x192xf32>
    %244 = arith.mulf %243, %242 : vector<64x192xf32>
    %cst_89 = arith.constant 4.471500e-02 : f32
    %245 = vector.broadcast %cst_89 : f32 to vector<64x192xf32>
    %246 = arith.mulf %245, %242 : vector<64x192xf32>
    %247 = arith.mulf %246, %242 : vector<64x192xf32>
    %248 = arith.mulf %247, %242 : vector<64x192xf32>
    %249 = arith.addf %242, %248 : vector<64x192xf32>
    %cst_90 = arith.constant 0.797884583 : f32
    %250 = vector.broadcast %cst_90 : f32 to vector<64x192xf32>
    %251 = arith.mulf %250, %249 : vector<64x192xf32>
    %252 = math.tanh %251 : vector<64x192xf32>
    %cst_91 = arith.constant 1.000000e+00 : f32
    %253 = vector.broadcast %cst_91 : f32 to vector<64x192xf32>
    %254 = arith.addf %253, %252 : vector<64x192xf32>
    %255 = arith.mulf %244, %254 : vector<64x192xf32>
    %c0_92 = arith.constant 0 : index
    %c0_93 = arith.constant 0 : index
    %c0_94 = arith.constant 0 : index
    %256 = vector.load %arg18[%c0_92, %c0_93, %c0_94] : memref<1x192x48xbf16, #tpu.memory_space<vmem>>, vector<1x192x48xbf16>
    %257 = vector.shape_cast %256 : vector<1x192x48xbf16> to vector<192x48xbf16>
    %258 = arith.truncf %255 : vector<64x192xf32> to vector<64x192xbf16>
    %cst_95 = arith.constant dense<0.000000e+00> : vector<64x48xf32>
    %259 = tpu.matmul %258, %257, %cst_95 {dimension_numbers = #tpu.dot_dimension_numbers<[1], [0], [0], [1], [0, 0, 1, 1], [], []>} : vector<64x192xbf16>, vector<192x48xbf16>, vector<64x48xf32> -> vector<64x48xf32>
    %c0_96 = arith.constant 0 : index
    %c0_97 = arith.constant 0 : index
    %c0_98 = arith.constant 0 : index
    %260 = vector.load %arg19[%c0_96, %c0_97, %c0_98] : memref<1x1x48xf32, #tpu.memory_space<vmem>>, vector<1x1x48xf32>
    %261 = vector.shape_cast %260 : vector<1x1x48xf32> to vector<1x48xf32>
    %262 = vector.broadcast %261 : vector<1x48xf32> to vector<64x48xf32>
    %263 = arith.addf %259, %262 : vector<64x48xf32>
    %264 = vector.shape_cast %263 : vector<64x48xf32> to vector<8x8x48xf32>
    %265 = arith.addf %207, %264 : vector<8x8x48xf32>
    %c0_99 = arith.constant 0 : index
    %c0_100 = arith.constant 0 : index
    %c0_101 = arith.constant 0 : index
    %266 = vector.load %arg25[%c0_99, %c0_100, %c0_101] : memref<8x8x48xf32, #tpu.memory_space<vmem>>, vector<8x8x48xf32>
    tpu.vector_store %arg25[%c0_99, %c0_100, %c0_101], %265 {strides = array<i32>} : memref<8x8x48xf32, #tpu.memory_space<vmem>>, vector<8x8x48xf32>,
    %c1_i32 = arith.constant 1 : i32
    %267 = arith.cmpi eq, %arg1, %c1_i32 : i32
    %268 = arith.extui %267 : i1 to i32
    %c0_i32_102 = arith.constant 0 : i32
    %269 = arith.cmpi ne, %268, %c0_i32_102 : i32
    scf.if %269 {
      %c0_103 = arith.constant 0 : index
      %c0_104 = arith.constant 0 : index
      %270 = vector.load %arg20[%c0_103, %c0_104] : memref<1x48xf32, #tpu.memory_space<vmem>>, vector<1x48xf32>
      %c0_105 = arith.constant 0 : index
      %c0_106 = arith.constant 0 : index
      %271 = vector.load %arg21[%c0_105, %c0_106] : memref<1x48xf32, #tpu.memory_space<vmem>>, vector<1x48xf32>
      %cst_107 = arith.constant dense<0.000000e+00> : vector<8x8xf32>
      %272 = vector.multi_reduction <add>, %265, %cst_107 [2] : vector<8x8x48xf32> to vector<8x8xf32>
      %273 = vector.shape_cast %272 : vector<8x8xf32> to vector<8x8x1xf32>
      %cst_108 = arith.constant 4.800000e+01 : f32
      %274 = vector.broadcast %cst_108 : f32 to vector<8x8x1xf32>
      %275 = arith.divf %273, %274 : vector<8x8x1xf32>
      %276 = vector.broadcast %275 : vector<8x8x1xf32> to vector<8x8x48xf32>
      %277 = arith.subf %265, %276 : vector<8x8x48xf32>
      %278 = arith.mulf %277, %277 : vector<8x8x48xf32>
      %cst_109 = arith.constant dense<0.000000e+00> : vector<8x8xf32>
      %279 = vector.multi_reduction <add>, %278, %cst_109 [2] : vector<8x8x48xf32> to vector<8x8xf32>
      %280 = vector.shape_cast %279 : vector<8x8xf32> to vector<8x8x1xf32>
      %cst_110 = arith.constant 4.800000e+01 : f32
      %281 = vector.broadcast %cst_110 : f32 to vector<8x8x1xf32>
      %282 = arith.divf %280, %281 : vector<8x8x1xf32>
      %cst_111 = arith.constant 9.99999974E-6 : f32
      %283 = vector.broadcast %cst_111 : f32 to vector<8x8x1xf32>
      %284 = arith.addf %282, %283 : vector<8x8x1xf32>
      %285 = math.rsqrt %284 : vector<8x8x1xf32>
      %286 = vector.broadcast %285 : vector<8x8x1xf32> to vector<8x8x48xf32>
      %287 = arith.mulf %277, %286 : vector<8x8x48xf32>
      %288 = vector.shape_cast %270 : vector<1x48xf32> to vector<1x1x48xf32>
      %289 = vector.broadcast %288 : vector<1x1x48xf32> to vector<8x8x48xf32>
      %290 = arith.mulf %287, %289 : vector<8x8x48xf32>
      %291 = vector.shape_cast %271 : vector<1x48xf32> to vector<1x1x48xf32>
      %292 = vector.broadcast %291 : vector<1x1x48xf32> to vector<8x8x48xf32>
      %293 = arith.addf %290, %292 : vector<8x8x48xf32>
      %294 = vector.shape_cast %293 : vector<8x8x48xf32> to vector<8x384xf32>
      %c0_112 = arith.constant 0 : index
      %c0_113 = arith.constant 0 : index
      %295 = vector.load %arg22[%c0_112, %c0_113] : memref<384x8xf32, #tpu.memory_space<vmem>>, vector<384x8xf32>
      %cst_114 = arith.constant dense<0.000000e+00> : vector<8x8xf32>
      %296 = tpu.matmul %294, %295, %cst_114 {dimension_numbers = #tpu.dot_dimension_numbers<[1], [0], [0], [1], [0, 0, 1, 1], [], []>} : vector<8x384xf32>, vector<384x8xf32>, vector<8x8xf32> -> vector<8x8xf32>
      %c0_115 = arith.constant 0 : index
      %c0_116 = arith.constant 0 : index
      %297 = vector.load %arg23[%c0_115, %c0_116] : memref<1x8xf32, #tpu.memory_space<vmem>>, vector<1x8xf32>
      %cst_117 = arith.constant 3.000000e+00 : f32
      %298 = vector.broadcast %cst_117 : f32 to vector<1x8xf32>
      %299 = arith.mulf %298, %297 : vector<1x8xf32>
      %300 = vector.broadcast %299 : vector<1x8xf32> to vector<8x8xf32>
      %301 = arith.addf %296, %300 : vector<8x8xf32>
      %c0_118 = arith.constant 0 : index
      %c0_119 = arith.constant 0 : index
      %c0_120 = arith.constant 0 : index
      %302 = vector.load %arg3[%c0_118, %c0_119, %c0_120] : memref<1x8x2xf32, #tpu.memory_space<vmem>>, vector<1x8x2xf32>
      %303 = vector.shape_cast %302 : vector<1x8x2xf32> to vector<8x2xf32>
      %304 = vector.extract_strided_slice %303 {offsets = [0, 1], sizes = [8, 1], strides = [1, 1]} : vector<8x2xf32> to vector<8x1xf32>
      %305 = vector.broadcast %304 : vector<8x1xf32> to vector<8x8xf32>
      %306 = arith.mulf %301, %305 : vector<8x8xf32>
      %307 = vector.extract_strided_slice %303 {offsets = [0, 0], sizes = [8, 1], strides = [1, 1]} : vector<8x2xf32> to vector<8x1xf32>
      %308 = vector.broadcast %307 : vector<8x1xf32> to vector<8x8xf32>
      %309 = arith.addf %306, %308 : vector<8x8xf32>
      %c0_121 = arith.constant 0 : index
      %c0_122 = arith.constant 0 : index
      %c0_123 = arith.constant 0 : index
      %310 = vector.load %arg24[%c0_121, %c0_122, %c0_123] : memref<1x8x8xf32, #tpu.memory_space<vmem>>, vector<1x8x8xf32>
      %311 = vector.shape_cast %310 : vector<1x8x8xf32> to vector<8x8xf32>
      %312 = vector.shape_cast %309 : vector<8x8xf32> to vector<1x8x8xf32>
      tpu.vector_store %arg24[%c0_121, %c0_122, %c0_123], %312 {strides = array<i32>} : memref<1x8x8xf32, #tpu.memory_space<vmem>>, vector<1x8x8xf32>,
    } else {
    }
    return
  }
  func.func @transform_0(%arg0: i32, %arg1: i32) -> (i32, i32, i32, i32) {
    %c0_i32 = arith.constant 0 : i32
    %c0_i32_0 = arith.constant 0 : i32
    %c0_i32_1 = arith.constant 0 : i32
    %c0_i32_2 = arith.constant 0 : i32
    return %arg0, %c0_i32, %c0_i32_0, %c0_i32_1 : i32, i32, i32, i32
  }
  func.func @transform_1(%arg0: i32, %arg1: i32) -> (i32, i32, i32) {
    %c0_i32 = arith.constant 0 : i32
    %c0_i32_0 = arith.constant 0 : i32
    %c0_i32_1 = arith.constant 0 : i32
    return %arg0, %c0_i32, %c0_i32_0 : i32, i32, i32
  }
  func.func @transform_2(%arg0: i32, %arg1: i32) -> (i32, i32, i32) {
    %c0_i32 = arith.constant 0 : i32
    %c0_i32_0 = arith.constant 0 : i32
    %c0_i32_1 = arith.constant 0 : i32
    return %arg1, %c0_i32, %c0_i32_0 : i32, i32, i32
  }
  func.func @transform_3(%arg0: i32, %arg1: i32) -> (i32, i32, i32) {
    %c0_i32 = arith.constant 0 : i32
    %c0_i32_0 = arith.constant 0 : i32
    %c0_i32_1 = arith.constant 0 : i32
    return %arg1, %c0_i32, %c0_i32_0 : i32, i32, i32
  }
  func.func @transform_4(%arg0: i32, %arg1: i32) -> (i32, i32, i32) {
    %c0_i32 = arith.constant 0 : i32
    %c0_i32_0 = arith.constant 0 : i32
    %c0_i32_1 = arith.constant 0 : i32
    return %arg1, %c0_i32, %c0_i32_0 : i32, i32, i32
  }
  func.func @transform_5(%arg0: i32, %arg1: i32) -> (i32, i32, i32) {
    %c0_i32 = arith.constant 0 : i32
    %c0_i32_0 = arith.constant 0 : i32
    %c0_i32_1 = arith.constant 0 : i32
    return %arg1, %c0_i32, %c0_i32_0 : i32, i32, i32
  }
  func.func @transform_6(%arg0: i32, %arg1: i32) -> (i32, i32, i32) {
    %c0_i32 = arith.constant 0 : i32
    %c0_i32_0 = arith.constant 0 : i32
    %c0_i32_1 = arith.constant 0 : i32
    return %arg1, %c0_i32, %c0_i32_0 : i32, i32, i32
  }
  func.func @transform_7(%arg0: i32, %arg1: i32) -> (i32, i32, i32) {
    %c0_i32 = arith.constant 0 : i32
    %c0_i32_0 = arith.constant 0 : i32
    %c0_i32_1 = arith.constant 0 : i32
    return %arg1, %c0_i32, %c0_i32_0 : i32, i32, i32
  }
  func.func @transform_8(%arg0: i32, %arg1: i32) -> (i32, i32, i32) {
    %c0_i32 = arith.constant 0 : i32
    %c0_i32_0 = arith.constant 0 : i32
    %c0_i32_1 = arith.constant 0 : i32
    return %arg1, %c0_i32, %c0_i32_0 : i32, i32, i32
  }
  func.func @transform_9(%arg0: i32, %arg1: i32) -> (i32, i32, i32) {
    %c0_i32 = arith.constant 0 : i32
    %c0_i32_0 = arith.constant 0 : i32
    %c0_i32_1 = arith.constant 0 : i32
    return %arg1, %c0_i32, %c0_i32_0 : i32, i32, i32
  }
  func.func @transform_10(%arg0: i32, %arg1: i32) -> (i32, i32, i32) {
    %c0_i32 = arith.constant 0 : i32
    %c0_i32_0 = arith.constant 0 : i32
    %c0_i32_1 = arith.constant 0 : i32
    return %arg1, %c0_i32, %c0_i32_0 : i32, i32, i32
  }
  func.func @transform_11(%arg0: i32, %arg1: i32) -> (i32, i32, i32) {
    %c0_i32 = arith.constant 0 : i32
    %c0_i32_0 = arith.constant 0 : i32
    %c0_i32_1 = arith.constant 0 : i32
    return %arg1, %c0_i32, %c0_i32_0 : i32, i32, i32
  }
  func.func @transform_12(%arg0: i32, %arg1: i32) -> (i32, i32, i32) {
    %c0_i32 = arith.constant 0 : i32
    %c0_i32_0 = arith.constant 0 : i32
    %c0_i32_1 = arith.constant 0 : i32
    return %arg1, %c0_i32, %c0_i32_0 : i32, i32, i32
  }
  func.func @transform_13(%arg0: i32, %arg1: i32) -> (i32, i32, i32) {
    %c0_i32 = arith.constant 0 : i32
    %c0_i32_0 = arith.constant 0 : i32
    %c0_i32_1 = arith.constant 0 : i32
    return %arg1, %c0_i32, %c0_i32_0 : i32, i32, i32
  }
  func.func @transform_14(%arg0: i32, %arg1: i32) -> (i32, i32, i32) {
    %c0_i32 = arith.constant 0 : i32
    %c0_i32_0 = arith.constant 0 : i32
    %c0_i32_1 = arith.constant 0 : i32
    return %arg1, %c0_i32, %c0_i32_0 : i32, i32, i32
  }
  func.func @transform_15(%arg0: i32, %arg1: i32) -> (i32, i32, i32) {
    %c0_i32 = arith.constant 0 : i32
    %c0_i32_0 = arith.constant 0 : i32
    %c0_i32_1 = arith.constant 0 : i32
    return %arg1, %c0_i32, %c0_i32_0 : i32, i32, i32
  }
  func.func @transform_16(%arg0: i32, %arg1: i32) -> (i32, i32, i32) {
    %c0_i32 = arith.constant 0 : i32
    %c0_i32_0 = arith.constant 0 : i32
    %c0_i32_1 = arith.constant 0 : i32
    return %arg1, %c0_i32, %c0_i32_0 : i32, i32, i32
  }
  func.func @transform_17(%arg0: i32, %arg1: i32) -> (i32, i32, i32) {
    %c0_i32 = arith.constant 0 : i32
    %c0_i32_0 = arith.constant 0 : i32
    %c0_i32_1 = arith.constant 0 : i32
    return %arg1, %c0_i32, %c0_i32_0 : i32, i32, i32
  }
  func.func @transform_18(%arg0: i32, %arg1: i32) -> (i32, i32) {
    %c0_i32 = arith.constant 0 : i32
    %c0_i32_0 = arith.constant 0 : i32
    %c0_i32_1 = arith.constant 0 : i32
    return %c0_i32, %c0_i32_0 : i32, i32
  }
  func.func @transform_19(%arg0: i32, %arg1: i32) -> (i32, i32) {
    %c0_i32 = arith.constant 0 : i32
    %c0_i32_0 = arith.constant 0 : i32
    %c0_i32_1 = arith.constant 0 : i32
    return %c0_i32, %c0_i32_0 : i32, i32
  }
  func.func @transform_20(%arg0: i32, %arg1: i32) -> (i32, i32) {
    %c0_i32 = arith.constant 0 : i32
    %c0_i32_0 = arith.constant 0 : i32
    %c0_i32_1 = arith.constant 0 : i32
    return %c0_i32, %c0_i32_0 : i32, i32
  }
  func.func @transform_21(%arg0: i32, %arg1: i32) -> (i32, i32) {
    %c0_i32 = arith.constant 0 : i32
    %c0_i32_0 = arith.constant 0 : i32
    %c0_i32_1 = arith.constant 0 : i32
    return %c0_i32, %c0_i32_0 : i32, i32
  }
  func.func @transform_22(%arg0: i32, %arg1: i32) -> (i32, i32, i32) {
    %c0_i32 = arith.constant 0 : i32
    %c0_i32_0 = arith.constant 0 : i32
    %c0_i32_1 = arith.constant 0 : i32
    return %arg0, %c0_i32, %c0_i32_0 : i32, i32, i32
  }
}

</mosaic_0001>

<llo_original>
// kernel: _lambda_.1
$region0: #{_lambda_.1}
  #allocation0 [shape = 'u32[]', space=smem, size = 0x4, offset = 0x4, fixed_abs, tag = 'smem constant byte address 0x4 - core index']
  #allocation1 [shape = 'u32[72,128]{1,0:T(1,128)}', space=vmem, size = 0x9000, scoped, tag = 'internal scratch']
  #allocation2 [shape = 'f32[8,8,48]{2,1,0:T(8,128)}', space=vmem, size = 0x8000, scoped, tag = 'scratch operand']
  %s0 = inlined_call_operand.vmem [shape: f32[1,8,8,48], index: 0, kind: input, shape index: {}]
  %s1 = inlined_call_operand.vmem [shape: f32[1,8,2], index: 1, kind: input, shape index: {}]
  %s2 = inlined_call_operand.vmem [shape: f32[2,1,48], index: 2, kind: input, shape index: {}]
  %s3 = inlined_call_operand.vmem [shape: f32[2,1,48], index: 3, kind: input, shape index: {}]
  %s4 = inlined_call_operand.vmem [shape: bf16[2,48,48], index: 4, kind: input, shape index: {}]
  %s5 = inlined_call_operand.vmem [shape: f32[2,1,48], index: 5, kind: input, shape index: {}]
  %s6 = inlined_call_operand.vmem [shape: bf16[2,48,48], index: 6, kind: input, shape index: {}]
  %s7 = inlined_call_operand.vmem [shape: f32[2,1,48], index: 7, kind: input, shape index: {}]
  %s8 = inlined_call_operand.vmem [shape: bf16[2,48,48], index: 8, kind: input, shape index: {}]
  %s9 = inlined_call_operand.vmem [shape: f32[2,1,48], index: 9, kind: input, shape index: {}]
  %s10 = inlined_call_operand.vmem [shape: bf16[2,48,48], index: 10, kind: input, shape index: {}]
  %s11 = inlined_call_operand.vmem [shape: f32[2,1,48], index: 11, kind: input, shape index: {}]
  %s12 = inlined_call_operand.vmem [shape: f32[2,1,48], index: 12, kind: input, shape index: {}]
  %s13 = inlined_call_operand.vmem [shape: f32[2,1,48], index: 13, kind: input, shape index: {}]
  %s14 = inlined_call_operand.vmem [shape: bf16[2,48,192], index: 14, kind: input, shape index: {}]
  %s15 = inlined_call_operand.vmem [shape: f32[2,1,192], index: 15, kind: input, shape index: {}]
  %s16 = inlined_call_operand.vmem [shape: bf16[2,192,48], index: 16, kind: input, shape index: {}]
  %s17 = inlined_call_operand.vmem [shape: f32[2,1,48], index: 17, kind: input, shape index: {}]
  %s18 = inlined_call_operand.vmem [shape: f32[1,48], index: 18, kind: input, shape index: {}]
  %s19 = inlined_call_operand.vmem [shape: f32[1,48], index: 19, kind: input, shape index: {}]
  %s20 = inlined_call_operand.vmem [shape: f32[384,8], index: 20, kind: input, shape index: {}]
  %s21 = inlined_call_operand.vmem [shape: f32[1,8], index: 21, kind: input, shape index: {}]
  %s22 = inlined_call_operand.hbm [shape: f32[1,8,8], index: 22, kind: output, shape index: {}]
  %s23 = sld [smem:[#allocation0]]
  $region129: #{_lambda_.1} parent=0
    _
  %s25 = ssub.s32 1, %s23
  %s26 = scalar_select 0, %s25, %s23
  $region1: #{_lambda_.1} parent=0
    #allocation3 [shape = 'u8[4096]{0}', space=vmem, size = 0x1000, scoped, tag = 'output window, operand 0, single buffered']
    #allocation4 [shape = 's32[2]{0}', space=sflag, size = 0x8, scoped, tag = 'scoped memory for _lambda_.1']
    %27 = vsyncpa [#allocation4], 0
    loop: start=0, step=1, limit=4
    $region2: #{_lambda_.1} parent=1 // loop_pre_header
      _
    $region3: #{_lambda_.1} parent=1 // loop_header
      %s29 = sphi 0, %s33
      %p30 = scmp.ge.s32.totalorder %s29, 4
      %s36 = sphi 0, %s48
      %s37 = sphi 0, %s44
      %s38 = sphi 0, %s36
      %s39 = sphi 0, %s37
      %s40 = sphi 0, %s38
      %s41 = sphi 0, %s39
      %s51 = sphi 0, %s53
      %s54 = sphi 0, %s51
      %s55 = sphi 0, %s54
      %s71 = sphi 0, %s55
      %s77 = sphi 0, %s79
      %s80 = sphi 0, %s77
      %s81 = sphi 0, %s80
      %s97 = sphi 0, %s81
      %s103 = sphi 0, %s105
      %s106 = sphi 0, %s103
      %s107 = sphi 0, %s106
      %s123 = sphi 0, %s107
      %s129 = sphi 0, %s131
      %s132 = sphi 0, %s129
      %s133 = sphi 0, %s132
      %s149 = sphi 0, %s133
      %s155 = sphi 0, %s157
      %s158 = sphi 0, %s155
      %s159 = sphi 0, %s158
      %s175 = sphi 0, %s159
      %s181 = sphi 0, %s183
      %s184 = sphi 0, %s181
      %s185 = sphi 0, %s184
      %s201 = sphi 0, %s185
      %s207 = sphi 0, %s209
      %s210 = sphi 0, %s207
      %s211 = sphi 0, %s210
      %s227 = sphi 0, %s211
      %s233 = sphi 0, %s235
      %s236 = sphi 0, %s233
      %s237 = sphi 0, %s236
      %s253 = sphi 0, %s237
      %s259 = sphi 0, %s261
      %s262 = sphi 0, %s259
      %s263 = sphi 0, %s262
      %s279 = sphi 0, %s263
      %s285 = sphi 0, %s287
      %s288 = sphi 0, %s285
      %s289 = sphi 0, %s288
      %s305 = sphi 0, %s289
      %s311 = sphi 0, %s313
      %s314 = sphi 0, %s311
      %s315 = sphi 0, %s314
      %s331 = sphi 0, %s315
      %s337 = sphi 0, %s339
      %s340 = sphi 0, %s337
      %s341 = sphi 0, %s340
      %s357 = sphi 0, %s341
      %s363 = sphi 0, %s365
      %s366 = sphi 0, %s363
      %s367 = sphi 0, %s366
      %s383 = sphi 0, %s367
      %s389 = sphi 0, %s391
      %s392 = sphi 0, %s389
      %s393 = sphi 0, %s392
      %s409 = sphi 0, %s393
      %s415 = sphi 0, %s417
      %s418 = sphi 0, %s415
      %s419 = sphi 0, %s418
      %s435 = sphi 0, %s419
      %s441 = sphi 0, %s443
      %s444 = sphi 0, %s441
      %s445 = sphi 0, %s444
      %s461 = sphi 0, %s445
      %s467 = sphi 0, %s469
      %s470 = sphi 0, %s467
      %s471 = sphi 0, %s470
      %s487 = sphi 0, %s471
      %s493 = sphi 0, %s495
      %s496 = sphi 0, %s493
      %s497 = sphi 0, %s496
      %s513 = sphi 0, %s497
      %s517 = sphi 0, %s517
      %s519 = sphi 0, %s517
      %s520 = sphi 0, %s519
      %s534 = sphi 0, %s520
      %s538 = sphi 0, %s538
      %s540 = sphi 0, %s538
      %s541 = sphi 0, %s540
      %s555 = sphi 0, %s541
      %s559 = sphi 0, %s559
      %s561 = sphi 0, %s559
      %s562 = sphi 0, %s561
      %s576 = sphi 0, %s562
      %s580 = sphi 0, %s580
      %s582 = sphi 0, %s580
      %s583 = sphi 0, %s582
      %s597 = sphi 0, %s583
      %s603 = sphi 0, %s605
      %s606 = sphi 0, %s603
      %s607 = sphi 0, %s606
      %s623 = sphi 0, %s607
    $region4: #{_lambda_.1} parent=1 // loop_header_branch
      %32 = sbr.rel (%p30) target = $region8
    $region5: #{_lambda_.1} parent=1 // loop_body
      %s34 = ssub.s32 %s29, 1
      %s35 = ssub.s32 %s29, 2
      %s42 = sadd.s32 1, %s37
      %p43 = scmp.ge.s32.totalorder %s42, 2
      %s44 = scalar_select %p43, 0, %s42
      %s45 = sadd.s32 1, %s36
      %s46 = scalar_select %p43, %s45, %s36
      %p47 = scmp.ge.s32.totalorder %s46, 1
      %s48 = scalar_select %p47, 0, %s46
      %s49 = ssub.s32 %s36, %s48
      %p50 = scmp.eq.s32.totalorder %s49, 0
      %s52 = sadd.s32 %s51, 1
      %s53 = scalar_select %p50, %s51, %s52
      %p56 = pneg %p50
      %p57 = scmp.eq.s32.totalorder %s29, 1
      %p58 = por %p56, %p57
      %p59 = scmp.ne.s32.totalorder %s51, %s54
      %p60 = scmp.eq.s32.totalorder %s29, 0
      %p61 = por %p59, %p60
      %p62 = scmp.ne.s32.totalorder %s51, %s54
      %p63 = scmp.eq.s32.totalorder %s34, 1
      %p64 = por %p62, %p63
      %p65 = scmp.ne.s32.totalorder %s54, %s55
      %p66 = scmp.eq.s32.totalorder %s34, 0
      %p67 = por %p65, %p66
      %p68 = scmp.ne.s32.totalorder %s54, %s55
      %p69 = scmp.eq.s32.totalorder %s35, 1
      %p70 = por %p68, %p69
      %p72 = scmp.ne.s32.totalorder %s55, %s71
      %p73 = scmp.eq.s32.totalorder %s35, 0
      %p74 = por %p72, %p73
      %s75 = ssub.s32 %s36, %s48
      %p76 = scmp.eq.s32.totalorder %s75, 0
      %s78 = sadd.s32 %s77, 1
      %s79 = scalar_select %p76, %s77, %s78
      %p82 = pneg %p76
      %p83 = scmp.eq.s32.totalorder %s29, 1
      %p84 = por %p82, %p83
      %p85 = scmp.ne.s32.totalorder %s77, %s80
      %p86 = scmp.eq.s32.totalorder %s29, 0
      %p87 = por %p85, %p86
      %p88 = scmp.ne.s32.totalorder %s77, %s80
      %p89 = scmp.eq.s32.totalorder %s34, 1
      %p90 = por %p88, %p89
      %p91 = scmp.ne.s32.totalorder %s80, %s81
      %p92 = scmp.eq.s32.totalorder %s34, 0
      %p93 = por %p91, %p92
      %p94 = scmp.ne.s32.totalorder %s80, %s81
      %p95 = scmp.eq.s32.totalorder %s35, 1
      %p96 = por %p94, %p95
      %p98 = scmp.ne.s32.totalorder %s81, %s97
      %p99 = scmp.eq.s32.totalorder %s35, 0
      %p100 = por %p98, %p99
      %s101 = ssub.s32 %s37, %s44
      %p102 = scmp.eq.s32.totalorder %s101, 0
      %s104 = sadd.s32 %s103, 1
      %s105 = scalar_select %p102, %s103, %s104
      %p108 = pneg %p102
      %p109 = scmp.eq.s32.totalorder %s29, 1
      %p110 = por %p108, %p109
      %p111 = scmp.ne.s32.totalorder %s103, %s106
      %p112 = scmp.eq.s32.totalorder %s29, 0
      %p113 = por %p111, %p112
      %p114 = scmp.ne.s32.totalorder %s103, %s106
      %p115 = scmp.eq.s32.totalorder %s34, 1
      %p116 = por %p114, %p115
      %p117 = scmp.ne.s32.totalorder %s106, %s107
      %p118 = scmp.eq.s32.totalorder %s34, 0
      %p119 = por %p117, %p118
      %p120 = scmp.ne.s32.totalorder %s106, %s107
      %p121 = scmp.eq.s32.totalorder %s35, 1
      %p122 = por %p120, %p121
      %p124 = scmp.ne.s32.totalorder %s107, %s123
      %p125 = scmp.eq.s32.totalorder %s35, 0
      %p126 = por %p124, %p125
      %s127 = ssub.s32 %s37, %s44
      %p128 = scmp.eq.s32.totalorder %s127, 0
      %s130 = sadd.s32 %s129, 1
      %s131 = scalar_select %p128, %s129, %s130
      %p134 = pneg %p128
      %p135 = scmp.eq.s32.totalorder %s29, 1
      %p136 = por %p134, %p135
      %p137 = scmp.ne.s32.totalorder %s129, %s132
      %p138 = scmp.eq.s32.totalorder %s29, 0
      %p139 = por %p137, %p138
      %p140 = scmp.ne.s32.totalorder %s129, %s132
      %p141 = scmp.eq.s32.totalorder %s34, 1
      %p142 = por %p140, %p141
      %p143 = scmp.ne.s32.totalorder %s132, %s133
      %p144 = scmp.eq.s32.totalorder %s34, 0
      %p145 = por %p143, %p144
      %p146 = scmp.ne.s32.totalorder %s132, %s133
      %p147 = scmp.eq.s32.totalorder %s35, 1
      %p148 = por %p146, %p147
      %p150 = scmp.ne.s32.totalorder %s133, %s149
      %p151 = scmp.eq.s32.totalorder %s35, 0
      %p152 = por %p150, %p151
      %s153 = ssub.s32 %s37, %s44
      %p154 = scmp.eq.s32.totalorder %s153, 0
      %s156 = sadd.s32 %s155, 1
      %s157 = scalar_select %p154, %s155, %s156
      %p160 = pneg %p154
      %p161 = scmp.eq.s32.totalorder %s29, 1
      %p162 = por %p160, %p161
      %p163 = scmp.ne.s32.totalorder %s155, %s158
      %p164 = scmp.eq.s32.totalorder %s29, 0
      %p165 = por %p163, %p164
      %p166 = scmp.ne.s32.totalorder %s155, %s158
      %p167 = scmp.eq.s32.totalorder %s34, 1
      %p168 = por %p166, %p167
      %p169 = scmp.ne.s32.totalorder %s158, %s159
      %p170 = scmp.eq.s32.totalorder %s34, 0
      %p171 = por %p169, %p170
      %p172 = scmp.ne.s32.totalorder %s158, %s159
      %p173 = scmp.eq.s32.totalorder %s35, 1
      %p174 = por %p172, %p173
      %p176 = scmp.ne.s32.totalorder %s159, %s175
      %p177 = scmp.eq.s32.totalorder %s35, 0
      %p178 = por %p176, %p177
      %s179 = ssub.s32 %s37, %s44
      %p180 = scmp.eq.s32.totalorder %s179, 0
      %s182 = sadd.s32 %s181, 1
      %s183 = scalar_select %p180, %s181, %s182
      %p186 = pneg %p180
      %p187 = scmp.eq.s32.totalorder %s29, 1
      %p188 = por %p186, %p187
      %p189 = scmp.ne.s32.totalorder %s181, %s184
      %p190 = scmp.eq.s32.totalorder %s29, 0
      %p191 = por %p189, %p190
      %p192 = scmp.ne.s32.totalorder %s181, %s184
      %p193 = scmp.eq.s32.totalorder %s34, 1
      %p194 = por %p192, %p193
      %p195 = scmp.ne.s32.totalorder %s184, %s185
      %p196 = scmp.eq.s32.totalorder %s34, 0
      %p197 = por %p195, %p196
      %p198 = scmp.ne.s32.totalorder %s184, %s185
      %p199 = scmp.eq.s32.totalorder %s35, 1
      %p200 = por %p198, %p199
      %p202 = scmp.ne.s32.totalorder %s185, %s201
      %p203 = scmp.eq.s32.totalorder %s35, 0
      %p204 = por %p202, %p203
      %s205 = ssub.s32 %s37, %s44
      %p206 = scmp.eq.s32.totalorder %s205, 0
      %s208 = sadd.s32 %s207, 1
      %s209 = scalar_select %p206, %s207, %s208
      %p212 = pneg %p206
      %p213 = scmp.eq.s32.totalorder %s29, 1
      %p214 = por %p212, %p213
      %p215 = scmp.ne.s32.totalorder %s207, %s210
      %p216 = scmp.eq.s32.totalorder %s29, 0
      %p217 = por %p215, %p216
      %p218 = scmp.ne.s32.totalorder %s207, %s210
      %p219 = scmp.eq.s32.totalorder %s34, 1
      %p220 = por %p218, %p219
      %p221 = scmp.ne.s32.totalorder %s210, %s211
      %p222 = scmp.eq.s32.totalorder %s34, 0
      %p223 = por %p221, %p222
      %p224 = scmp.ne.s32.totalorder %s210, %s211
      %p225 = scmp.eq.s32.totalorder %s35, 1
      %p226 = por %p224, %p225
      %p228 = scmp.ne.s32.totalorder %s211, %s227
      %p229 = scmp.eq.s32.totalorder %s35, 0
      %p230 = por %p228, %p229
      %s231 = ssub.s32 %s37, %s44
      %p232 = scmp.eq.s32.totalorder %s231, 0
      %s234 = sadd.s32 %s233, 1
      %s235 = scalar_select %p232, %s233, %s234
      %p238 = pneg %p232
      %p239 = scmp.eq.s32.totalorder %s29, 1
      %p240 = por %p238, %p239
      %p241 = scmp.ne.s32.totalorder %s233, %s236
      %p242 = scmp.eq.s32.totalorder %s29, 0
      %p243 = por %p241, %p242
      %p244 = scmp.ne.s32.totalorder %s233, %s236
      %p245 = scmp.eq.s32.totalorder %s34, 1
      %p246 = por %p244, %p245
      %p247 = scmp.ne.s32.totalorder %s236, %s237
      %p248 = scmp.eq.s32.totalorder %s34, 0
      %p249 = por %p247, %p248
      %p250 = scmp.ne.s32.totalorder %s236, %s237
      %p251 = scmp.eq.s32.totalorder %s35, 1
      %p252 = por %p250, %p251
      %p254 = scmp.ne.s32.totalorder %s237, %s253
      %p255 = scmp.eq.s32.totalorder %s35, 0
      %p256 = por %p254, %p255
      %s257 = ssub.s32 %s37, %s44
      %p258 = scmp.eq.s32.totalorder %s257, 0
      %s260 = sadd.s32 %s259, 1
      %s261 = scalar_select %p258, %s259, %s260
      %p264 = pneg %p258
      %p265 = scmp.eq.s32.totalorder %s29, 1
      %p266 = por %p264, %p265
      %p267 = scmp.ne.s32.totalorder %s259, %s262
      %p268 = scmp.eq.s32.totalorder %s29, 0
      %p269 = por %p267, %p268
      %p270 = scmp.ne.s32.totalorder %s259, %s262
      %p271 = scmp.eq.s32.totalorder %s34, 1
      %p272 = por %p270, %p271
      %p273 = scmp.ne.s32.totalorder %s262, %s263
      %p274 = scmp.eq.s32.totalorder %s34, 0
      %p275 = por %p273, %p274
      %p276 = scmp.ne.s32.totalorder %s262, %s263
      %p277 = scmp.eq.s32.totalorder %s35, 1
      %p278 = por %p276, %p277
      %p280 = scmp.ne.s32.totalorder %s263, %s279
      %p281 = scmp.eq.s32.totalorder %s35, 0
      %p282 = por %p280, %p281
      %s283 = ssub.s32 %s37, %s44
      %p284 = scmp.eq.s32.totalorder %s283, 0
      %s286 = sadd.s32 %s285, 1
      %s287 = scalar_select %p284, %s285, %s286
      %p290 = pneg %p284
      %p291 = scmp.eq.s32.totalorder %s29, 1
      %p292 = por %p290, %p291
      %p293 = scmp.ne.s32.totalorder %s285, %s288
      %p294 = scmp.eq.s32.totalorder %s29, 0
      %p295 = por %p293, %p294
      %p296 = scmp.ne.s32.totalorder %s285, %s288
      %p297 = scmp.eq.s32.totalorder %s34, 1
      %p298 = por %p296, %p297
      %p299 = scmp.ne.s32.totalorder %s288, %s289
      %p300 = scmp.eq.s32.totalorder %s34, 0
      %p301 = por %p299, %p300
      %p302 = scmp.ne.s32.totalorder %s288, %s289
      %p303 = scmp.eq.s32.totalorder %s35, 1
      %p304 = por %p302, %p303
      %p306 = scmp.ne.s32.totalorder %s289, %s305
      %p307 = scmp.eq.s32.totalorder %s35, 0
      %p308 = por %p306, %p307
      %s309 = ssub.s32 %s37, %s44
      %p310 = scmp.eq.s32.totalorder %s309, 0
      %s312 = sadd.s32 %s311, 1
      %s313 = scalar_select %p310, %s311, %s312
      %p316 = pneg %p310
      %p317 = scmp.eq.s32.totalorder %s29, 1
      %p318 = por %p316, %p317
      %p319 = scmp.ne.s32.totalorder %s311, %s314
      %p320 = scmp.eq.s32.totalorder %s29, 0
      %p321 = por %p319, %p320
      %p322 = scmp.ne.s32.totalorder %s311, %s314
      %p323 = scmp.eq.s32.totalorder %s34, 1
      %p324 = por %p322, %p323
      %p325 = scmp.ne.s32.totalorder %s314, %s315
      %p326 = scmp.eq.s32.totalorder %s34, 0
      %p327 = por %p325, %p326
      %p328 = scmp.ne.s32.totalorder %s314, %s315
      %p329 = scmp.eq.s32.totalorder %s35, 1
      %p330 = por %p328, %p329
      %p332 = scmp.ne.s32.totalorder %s315, %s331
      %p333 = scmp.eq.s32.totalorder %s35, 0
      %p334 = por %p332, %p333
      %s335 = ssub.s32 %s37, %s44
      %p336 = scmp.eq.s32.totalorder %s335, 0
      %s338 = sadd.s32 %s337, 1
      %s339 = scalar_select %p336, %s337, %s338
      %p342 = pneg %p336
      %p343 = scmp.eq.s32.totalorder %s29, 1
      %p344 = por %p342, %p343
      %p345 = scmp.ne.s32.totalorder %s337, %s340
      %p346 = scmp.eq.s32.totalorder %s29, 0
      %p347 = por %p345, %p346
      %p348 = scmp.ne.s32.totalorder %s337, %s340
      %p349 = scmp.eq.s32.totalorder %s34, 1
      %p350 = por %p348, %p349
      %p351 = scmp.ne.s32.totalorder %s340, %s341
      %p352 = scmp.eq.s32.totalorder %s34, 0
      %p353 = por %p351, %p352
      %p354 = scmp.ne.s32.totalorder %s340, %s341
      %p355 = scmp.eq.s32.totalorder %s35, 1
      %p356 = por %p354, %p355
      %p358 = scmp.ne.s32.totalorder %s341, %s357
      %p359 = scmp.eq.s32.totalorder %s35, 0
      %p360 = por %p358, %p359
      %s361 = ssub.s32 %s37, %s44
      %p362 = scmp.eq.s32.totalorder %s361, 0
      %s364 = sadd.s32 %s363, 1
      %s365 = scalar_select %p362, %s363, %s364
      %p368 = pneg %p362
      %p369 = scmp.eq.s32.totalorder %s29, 1
      %p370 = por %p368, %p369
      %p371 = scmp.ne.s32.totalorder %s363, %s366
      %p372 = scmp.eq.s32.totalorder %s29, 0
      %p373 = por %p371, %p372
      %p374 = scmp.ne.s32.totalorder %s363, %s366
      %p375 = scmp.eq.s32.totalorder %s34, 1
      %p376 = por %p374, %p375
      %p377 = scmp.ne.s32.totalorder %s366, %s367
      %p378 = scmp.eq.s32.totalorder %s34, 0
      %p379 = por %p377, %p378
      %p380 = scmp.ne.s32.totalorder %s366, %s367
      %p381 = scmp.eq.s32.totalorder %s35, 1
      %p382 = por %p380, %p381
      %p384 = scmp.ne.s32.totalorder %s367, %s383
      %p385 = scmp.eq.s32.totalorder %s35, 0
      %p386 = por %p384, %p385
      %s387 = ssub.s32 %s37, %s44
      %p388 = scmp.eq.s32.totalorder %s387, 0
      %s390 = sadd.s32 %s389, 1
      %s391 = scalar_select %p388, %s389, %s390
      %p394 = pneg %p388
      %p395 = scmp.eq.s32.totalorder %s29, 1
      %p396 = por %p394, %p395
      %p397 = scmp.ne.s32.totalorder %s389, %s392
      %p398 = scmp.eq.s32.totalorder %s29, 0
      %p399 = por %p397, %p398
      %p400 = scmp.ne.s32.totalorder %s389, %s392
      %p401 = scmp.eq.s32.totalorder %s34, 1
      %p402 = por %p400, %p401
      %p403 = scmp.ne.s32.totalorder %s392, %s393
      %p404 = scmp.eq.s32.totalorder %s34, 0
      %p405 = por %p403, %p404
      %p406 = scmp.ne.s32.totalorder %s392, %s393
      %p407 = scmp.eq.s32.totalorder %s35, 1
      %p408 = por %p406, %p407
      %p410 = scmp.ne.s32.totalorder %s393, %s409
      %p411 = scmp.eq.s32.totalorder %s35, 0
      %p412 = por %p410, %p411
      %s413 = ssub.s32 %s37, %s44
      %p414 = scmp.eq.s32.totalorder %s413, 0
      %s416 = sadd.s32 %s415, 1
      %s417 = scalar_select %p414, %s415, %s416
      %p420 = pneg %p414
      %p421 = scmp.eq.s32.totalorder %s29, 1
      %p422 = por %p420, %p421
      %p423 = scmp.ne.s32.totalorder %s415, %s418
      %p424 = scmp.eq.s32.totalorder %s29, 0
      %p425 = por %p423, %p424
      %p426 = scmp.ne.s32.totalorder %s415, %s418
      %p427 = scmp.eq.s32.totalorder %s34, 1
      %p428 = por %p426, %p427
      %p429 = scmp.ne.s32.totalorder %s418, %s419
      %p430 = scmp.eq.s32.totalorder %s34, 0
      %p431 = por %p429, %p430
      %p432 = scmp.ne.s32.totalorder %s418, %s419
      %p433 = scmp.eq.s32.totalorder %s35, 1
      %p434 = por %p432, %p433
      %p436 = scmp.ne.s32.totalorder %s419, %s435
      %p437 = scmp.eq.s32.totalorder %s35, 0
      %p438 = por %p436, %p437
      %s439 = ssub.s32 %s37, %s44
      %p440 = scmp.eq.s32.totalorder %s439, 0
      %s442 = sadd.s32 %s441, 1
      %s443 = scalar_select %p440, %s441, %s442
      %p446 = pneg %p440
      %p447 = scmp.eq.s32.totalorder %s29, 1
      %p448 = por %p446, %p447
      %p449 = scmp.ne.s32.totalorder %s441, %s444
      %p450 = scmp.eq.s32.totalorder %s29, 0
      %p451 = por %p449, %p450
      %p452 = scmp.ne.s32.totalorder %s441, %s444
      %p453 = scmp.eq.s32.totalorder %s34, 1
      %p454 = por %p452, %p453
      %p455 = scmp.ne.s32.totalorder %s444, %s445
      %p456 = scmp.eq.s32.totalorder %s34, 0
      %p457 = por %p455, %p456
      %p458 = scmp.ne.s32.totalorder %s444, %s445
      %p459 = scmp.eq.s32.totalorder %s35, 1
      %p460 = por %p458, %p459
      %p462 = scmp.ne.s32.totalorder %s445, %s461
      %p463 = scmp.eq.s32.totalorder %s35, 0
      %p464 = por %p462, %p463
      %s465 = ssub.s32 %s37, %s44
      %p466 = scmp.eq.s32.totalorder %s465, 0
      %s468 = sadd.s32 %s467, 1
      %s469 = scalar_select %p466, %s467, %s468
      %p472 = pneg %p466
      %p473 = scmp.eq.s32.totalorder %s29, 1
      %p474 = por %p472, %p473
      %p475 = scmp.ne.s32.totalorder %s467, %s470
      %p476 = scmp.eq.s32.totalorder %s29, 0
      %p477 = por %p475, %p476
      %p478 = scmp.ne.s32.totalorder %s467, %s470
      %p479 = scmp.eq.s32.totalorder %s34, 1
      %p480 = por %p478, %p479
      %p481 = scmp.ne.s32.totalorder %s470, %s471
      %p482 = scmp.eq.s32.totalorder %s34, 0
      %p483 = por %p481, %p482
      %p484 = scmp.ne.s32.totalorder %s470, %s471
      %p485 = scmp.eq.s32.totalorder %s35, 1
      %p486 = por %p484, %p485
      %p488 = scmp.ne.s32.totalorder %s471, %s487
      %p489 = scmp.eq.s32.totalorder %s35, 0
      %p490 = por %p488, %p489
      %s491 = ssub.s32 %s37, %s44
      %p492 = scmp.eq.s32.totalorder %s491, 0
      %s494 = sadd.s32 %s493, 1
      %s495 = scalar_select %p492, %s493, %s494
      %p498 = pneg %p492
      %p499 = scmp.eq.s32.totalorder %s29, 1
      %p500 = por %p498, %p499
      %p501 = scmp.ne.s32.totalorder %s493, %s496
      %p502 = scmp.eq.s32.totalorder %s29, 0
      %p503 = por %p501, %p502
      %p504 = scmp.ne.s32.totalorder %s493, %s496
      %p505 = scmp.eq.s32.totalorder %s34, 1
      %p506 = por %p504, %p505
      %p507 = scmp.ne.s32.totalorder %s496, %s497
      %p508 = scmp.eq.s32.totalorder %s34, 0
      %p509 = por %p507, %p508
      %p510 = scmp.ne.s32.totalorder %s496, %s497
      %p511 = scmp.eq.s32.totalorder %s35, 1
      %p512 = por %p510, %p511
      %p514 = scmp.ne.s32.totalorder %s497, %s513
      %p515 = scmp.eq.s32.totalorder %s35, 0
      %p516 = por %p514, %p515
      %s518 = sadd.s32 %s517, 1
      %p521 = scmp.eq.s32.totalorder %s29, 1
      %p522 = scmp.ne.s32.totalorder %s517, %s519
      %p523 = scmp.eq.s32.totalorder %s29, 0
      %p524 = por %p522, %p523
      %p525 = scmp.ne.s32.totalorder %s517, %s519
      %p526 = scmp.eq.s32.totalorder %s34, 1
      %p527 = por %p525, %p526
      %p528 = scmp.ne.s32.totalorder %s519, %s520
      %p529 = scmp.eq.s32.totalorder %s34, 0
      %p530 = por %p528, %p529
      %p531 = scmp.ne.s32.totalorder %s519, %s520
      %p532 = scmp.eq.s32.totalorder %s35, 1
      %p533 = por %p531, %p532
      %p535 = scmp.ne.s32.totalorder %s520, %s534
      %p536 = scmp.eq.s32.totalorder %s35, 0
      %p537 = por %p535, %p536
      %s539 = sadd.s32 %s538, 1
      %p542 = scmp.eq.s32.totalorder %s29, 1
      %p543 = scmp.ne.s32.totalorder %s538, %s540
      %p544 = scmp.eq.s32.totalorder %s29, 0
      %p545 = por %p543, %p544
      %p546 = scmp.ne.s32.totalorder %s538, %s540
      %p547 = scmp.eq.s32.totalorder %s34, 1
      %p548 = por %p546, %p547
      %p549 = scmp.ne.s32.totalorder %s540, %s541
      %p550 = scmp.eq.s32.totalorder %s34, 0
      %p551 = por %p549, %p550
      %p552 = scmp.ne.s32.totalorder %s540, %s541
      %p553 = scmp.eq.s32.totalorder %s35, 1
      %p554 = por %p552, %p553
      %p556 = scmp.ne.s32.totalorder %s541, %s555
      %p557 = scmp.eq.s32.totalorder %s35, 0
      %p558 = por %p556, %p557
      %s560 = sadd.s32 %s559, 1
      %p563 = scmp.eq.s32.totalorder %s29, 1
      %p564 = scmp.ne.s32.totalorder %s559, %s561
      %p565 = scmp.eq.s32.totalorder %s29, 0
      %p566 = por %p564, %p565
      %p567 = scmp.ne.s32.totalorder %s559, %s561
      %p568 = scmp.eq.s32.totalorder %s34, 1
      %p569 = por %p567, %p568
      %p570 = scmp.ne.s32.totalorder %s561, %s562
      %p571 = scmp.eq.s32.totalorder %s34, 0
      %p572 = por %p570, %p571
      %p573 = scmp.ne.s32.totalorder %s561, %s562
      %p574 = scmp.eq.s32.totalorder %s35, 1
      %p575 = por %p573, %p574
      %p577 = scmp.ne.s32.totalorder %s562, %s576
      %p578 = scmp.eq.s32.totalorder %s35, 0
      %p579 = por %p577, %p578
      %s581 = sadd.s32 %s580, 1
      %p584 = scmp.eq.s32.totalorder %s29, 1
      %p585 = scmp.ne.s32.totalorder %s580, %s582
      %p586 = scmp.eq.s32.totalorder %s29, 0
      %p587 = por %p585, %p586
      %p588 = scmp.ne.s32.totalorder %s580, %s582
      %p589 = scmp.eq.s32.totalorder %s34, 1
      %p590 = por %p588, %p589
      %p591 = scmp.ne.s32.totalorder %s582, %s583
      %p592 = scmp.eq.s32.totalorder %s34, 0
      %p593 = por %p591, %p592
      %p594 = scmp.ne.s32.totalorder %s582, %s583
      %p595 = scmp.eq.s32.totalorder %s35, 1
      %p596 = por %p594, %p595
      %p598 = scmp.ne.s32.totalorder %s583, %s597
      %p599 = scmp.eq.s32.totalorder %s35, 0
      %p600 = por %p598, %p599
      %s601 = ssub.s32 %s36, %s48
      %p602 = scmp.eq.s32.totalorder %s601, 0
      %s604 = sadd.s32 %s603, 1
      %s605 = scalar_select %p602, %s603, %s604
      %p608 = pneg %p602
      %p609 = scmp.eq.s32.totalorder %s29, 1
      %p610 = por %p608, %p609
      %p611 = scmp.ne.s32.totalorder %s603, %s606
      %p612 = scmp.eq.s32.totalorder %s29, 0
      %p613 = por %p611, %p612
      %p614 = scmp.ne.s32.totalorder %s603, %s606
      %p615 = scmp.eq.s32.totalorder %s34, 1
      %p616 = por %p614, %p615
      %p617 = scmp.ne.s32.totalorder %s606, %s607
      %p618 = scmp.eq.s32.totalorder %s34, 0
      %p619 = por %p617, %p618
      %p620 = scmp.ne.s32.totalorder %s606, %s607
      %p621 = scmp.eq.s32.totalorder %s35, 1
      %p622 = por %p620, %p621
      %p624 = scmp.ne.s32.totalorder %s607, %s623
      %p625 = scmp.eq.s32.totalorder %s35, 0
      %p626 = por %p624, %p625
      %p627 = scmp.le.s32.totalorder 1, %s29
      %p628 = scmp.lt.s32.totalorder %s29, 3
      %p629 = pnand %p627, %p628
      %p630 = pneg %p629
      // Predicated region
      $region9: #{_lambda_.1} parent=5 // pred_check
        _
      $region10: #{_lambda_.1} parent=5 // pred_check_branch
        %632 = sbr.rel (%p629) target = $region12
      $region11: #{_lambda_.1} parent=5 // pred_region
        %s633 = ssub.s32 %s29, 1
        // Predicated region
        $region13: #{_lambda_.1} parent=11 // pred_check
          %p634 = pneg %p67
        $region14: #{_lambda_.1} parent=11 // pred_check_branch
          %636 = sbr.rel (%p634) target = $region16
        $region15: #{_lambda_.1} parent=11 // pred_region
          %p637 = scmp.lt.s32.totalorder %s38, 0
          %s638 = scalar_select %p637, %s38, 0
          %s639 = smul.addr %s638, 8
          %s640 = smul.addr %s639, 8
          %s641 = scalar_lea.vmem %s0, %s640
        $region16: #{_lambda_.1} parent=11 // pred_fallthru
          _
        // Predicated region
        $region17: #{_lambda_.1} parent=11 // pred_check
          %p642 = pneg %p93
        $region18: #{_lambda_.1} parent=11 // pred_check_branch
          %644 = sbr.rel (%p642) target = $region20
        $region19: #{_lambda_.1} parent=11 // pred_region
          %p645 = scmp.lt.s32.totalorder %s38, 0
          %s646 = scalar_select %p645, %s38, 0
          %s647 = smul.addr %s646, 8
          %s648 = scalar_lea.vmem %s1, %s647
        $region20: #{_lambda_.1} parent=11 // pred_fallthru
          _
        // Predicated region
        $region21: #{_lambda_.1} parent=11 // pred_check
          %p649 = pneg %p530
        $region22: #{_lambda_.1} parent=11 // pred_check_branch
          %651 = sbr.rel (%p649) target = $region24
        $region23: #{_lambda_.1} parent=11 // pred_region
          _
        $region24: #{_lambda_.1} parent=11 // pred_fallthru
          _
        // Predicated region
        $region25: #{_lambda_.1} parent=11 // pred_check
          %p652 = pneg %p551
        $region26: #{_lambda_.1} parent=11 // pred_check_branch
          %654 = sbr.rel (%p652) target = $region28
        $region27: #{_lambda_.1} parent=11 // pred_region
          _
        $region28: #{_lambda_.1} parent=11 // pred_fallthru
          _
        // Predicated region
        $region29: #{_lambda_.1} parent=11 // pred_check
          %p655 = pneg %p572
        $region30: #{_lambda_.1} parent=11 // pred_check_branch
          %657 = sbr.rel (%p655) target = $region32
        $region31: #{_lambda_.1} parent=11 // pred_region
          _
        $region32: #{_lambda_.1} parent=11 // pred_fallthru
          _
        // Predicated region
        $region33: #{_lambda_.1} parent=11 // pred_check
          %p658 = pneg %p593
        $region34: #{_lambda_.1} parent=11 // pred_check_branch
          %660 = sbr.rel (%p658) target = $region36
        $region35: #{_lambda_.1} parent=11 // pred_region
          _
        $region36: #{_lambda_.1} parent=11 // pred_fallthru
          _
      $region12: #{_lambda_.1} parent=5 // pred_fallthru
        _
      %p661 = scmp.lt.s32.totalorder %s29, 2
      // Predicated region
      $region37: #{_lambda_.1} parent=5 // pred_check
        %p662 = pneg %p661
      $region38: #{_lambda_.1} parent=5 // pred_check_branch
        %664 = sbr.rel (%p662) target = $region40
      $region39: #{_lambda_.1} parent=5 // pred_region
        // Predicated region
        $region41: #{_lambda_.1} parent=39 // pred_check
          %p665 = pneg %p113
        $region42: #{_lambda_.1} parent=39 // pred_check_branch
          %667 = sbr.rel (%p665) target = $region44
        $region43: #{_lambda_.1} parent=39 // pred_region
          %p668 = scmp.lt.s32.totalorder %s37, 1
          %s669 = scalar_select %p668, %s37, 1
          %s670 = scalar_lea.vmem %s2, %s669
        $region44: #{_lambda_.1} parent=39 // pred_fallthru
          _
        // Predicated region
        $region45: #{_lambda_.1} parent=39 // pred_check
          %p671 = pneg %p139
        $region46: #{_lambda_.1} parent=39 // pred_check_branch
          %673 = sbr.rel (%p671) target = $region48
        $region47: #{_lambda_.1} parent=39 // pred_region
          %p674 = scmp.lt.s32.totalorder %s37, 1
          %s675 = scalar_select %p674, %s37, 1
          %s676 = scalar_lea.vmem %s3, %s675
        $region48: #{_lambda_.1} parent=39 // pred_fallthru
          _
        // Predicated region
        $region49: #{_lambda_.1} parent=39 // pred_check
          %p677 = pneg %p165
        $region50: #{_lambda_.1} parent=39 // pred_check_branch
          %679 = sbr.rel (%p677) target = $region52
        $region51: #{_lambda_.1} parent=39 // pred_region
          %p680 = scmp.lt.s32.totalorder %s37, 1
          %s681 = scalar_select %p680, %s37, 1
          %s682 = smul.addr %s681, 6
          %s683 = smul.addr %s682, 4
          %s684 = scalar_lea.vmem %s4, %s683
        $region52: #{_lambda_.1} parent=39 // pred_fallthru
          _
        // Predicated region
        $region53: #{_lambda_.1} parent=39 // pred_check
          %p685 = pneg %p191
        $region54: #{_lambda_.1} parent=39 // pred_check_branch
          %687 = sbr.rel (%p685) target = $region56
        $region55: #{_lambda_.1} parent=39 // pred_region
          %p688 = scmp.lt.s32.totalorder %s37, 1
          %s689 = scalar_select %p688, %s37, 1
          %s690 = scalar_lea.vmem %s5, %s689
        $region56: #{_lambda_.1} parent=39 // pred_fallthru
          _
        // Predicated region
        $region57: #{_lambda_.1} parent=39 // pred_check
          %p691 = pneg %p217
        $region58: #{_lambda_.1} parent=39 // pred_check_branch
          %693 = sbr.rel (%p691) target = $region60
        $region59: #{_lambda_.1} parent=39 // pred_region
          %p694 = scmp.lt.s32.totalorder %s37, 1
          %s695 = scalar_select %p694, %s37, 1
          %s696 = smul.addr %s695, 6
          %s697 = smul.addr %s696, 4
          %s698 = scalar_lea.vmem %s6, %s697
        $region60: #{_lambda_.1} parent=39 // pred_fallthru
          _
        // Predicated region
        $region61: #{_lambda_.1} parent=39 // pred_check
          %p699 = pneg %p243
        $region62: #{_lambda_.1} parent=39 // pred_check_branch
          %701 = sbr.rel (%p699) target = $region64
        $region63: #{_lambda_.1} parent=39 // pred_region
          %p702 = scmp.lt.s32.totalorder %s37, 1
          %s703 = scalar_select %p702, %s37, 1
          %s704 = scalar_lea.vmem %s7, %s703
        $region64: #{_lambda_.1} parent=39 // pred_fallthru
          _
        // Predicated region
        $region65: #{_lambda_.1} parent=39 // pred_check
          %p705 = pneg %p269
        $region66: #{_lambda_.1} parent=39 // pred_check_branch
          %707 = sbr.rel (%p705) target = $region68
        $region67: #{_lambda_.1} parent=39 // pred_region
          %p708 = scmp.lt.s32.totalorder %s37, 1
          %s709 = scalar_select %p708, %s37, 1
          %s710 = smul.addr %s709, 6
          %s711 = smul.addr %s710, 4
          %s712 = scalar_lea.vmem %s8, %s711
        $region68: #{_lambda_.1} parent=39 // pred_fallthru
          _
        // Predicated region
        $region69: #{_lambda_.1} parent=39 // pred_check
          %p713 = pneg %p295
        $region70: #{_lambda_.1} parent=39 // pred_check_branch
          %715 = sbr.rel (%p713) target = $region72
        $region71: #{_lambda_.1} parent=39 // pred_region
          %p716 = scmp.lt.s32.totalorder %s37, 1
          %s717 = scalar_select %p716, %s37, 1
          %s718 = scalar_lea.vmem %s9, %s717
        $region72: #{_lambda_.1} parent=39 // pred_fallthru
          _
        // Predicated region
        $region73: #{_lambda_.1} parent=39 // pred_check
          %p719 = pneg %p321
        $region74: #{_lambda_.1} parent=39 // pred_check_branch
          %721 = sbr.rel (%p719) target = $region76
        $region75: #{_lambda_.1} parent=39 // pred_region
          %p722 = scmp.lt.s32.totalorder %s37, 1
          %s723 = scalar_select %p722, %s37, 1
          %s724 = smul.addr %s723, 6
          %s725 = smul.addr %s724, 4
          %s726 = scalar_lea.vmem %s10, %s725
        $region76: #{_lambda_.1} parent=39 // pred_fallthru
          _
        // Predicated region
        $region77: #{_lambda_.1} parent=39 // pred_check
          %p727 = pneg %p347
        $region78: #{_lambda_.1} parent=39 // pred_check_branch
          %729 = sbr.rel (%p727) target = $region80
        $region79: #{_lambda_.1} parent=39 // pred_region
          %p730 = scmp.lt.s32.totalorder %s37, 1
          %s731 = scalar_select %p730, %s37, 1
          %s732 = scalar_lea.vmem %s11, %s731
        $region80: #{_lambda_.1} parent=39 // pred_fallthru
          _
        // Predicated region
        $region81: #{_lambda_.1} parent=39 // pred_check
          %p733 = pneg %p373
        $region82: #{_lambda_.1} parent=39 // pred_check_branch
          %735 = sbr.rel (%p733) target = $region84
        $region83: #{_lambda_.1} parent=39 // pred_region
          %p736 = scmp.lt.s32.totalorder %s37, 1
          %s737 = scalar_select %p736, %s37, 1
          %s738 = scalar_lea.vmem %s12, %s737
        $region84: #{_lambda_.1} parent=39 // pred_fallthru
          _
        // Predicated region
        $region85: #{_lambda_.1} parent=39 // pred_check
          %p739 = pneg %p399
        $region86: #{_lambda_.1} parent=39 // pred_check_branch
          %741 = sbr.rel (%p739) target = $region88
        $region87: #{_lambda_.1} parent=39 // pred_region
          %p742 = scmp.lt.s32.totalorder %s37, 1
          %s743 = scalar_select %p742, %s37, 1
          %s744 = scalar_lea.vmem %s13, %s743
        $region88: #{_lambda_.1} parent=39 // pred_fallthru
          _
        // Predicated region
        $region89: #{_lambda_.1} parent=39 // pred_check
          %p745 = pneg %p425
        $region90: #{_lambda_.1} parent=39 // pred_check_branch
          %747 = sbr.rel (%p745) target = $region92
        $region91: #{_lambda_.1} parent=39 // pred_region
          %p748 = scmp.lt.s32.totalorder %s37, 1
          %s749 = scalar_select %p748, %s37, 1
          %s750 = smul.addr %s749, 12
          %s751 = smul.addr %s750, 4
          %s752 = scalar_lea.vmem %s14, %s751
        $region92: #{_lambda_.1} parent=39 // pred_fallthru
          _
        // Predicated region
        $region93: #{_lambda_.1} parent=39 // pred_check
          %p753 = pneg %p451
        $region94: #{_lambda_.1} parent=39 // pred_check_branch
          %755 = sbr.rel (%p753) target = $region96
        $region95: #{_lambda_.1} parent=39 // pred_region
          %p756 = scmp.lt.s32.totalorder %s37, 1
          %s757 = scalar_select %p756, %s37, 1
          %s758 = smul.addr %s757, 2
          %s759 = scalar_lea.vmem %s15, %s758
        $region96: #{_lambda_.1} parent=39 // pred_fallthru
          _
        // Predicated region
        $region97: #{_lambda_.1} parent=39 // pred_check
          %p760 = pneg %p477
        $region98: #{_lambda_.1} parent=39 // pred_check_branch
          %762 = sbr.rel (%p760) target = $region100
        $region99: #{_lambda_.1} parent=39 // pred_region
          %p763 = scmp.lt.s32.totalorder %s37, 1
          %s764 = scalar_select %p763, %s37, 1
          %s765 = smul.addr %s764, 24
          %s766 = smul.addr %s765, 4
          %s767 = scalar_lea.vmem %s16, %s766
        $region100: #{_lambda_.1} parent=39 // pred_fallthru
          _
        // Predicated region
        $region101: #{_lambda_.1} parent=39 // pred_check
          %p768 = pneg %p503
        $region102: #{_lambda_.1} parent=39 // pred_check_branch
          %770 = sbr.rel (%p768) target = $region104
        $region103: #{_lambda_.1} parent=39 // pred_region
          %p771 = scmp.lt.s32.totalorder %s37, 1
          %s772 = scalar_select %p771, %s37, 1
          %s773 = scalar_lea.vmem %s17, %s772
        $region104: #{_lambda_.1} parent=39 // pred_fallthru
          _
      $region40: #{_lambda_.1} parent=5 // pred_fallthru
        _
      %p774 = scmp.le.s32.totalorder 1, %s29
      %p775 = scmp.lt.s32.totalorder %s29, 3
      %p776 = pnand %p774, %p775
      %p777 = pneg %p776
      // Predicated region
      $region105: #{_lambda_.1} parent=5 // pred_check
        _
      $region106: #{_lambda_.1} parent=5 // pred_check_branch
        %779 = sbr.rel (%p776) target = $region108
      $region107: #{_lambda_.1} parent=5 // pred_region
        %s780 = ssub.s32 %s29, 1
        %p781 = scmp.lt.s32.totalorder %s38, 0
        %s782 = scalar_select %p781, %s38, 0
        %s783 = smul.addr %s782, 8
        %s784 = smul.addr %s783, 8
        %s785 = scalar_lea.vmem %s0, %s784
        %p786 = pneg %p67
        %p787 = pneg %p64
        %p788 = scmp.lt.s32.totalorder %s38, 0
        %s789 = scalar_select %p788, %s38, 0
        %s790 = smul.addr %s789, 8
        %s791 = scalar_lea.vmem %s1, %s790
        %p792 = pneg %p93
        %p793 = pneg %p90
        %p794 = scmp.lt.s32.totalorder %s39, 1
        %s795 = scalar_select %p794, %s39, 1
        %s796 = scalar_lea.vmem %s2, %s795
        %p797 = pneg %p119
        %p798 = pneg %p116
        %p799 = scmp.lt.s32.totalorder %s39, 1
        %s800 = scalar_select %p799, %s39, 1
        %s801 = scalar_lea.vmem %s3, %s800
        %p802 = pneg %p145
        %p803 = pneg %p142
        %p804 = scmp.lt.s32.totalorder %s39, 1
        %s805 = scalar_select %p804, %s39, 1
        %s806 = smul.addr %s805, 6
        %s807 = smul.addr %s806, 4
        %s808 = scalar_lea.vmem %s4, %s807
        %p809 = pneg %p171
        %p810 = pneg %p168
        %p811 = scmp.lt.s32.totalorder %s39, 1
        %s812 = scalar_select %p811, %s39, 1
        %s813 = scalar_lea.vmem %s5, %s812
        %p814 = pneg %p197
        %p815 = pneg %p194
        %p816 = scmp.lt.s32.totalorder %s39, 1
        %s817 = scalar_select %p816, %s39, 1
        %s818 = smul.addr %s817, 6
        %s819 = smul.addr %s818, 4
        %s820 = scalar_lea.vmem %s6, %s819
        %p821 = pneg %p223
        %p822 = pneg %p220
        %p823 = scmp.lt.s32.totalorder %s39, 1
        %s824 = scalar_select %p823, %s39, 1
        %s825 = scalar_lea.vmem %s7, %s824
        %p826 = pneg %p249
        %p827 = pneg %p246
        %p828 = scmp.lt.s32.totalorder %s39, 1
        %s829 = scalar_select %p828, %s39, 1
        %s830 = smul.addr %s829, 6
        %s831 = smul.addr %s830, 4
        %s832 = scalar_lea.vmem %s8, %s831
        %p833 = pneg %p275
        %p834 = pneg %p272
        %p835 = scmp.lt.s32.totalorder %s39, 1
        %s836 = scalar_select %p835, %s39, 1
        %s837 = scalar_lea.vmem %s9, %s836
        %p838 = pneg %p301
        %p839 = pneg %p298
        %p840 = scmp.lt.s32.totalorder %s39, 1
        %s841 = scalar_select %p840, %s39, 1
        %s842 = smul.addr %s841, 6
        %s843 = smul.addr %s842, 4
        %s844 = scalar_lea.vmem %s10, %s843
        %p845 = pneg %p327
        %p846 = pneg %p324
        %p847 = scmp.lt.s32.totalorder %s39, 1
        %s848 = scalar_select %p847, %s39, 1
        %s849 = scalar_lea.vmem %s11, %s848
        %p850 = pneg %p353
        %p851 = pneg %p350
        %p852 = scmp.lt.s32.totalorder %s39, 1
        %s853 = scalar_select %p852, %s39, 1
        %s854 = scalar_lea.vmem %s12, %s853
        %p855 = pneg %p379
        %p856 = pneg %p376
        %p857 = scmp.lt.s32.totalorder %s39, 1
        %s858 = scalar_select %p857, %s39, 1
        %s859 = scalar_lea.vmem %s13, %s858
        %p860 = pneg %p405
        %p861 = pneg %p402
        %p862 = scmp.lt.s32.totalorder %s39, 1
        %s863 = scalar_select %p862, %s39, 1
        %s864 = smul.addr %s863, 12
        %s865 = smul.addr %s864, 4
        %s866 = scalar_lea.vmem %s14, %s865
        %p867 = pneg %p431
        %p868 = pneg %p428
        %p869 = scmp.lt.s32.totalorder %s39, 1
        %s870 = scalar_select %p869, %s39, 1
        %s871 = smul.addr %s870, 2
        %s872 = scalar_lea.vmem %s15, %s871
        %p873 = pneg %p457
        %p874 = pneg %p454
        %p875 = scmp.lt.s32.totalorder %s39, 1
        %s876 = scalar_select %p875, %s39, 1
        %s877 = smul.addr %s876, 24
        %s878 = smul.addr %s877, 4
        %s879 = scalar_lea.vmem %s16, %s878
        %p880 = pneg %p483
        %p881 = pneg %p480
        %p882 = scmp.lt.s32.totalorder %s39, 1
        %s883 = scalar_select %p882, %s39, 1
        %s884 = scalar_lea.vmem %s17, %s883
        %p885 = pneg %p509
        %p886 = pneg %p506
        %p887 = pneg %p530
        %p888 = pneg %p527
        %p889 = pneg %p551
        %p890 = pneg %p548
        %p891 = pneg %p572
        %p892 = pneg %p569
        %p893 = pneg %p593
        %p894 = pneg %p590
        %p895 = pneg %p619
        %p896 = pneg %p616
        %p897 = scmp.lt.s32.totalorder %s38, 0
        %s898 = scalar_select %p897, %s38, 0
        %s899 = smul.addr %s898, 8
        %s900 = smul.addr %s899, 8
        %s901 = scalar_lea.vmem %s0, %s900
        %p902 = scmp.lt.s32.totalorder %s38, 0
        %s903 = scalar_select %p902, %s38, 0
        %s904 = smul.addr %s903, 8
        %s905 = scalar_lea.vmem %s1, %s904
        %p906 = scmp.lt.s32.totalorder %s39, 1
        %s907 = scalar_select %p906, %s39, 1
        %s908 = scalar_lea.vmem %s2, %s907
        %p909 = scmp.lt.s32.totalorder %s39, 1
        %s910 = scalar_select %p909, %s39, 1
        %s911 = scalar_lea.vmem %s3, %s910
        %p912 = scmp.lt.s32.totalorder %s39, 1
        %s913 = scalar_select %p912, %s39, 1
        %s914 = smul.addr %s913, 6
        %s915 = smul.addr %s914, 4
        %s916 = scalar_lea.vmem %s4, %s915
        %p917 = scmp.lt.s32.totalorder %s39, 1
        %s918 = scalar_select %p917, %s39, 1
        %s919 = scalar_lea.vmem %s5, %s918
        %p920 = scmp.lt.s32.totalorder %s39, 1
        %s921 = scalar_select %p920, %s39, 1
        %s922 = smul.addr %s921, 6
        %s923 = smul.addr %s922, 4
        %s924 = scalar_lea.vmem %s6, %s923
        %p925 = scmp.lt.s32.totalorder %s39, 1
        %s926 = scalar_select %p925, %s39, 1
        %s927 = scalar_lea.vmem %s7, %s926
        %p928 = scmp.lt.s32.totalorder %s39, 1
        %s929 = scalar_select %p928, %s39, 1
        %s930 = smul.addr %s929, 6
        %s931 = smul.addr %s930, 4
        %s932 = scalar_lea.vmem %s8, %s931
        %p933 = scmp.lt.s32.totalorder %s39, 1
        %s934 = scalar_select %p933, %s39, 1
        %s935 = scalar_lea.vmem %s9, %s934
        %p936 = scmp.lt.s32.totalorder %s39, 1
        %s937 = scalar_select %p936, %s39, 1
        %s938 = smul.addr %s937, 6
        %s939 = smul.addr %s938, 4
        %s940 = scalar_lea.vmem %s10, %s939
        %p941 = scmp.lt.s32.totalorder %s39, 1
        %s942 = scalar_select %p941, %s39, 1
        %s943 = scalar_lea.vmem %s11, %s942
        %p944 = scmp.lt.s32.totalorder %s39, 1
        %s945 = scalar_select %p944, %s39, 1
        %s946 = scalar_lea.vmem %s12, %s945
        %p947 = scmp.lt.s32.totalorder %s39, 1
        %s948 = scalar_select %p947, %s39, 1
        %s949 = scalar_lea.vmem %s13, %s948
        %p950 = scmp.lt.s32.totalorder %s39, 1
        %s951 = scalar_select %p950, %s39, 1
        %s952 = smul.addr %s951, 12
        %s953 = smul.addr %s952, 4
        %s954 = scalar_lea.vmem %s14, %s953
        %p955 = scmp.lt.s32.totalorder %s39, 1
        %s956 = scalar_select %p955, %s39, 1
        %s957 = smul.addr %s956, 2
        %s958 = scalar_lea.vmem %s15, %s957
        %p959 = scmp.lt.s32.totalorder %s39, 1
        %s960 = scalar_select %p959, %s39, 1
        %s961 = smul.addr %s960, 24
        %s962 = smul.addr %s961, 4
        %s963 = scalar_lea.vmem %s16, %s962
        %p964 = scmp.lt.s32.totalorder %s39, 1
        %s965 = scalar_select %p964, %s39, 1
        %s966 = scalar_lea.vmem %s17, %s965
        %p968 = scmp.eq.s32.totalorder %s39, 0
        // Predicated region
        $region109: #{_lambda_.1} parent=107 // pred_check
          %p969 = pneg %p968
        $region110: #{_lambda_.1} parent=107 // pred_check_branch
          %971 = sbr.rel (%p969) target = $region112
        $region111: #{_lambda_.1} parent=107 // pred_region
          %v972 = vld [vmem:[%s901] sm:$0xff]
          %v973 = vld [vmem:[%s901 + $0x8] sm:$0xff]
          %v974 = vld [vmem:[%s901 + $0x10] sm:$0xff]
          %v975 = vld [vmem:[%s901 + $0x18] sm:$0xff]
          %v976 = vld [vmem:[%s901 + $0x20] sm:$0xff]
          %v977 = vld [vmem:[%s901 + $0x28] sm:$0xff]
          %v978 = vld [vmem:[%s901 + $0x30] sm:$0xff]
          %v979 = vld [vmem:[%s901 + $0x38] sm:$0xff]
          %vm980 = vcmask 392192
          %981 = vst.msk [vmem:[#allocation2] sm:$0xff] %vm980, %v972
          %982 = vst.msk [vmem:[#allocation2 + $0x8] sm:$0xff] %vm980, %v973
          %983 = vst.msk [vmem:[#allocation2 + $0x10] sm:$0xff] %vm980, %v974
          %984 = vst.msk [vmem:[#allocation2 + $0x18] sm:$0xff] %vm980, %v975
          %985 = vst.msk [vmem:[#allocation2 + $0x20] sm:$0xff] %vm980, %v976
          %986 = vst.msk [vmem:[#allocation2 + $0x28] sm:$0xff] %vm980, %v977
          %987 = vst.msk [vmem:[#allocation2 + $0x30] sm:$0xff] %vm980, %v978
          %988 = vst.msk [vmem:[#allocation2 + $0x38] sm:$0xff] %vm980, %v979
        $region112: #{_lambda_.1} parent=107 // pred_fallthru
          _
        %v989 = vld [vmem:[#allocation2] sm:$0xff]
        %v990 = vld [vmem:[#allocation2 + $0x8] sm:$0xff]
        %v991 = vld [vmem:[#allocation2 + $0x10] sm:$0xff]
        %v992 = vld [vmem:[#allocation2 + $0x18] sm:$0xff]
        %v993 = vld [vmem:[#allocation2 + $0x20] sm:$0xff]
        %v994 = vld [vmem:[#allocation2 + $0x28] sm:$0xff]
        %v995 = vld [vmem:[#allocation2 + $0x30] sm:$0xff]
        %v996 = vld [vmem:[#allocation2 + $0x38] sm:$0xff]
        %v997 = vld [vmem:[%s908] sm:$0x1]
        %v998 = vld [vmem:[%s911] sm:$0x1]
        %vm999 = vcmask 392192
        %v1000 = vsel %vm999, %v989, 0.0
        %1001 = vadd.xlane.f32.xlu0 %v1000
        %v1002 = vpop.xlane.xlu0 %1001
        %v1003 = vsel %vm999, %v990, 0.0
        %1004 = vadd.xlane.f32.xlu0 %v1003
        %v1005 = vpop.xlane.xlu0 %1004
        %v1006 = vsel %vm999, %v991, 0.0
        %1007 = vadd.xlane.f32.xlu0 %v1006
        %v1008 = vpop.xlane.xlu0 %1007
        %v1009 = vsel %vm999, %v992, 0.0
        %1010 = vadd.xlane.f32.xlu0 %v1009
        %v1011 = vpop.xlane.xlu0 %1010
        %v1012 = vsel %vm999, %v993, 0.0
        %1013 = vadd.xlane.f32.xlu0 %v1012
        %v1014 = vpop.xlane.xlu0 %1013
        %v1015 = vsel %vm999, %v994, 0.0
        %1016 = vadd.xlane.f32.xlu0 %v1015
        %v1017 = vpop.xlane.xlu0 %1016
        %v1018 = vsel %vm999, %v995, 0.0
        %1019 = vadd.xlane.f32.xlu0 %v1018
        %v1020 = vpop.xlane.xlu0 %1019
        %v1021 = vsel %vm999, %v996, 0.0
        %1022 = vadd.xlane.f32.xlu0 %v1021
        %v1023 = vpop.xlane.xlu0 %1022
        %v1024 = vrcp.pop 48.0
        %v1025 = vmul.f32 48.0, %v1024
        %v1026 = vsub.f32 1.0, %v1025
        %v1027 = vmul.f32 %v1024, %v1026
        %v1028 = vadd.f32 %v1024, %v1027
        %vm1029 = vweird.f32 %v1024
        %v1030 = vsel %vm1029, %v1024, %v1028
        %v1031 = vmul.f32 %v1002, %v1030
        %v1032 = vmul.f32 %v1005, %v1030
        %v1033 = vmul.f32 %v1008, %v1030
        %v1034 = vmul.f32 %v1011, %v1030
        %v1035 = vmul.f32 %v1014, %v1030
        %v1036 = vmul.f32 %v1017, %v1030
        %v1037 = vmul.f32 %v1020, %v1030
        %v1038 = vmul.f32 %v1023, %v1030
        %v1039 = vsub.f32 %v989, %v1031
        %v1040 = vsub.f32 %v990, %v1032
        %v1041 = vsub.f32 %v991, %v1033
        %v1042 = vsub.f32 %v992, %v1034
        %v1043 = vsub.f32 %v993, %v1035
        %v1044 = vsub.f32 %v994, %v1036
        %v1045 = vsub.f32 %v995, %v1037
        %v1046 = vsub.f32 %v996, %v1038
        %v1047 = vmul.f32 %v1039, %v1039
        %v1048 = vmul.f32 %v1040, %v1040
        %v1049 = vmul.f32 %v1041, %v1041
        %v1050 = vmul.f32 %v1042, %v1042
        %v1051 = vmul.f32 %v1043, %v1043
        %v1052 = vmul.f32 %v1044, %v1044
        %v1053 = vmul.f32 %v1045, %v1045
        %v1054 = vmul.f32 %v1046, %v1046
        %v1055 = vsel %vm999, %v1047, 0.0
        %1056 = vadd.xlane.f32.xlu0 %v1055
        %v1057 = vpop.xlane.xlu0 %1056
        %v1058 = vsel %vm999, %v1048, 0.0
        %1059 = vadd.xlane.f32.xlu0 %v1058
        %v1060 = vpop.xlane.xlu0 %1059
        %v1061 = vsel %vm999, %v1049, 0.0
        %1062 = vadd.xlane.f32.xlu0 %v1061
        %v1063 = vpop.xlane.xlu0 %1062
        %v1064 = vsel %vm999, %v1050, 0.0
        %1065 = vadd.xlane.f32.xlu0 %v1064
        %v1066 = vpop.xlane.xlu0 %1065
        %v1067 = vsel %vm999, %v1051, 0.0
        %1068 = vadd.xlane.f32.xlu0 %v1067
        %v1069 = vpop.xlane.xlu0 %1068
        %v1070 = vsel %vm999, %v1052, 0.0
        %1071 = vadd.xlane.f32.xlu0 %v1070
        %v1072 = vpop.xlane.xlu0 %1071
        %v1073 = vsel %vm999, %v1053, 0.0
        %1074 = vadd.xlane.f32.xlu0 %v1073
        %v1075 = vpop.xlane.xlu0 %1074
        %v1076 = vsel %vm999, %v1054, 0.0
        %1077 = vadd.xlane.f32.xlu0 %v1076
        %v1078 = vpop.xlane.xlu0 %1077
        %v1079 = vmul.f32 %v1057, %v1030
        %v1080 = vmul.f32 %v1060, %v1030
        %v1081 = vmul.f32 %v1063, %v1030
        %v1082 = vmul.f32 %v1066, %v1030
        %v1083 = vmul.f32 %v1069, %v1030
        %v1084 = vmul.f32 %v1072, %v1030
        %v1085 = vmul.f32 %v1075, %v1030
        %v1086 = vmul.f32 %v1078, %v1030
        %v1087 = vadd.f32 %v1079, 1e-05
        %v1088 = vadd.f32 %v1080, 1e-05
        %v1089 = vadd.f32 %v1081, 1e-05
        %v1090 = vadd.f32 %v1082, 1e-05
        %v1091 = vadd.f32 %v1083, 1e-05
        %v1092 = vadd.f32 %v1084, 1e-05
        %v1093 = vadd.f32 %v1085, 1e-05
        %v1094 = vadd.f32 %v1086, 1e-05
        %v1095 = vrsqrt.pop %v1087
        %v1096 = vmul.f32 %v1095, %v1087
        %v1097 = vmul.f32 %v1096, %v1095
        %v1098 = vmul.f32 0.5, %v1097
        %v1099 = vsub.f32 1.5, %v1098
        %v1100 = vmul.f32 %v1095, %v1099
        %vm1101 = vweird.f32 %v1087
        %vm1102 = vweird.f32 %v1095
        %vm1103 = vmor %vm1101, %vm1102
        %v1104 = vsel %vm1103, %v1095, %v1100
        %v1105 = vrsqrt.pop %v1088
        %v1106 = vmul.f32 %v1105, %v1088
        %v1107 = vmul.f32 %v1106, %v1105
        %v1108 = vmul.f32 0.5, %v1107
        %v1109 = vsub.f32 1.5, %v1108
        %v1110 = vmul.f32 %v1105, %v1109
        %vm1111 = vweird.f32 %v1088
        %vm1112 = vweird.f32 %v1105
        %vm1113 = vmor %vm1111, %vm1112
        %v1114 = vsel %vm1113, %v1105, %v1110
        %v1115 = vrsqrt.pop %v1089
        %v1116 = vmul.f32 %v1115, %v1089
        %v1117 = vmul.f32 %v1116, %v1115
        %v1118 = vmul.f32 0.5, %v1117
        %v1119 = vsub.f32 1.5, %v1118
        %v1120 = vmul.f32 %v1115, %v1119
        %vm1121 = vweird.f32 %v1089
        %vm1122 = vweird.f32 %v1115
        %vm1123 = vmor %vm1121, %vm1122
        %v1124 = vsel %vm1123, %v1115, %v1120
        %v1125 = vrsqrt.pop %v1090
        %v1126 = vmul.f32 %v1125, %v1090
        %v1127 = vmul.f32 %v1126, %v1125
        %v1128 = vmul.f32 0.5, %v1127
        %v1129 = vsub.f32 1.5, %v1128
        %v1130 = vmul.f32 %v1125, %v1129
        %vm1131 = vweird.f32 %v1090
        %vm1132 = vweird.f32 %v1125
        %vm1133 = vmor %vm1131, %vm1132
        %v1134 = vsel %vm1133, %v1125, %v1130
        %v1135 = vrsqrt.pop %v1091
        %v1136 = vmul.f32 %v1135, %v1091
        %v1137 = vmul.f32 %v1136, %v1135
        %v1138 = vmul.f32 0.5, %v1137
        %v1139 = vsub.f32 1.5, %v1138
        %v1140 = vmul.f32 %v1135, %v1139
        %vm1141 = vweird.f32 %v1091
        %vm1142 = vweird.f32 %v1135
        %vm1143 = vmor %vm1141, %vm1142
        %v1144 = vsel %vm1143, %v1135, %v1140
        %v1145 = vrsqrt.pop %v1092
        %v1146 = vmul.f32 %v1145, %v1092
        %v1147 = vmul.f32 %v1146, %v1145
        %v1148 = vmul.f32 0.5, %v1147
        %v1149 = vsub.f32 1.5, %v1148
        %v1150 = vmul.f32 %v1145, %v1149
        %vm1151 = vweird.f32 %v1092
        %vm1152 = vweird.f32 %v1145
        %vm1153 = vmor %vm1151, %vm1152
        %v1154 = vsel %vm1153, %v1145, %v1150
        %v1155 = vrsqrt.pop %v1093
        %v1156 = vmul.f32 %v1155, %v1093
        %v1157 = vmul.f32 %v1156, %v1155
        %v1158 = vmul.f32 0.5, %v1157
        %v1159 = vsub.f32 1.5, %v1158
        %v1160 = vmul.f32 %v1155, %v1159
        %vm1161 = vweird.f32 %v1093
        %vm1162 = vweird.f32 %v1155
        %vm1163 = vmor %vm1161, %vm1162
        %v1164 = vsel %vm1163, %v1155, %v1160
        %v1165 = vrsqrt.pop %v1094
        %v1166 = vmul.f32 %v1165, %v1094
        %v1167 = vmul.f32 %v1166, %v1165
        %v1168 = vmul.f32 0.5, %v1167
        %v1169 = vsub.f32 1.5, %v1168
        %v1170 = vmul.f32 %v1165, %v1169
        %vm1171 = vweird.f32 %v1094
        %vm1172 = vweird.f32 %v1165
        %vm1173 = vmor %vm1171, %vm1172
        %v1174 = vsel %vm1173, %v1165, %v1170
        %v1175 = vmul.f32 %v1039, %v1104
        %v1176 = vmul.f32 %v1040, %v1114
        %v1177 = vmul.f32 %v1041, %v1124
        %v1178 = vmul.f32 %v1042, %v1134
        %v1179 = vmul.f32 %v1043, %v1144
        %v1180 = vmul.f32 %v1044, %v1154
        %v1181 = vmul.f32 %v1045, %v1164
        %v1182 = vmul.f32 %v1046, %v1174
        %v1184 = vperm.slane %v997, 0
        %v1186 = vmul.f32 %v1175, %v1184
        %v1187 = vmul.f32 %v1176, %v1184
        %v1188 = vmul.f32 %v1177, %v1184
        %v1189 = vmul.f32 %v1178, %v1184
        %v1190 = vmul.f32 %v1179, %v1184
        %v1191 = vmul.f32 %v1180, %v1184
        %v1192 = vmul.f32 %v1181, %v1184
        %v1193 = vmul.f32 %v1182, %v1184
        %v1195 = vperm.slane %v998, 0
        %v1197 = vadd.f32 %v1186, %v1195
        %v1198 = vadd.f32 %v1187, %v1195
        %v1199 = vadd.f32 %v1188, %v1195
        %v1200 = vadd.f32 %v1189, %v1195
        %v1201 = vadd.f32 %v1190, %v1195
        %v1202 = vadd.f32 %v1191, %v1195
        %v1203 = vadd.f32 %v1192, %v1195
        %v1204 = vadd.f32 %v1193, %v1195
        %v1205 = vld [vmem:[%s916] sm:$0xf]
        %v1206 = vld [vmem:[%s916 + $0x4] sm:$0xf]
        %v1207 = vld [vmem:[%s916 + $0x8] sm:$0xf]
        %v1208 = vld [vmem:[%s916 + $0xc] sm:$0xf]
        %v1209 = vld [vmem:[%s916 + $0x10] sm:$0xf]
        %v1210 = vld [vmem:[%s916 + $0x14] sm:$0xf]
        %v1211 = vpack.c.bf16 %v1198, %v1197
        %v1212 = vpack.c.bf16 %v1200, %v1199
        %v1213 = vpack.c.bf16 %v1202, %v1201
        %v1214 = vpack.c.bf16 %v1204, %v1203
        %v1215 = vld [vmem:[%s919] sm:$0x1]
        %v1217 = vperm.slane %v1215, 0
        %v1225 = vunpack.c.l.b16 %v1205
        %v1226 = vunpack.c.l.b16 %v1206
        %v1227 = vunpack.c.l.b16 %v1207
        %v1228 = vunpack.c.l.b16 %v1208
        %v1229 = vunpack.c.l.b16 %v1209
        %v1230 = vunpack.c.l.b16 %v1210
        %v1231 = vpack.c.b16 %v1226, %v1225
        %v1232 = vpack.c.b16 %v1228, %v1227
        %v1233 = vpack.c.b16 %v1230, %v1229
        %v1238 = vsel %vm999, %v1211, 0
        %v1241 = vsel %vm999, %v1212, 0
        %v1244 = vsel %vm999, %v1213, 0
        %v1247 = vsel %vm999, %v1214, 0
        %1249 = vmatpush.bf16.msra.mxu0 0
        %1250 = vmatpush.bf16.msra.mxu0 0
        %1251 = vmatpush.bf16.msra.mxu0 0
        %1252 = vmatpush.bf16.msra.mxu0 0
        %1253 = vmatpush.bf16.msra.mxu0 0
        %1254 = vmatpush.bf16.msra.mxu0 %v1233
        %1255 = vmatpush.bf16.msra.mxu0 %v1232
        %1256 = vmatpush.bf16.msra.mxu0 %v1231
        %1257 = vmatmul.bf16.gmra.mxu0 %v1238
        %v1258 = vpop.f32.mrf.mxu0
        %v1259 = vadd.f32 %v1217, %v1258
        %v1260 = vpop.f32.mrf.mxu0
        %v1261 = vadd.f32 %v1217, %v1260
        %1262 = vmatmul.bf16.gmra.mxu0 %v1241
        %v1263 = vpop.f32.mrf.mxu0
        %v1264 = vadd.f32 %v1217, %v1263
        %v1265 = vpop.f32.mrf.mxu0
        %v1266 = vadd.f32 %v1217, %v1265
        %1267 = vmatmul.bf16.gmra.mxu0 %v1244
        %v1268 = vpop.f32.mrf.mxu0
        %v1269 = vadd.f32 %v1217, %v1268
        %v1270 = vpop.f32.mrf.mxu0
        %v1271 = vadd.f32 %v1217, %v1270
        %1272 = vmatmul.bf16.gmra.mxu0 %v1247
        %v1273 = vpop.f32.mrf.mxu0
        %v1274 = vadd.f32 %v1217, %v1273
        %v1275 = vpop.f32.mrf.mxu0
        %v1276 = vadd.f32 %v1217, %v1275
        %1277 = vdwg.mxu0
        %v1278 = vld [vmem:[%s924] sm:$0xf]
        %v1279 = vld [vmem:[%s924 + $0x4] sm:$0xf]
        %v1280 = vld [vmem:[%s924 + $0x8] sm:$0xf]
        %v1281 = vld [vmem:[%s924 + $0xc] sm:$0xf]
        %v1282 = vld [vmem:[%s924 + $0x10] sm:$0xf]
        %v1283 = vld [vmem:[%s924 + $0x14] sm:$0xf]
        %v1284 = vld [vmem:[%s927] sm:$0x1]
        %v1286 = vperm.slane %v1284, 0
        %v1294 = vunpack.c.l.b16 %v1278
        %v1295 = vunpack.c.l.b16 %v1279
        %v1296 = vunpack.c.l.b16 %v1280
        %v1297 = vunpack.c.l.b16 %v1281
        %v1298 = vunpack.c.l.b16 %v1282
        %v1299 = vunpack.c.l.b16 %v1283
        %v1300 = vpack.c.b16 %v1295, %v1294
        %v1301 = vpack.c.b16 %v1297, %v1296
        %v1302 = vpack.c.b16 %v1299, %v1298
        %1306 = vmatpush.bf16.msra.mxu0 0
        %1307 = vmatpush.bf16.msra.mxu0 0
        %1308 = vmatpush.bf16.msra.mxu0 0
        %1309 = vmatpush.bf16.msra.mxu0 0
        %1310 = vmatpush.bf16.msra.mxu0 0
        %1311 = vmatpush.bf16.msra.mxu0 %v1302
        %1312 = vmatpush.bf16.msra.mxu0 %v1301
        %1313 = vmatpush.bf16.msra.mxu0 %v1300
        %1314 = vmatmul.bf16.gmra.mxu0 %v1238
        %v1315 = vpop.f32.mrf.mxu0
        %v1316 = vadd.f32 %v1286, %v1315
        %v1317 = vpop.f32.mrf.mxu0
        %v1318 = vadd.f32 %v1286, %v1317
        %1319 = vmatmul.bf16.gmra.mxu0 %v1241
        %v1320 = vpop.f32.mrf.mxu0
        %v1321 = vadd.f32 %v1286, %v1320
        %v1322 = vpop.f32.mrf.mxu0
        %v1323 = vadd.f32 %v1286, %v1322
        %1324 = vmatmul.bf16.gmra.mxu0 %v1244
        %v1325 = vpop.f32.mrf.mxu0
        %v1326 = vadd.f32 %v1286, %v1325
        %v1327 = vpop.f32.mrf.mxu0
        %v1328 = vadd.f32 %v1286, %v1327
        %1329 = vmatmul.bf16.gmra.mxu0 %v1247
        %v1330 = vpop.f32.mrf.mxu0
        %v1331 = vadd.f32 %v1286, %v1330
        %v1332 = vpop.f32.mrf.mxu0
        %v1333 = vadd.f32 %v1286, %v1332
        %1334 = vdwg.mxu0
        %v1335 = vld [vmem:[%s932] sm:$0xf]
        %v1336 = vld [vmem:[%s932 + $0x4] sm:$0xf]
        %v1337 = vld [vmem:[%s932 + $0x8] sm:$0xf]
        %v1338 = vld [vmem:[%s932 + $0xc] sm:$0xf]
        %v1339 = vld [vmem:[%s932 + $0x10] sm:$0xf]
        %v1340 = vld [vmem:[%s932 + $0x14] sm:$0xf]
        %v1341 = vld [vmem:[%s935] sm:$0x1]
        %v1343 = vperm.slane %v1341, 0
        %v1351 = vunpack.c.l.b16 %v1335
        %v1352 = vunpack.c.l.b16 %v1336
        %v1353 = vunpack.c.l.b16 %v1337
        %v1354 = vunpack.c.l.b16 %v1338
        %v1355 = vunpack.c.l.b16 %v1339
        %v1356 = vunpack.c.l.b16 %v1340
        %v1357 = vpack.c.b16 %v1352, %v1351
        %v1358 = vpack.c.b16 %v1354, %v1353
        %v1359 = vpack.c.b16 %v1356, %v1355
        %1363 = vmatpush.bf16.msra.mxu0 0
        %1364 = vmatpush.bf16.msra.mxu0 0
        %1365 = vmatpush.bf16.msra.mxu0 0
        %1366 = vmatpush.bf16.msra.mxu0 0
        %1367 = vmatpush.bf16.msra.mxu0 0
        %1368 = vmatpush.bf16.msra.mxu0 %v1359
        %1369 = vmatpush.bf16.msra.mxu0 %v1358
        %1370 = vmatpush.bf16.msra.mxu0 %v1357
        %1371 = vmatmul.bf16.gmra.mxu0 %v1238
        %v1372 = vpop.f32.mrf.mxu0
        %v1373 = vadd.f32 %v1343, %v1372
        %v1374 = vpop.f32.mrf.mxu0
        %v1375 = vadd.f32 %v1343, %v1374
        %1376 = vmatmul.bf16.gmra.mxu0 %v1241
        %v1377 = vpop.f32.mrf.mxu0
        %v1378 = vadd.f32 %v1343, %v1377
        %v1379 = vpop.f32.mrf.mxu0
        %v1380 = vadd.f32 %v1343, %v1379
        %1381 = vmatmul.bf16.gmra.mxu0 %v1244
        %v1382 = vpop.f32.mrf.mxu0
        %v1383 = vadd.f32 %v1343, %v1382
        %v1384 = vpop.f32.mrf.mxu0
        %v1385 = vadd.f32 %v1343, %v1384
        %1386 = vmatmul.bf16.gmra.mxu0 %v1247
        %v1387 = vpop.f32.mrf.mxu0
        %v1388 = vadd.f32 %v1343, %v1387
        %v1389 = vpop.f32.mrf.mxu0
        %v1390 = vadd.f32 %v1343, %v1389
        %1391 = vdwg.mxu0
        %v1392 = vlaneseq
        %v1393 = vshrl.u32 %v1392, 7
        %v1394 = vlaneseq
        %v1395 = vand.u32 %v1394, 127
        %vm1396 = vcmp.le.s32.totalorder %v1395, %v1393
        %v1397 = vpack.c.bf16 %v1316, %v1316
        %v1398 = vpack.c.bf16 %v1318, %v1318
        %v1399 = vpack.c.bf16 %v1321, %v1321
        %v1400 = vpack.c.bf16 %v1323, %v1323
        %v1401 = vpack.c.bf16 %v1326, %v1326
        %v1402 = vpack.c.bf16 %v1328, %v1328
        %v1403 = vpack.c.bf16 %v1331, %v1331
        %v1404 = vpack.c.bf16 %v1333, %v1333
        %vm1405 = vcmp.ge.s32.totalorder %v1395, 0
        %vm1406 = vcmp.lt.s32.totalorder %v1395, 12
        %vm1407 = vmand %vm1405, %vm1406
        %v1408 = vsel %vm1407, 1, 0
        %v1409 = vcvt.s32.f32 %v1408
        %v1410 = vmul.f32 %v1259, %v1409
        %v1411 = vmul.f32 %v1261, %v1409
        %v1412 = vmul.f32 %v1264, %v1409
        %v1413 = vmul.f32 %v1266, %v1409
        %v1414 = vmul.f32 %v1269, %v1409
        %v1415 = vmul.f32 %v1271, %v1409
        %v1416 = vmul.f32 %v1274, %v1409
        %v1417 = vmul.f32 %v1276, %v1409
        %v1418 = vpack.c.bf16 %v1410, %v1410
        %v1419 = vpack.c.bf16 %v1411, %v1411
        %v1420 = vpack.c.bf16 %v1412, %v1412
        %v1421 = vpack.c.bf16 %v1413, %v1413
        %v1422 = vpack.c.bf16 %v1414, %v1414
        %v1423 = vpack.c.bf16 %v1415, %v1415
        %v1424 = vpack.c.bf16 %v1416, %v1416
        %v1425 = vpack.c.bf16 %v1417, %v1417
        %v1427 = vsel %vm999, %v1418, 0
        %v1430 = vsel %vm999, %v1397, 0
        %1432 = vmatpush.bf16.xpose.msra.mxu0 0
        %1433 = vmatpush.bf16.xpose.msra.mxu0 0
        %1434 = vmatpush.bf16.xpose.msra.mxu0 0
        %1435 = vmatpush.bf16.xpose.msra.mxu0 0
        %1436 = vmatpush.bf16.xpose.msra.mxu0 0
        %1437 = vmatpush.bf16.xpose.msra.mxu0 0
        %1438 = vmatpush.bf16.xpose.msra.mxu0 0
        %1439 = vmatpush.bf16.xpose.msra.mxu0 %v1430
        %1440 = vmatmul.bf16.gmra.mxu0 %v1427
        %v1441 = vpop.f32.mrf.mxu0
        %v1442 = vadd.f32 0.0, %v1441
        %v1443 = vpop.f32.mrf.mxu0
        %1444 = vdwg.mxu0
        %v1446 = vsel %vm999, %v1419, 0
        %v1449 = vsel %vm999, %v1398, 0
        %1451 = vmatpush.bf16.xpose.msra.mxu0 0
        %1452 = vmatpush.bf16.xpose.msra.mxu0 0
        %1453 = vmatpush.bf16.xpose.msra.mxu0 0
        %1454 = vmatpush.bf16.xpose.msra.mxu0 0
        %1455 = vmatpush.bf16.xpose.msra.mxu0 0
        %1456 = vmatpush.bf16.xpose.msra.mxu0 0
        %1457 = vmatpush.bf16.xpose.msra.mxu0 0
        %1458 = vmatpush.bf16.xpose.msra.mxu0 %v1449
        %1459 = vmatmul.bf16.gmra.mxu0 %v1446
        %v1460 = vpop.f32.mrf.mxu0
        %v1461 = vadd.f32 0.0, %v1460
        %v1462 = vpop.f32.mrf.mxu0
        %1463 = vdwg.mxu0
        %v1465 = vsel %vm999, %v1420, 0
        %v1468 = vsel %vm999, %v1399, 0
        %1470 = vmatpush.bf16.xpose.msra.mxu0 0
        %1471 = vmatpush.bf16.xpose.msra.mxu0 0
        %1472 = vmatpush.bf16.xpose.msra.mxu0 0
        %1473 = vmatpush.bf16.xpose.msra.mxu0 0
        %1474 = vmatpush.bf16.xpose.msra.mxu0 0
        %1475 = vmatpush.bf16.xpose.msra.mxu0 0
        %1476 = vmatpush.bf16.xpose.msra.mxu0 0
        %1477 = vmatpush.bf16.xpose.msra.mxu0 %v1468
        %1478 = vmatmul.bf16.gmra.mxu0 %v1465
        %v1479 = vpop.f32.mrf.mxu0
        %v1480 = vadd.f32 0.0, %v1479
        %v1481 = vpop.f32.mrf.mxu0
        %1482 = vdwg.mxu0
        %v1484 = vsel %vm999, %v1421, 0
        %v1487 = vsel %vm999, %v1400, 0
        %1489 = vmatpush.bf16.xpose.msra.mxu0 0
        %1490 = vmatpush.bf16.xpose.msra.mxu0 0
        %1491 = vmatpush.bf16.xpose.msra.mxu0 0
        %1492 = vmatpush.bf16.xpose.msra.mxu0 0
        %1493 = vmatpush.bf16.xpose.msra.mxu0 0
        %1494 = vmatpush.bf16.xpose.msra.mxu0 0
        %1495 = vmatpush.bf16.xpose.msra.mxu0 0
        %1496 = vmatpush.bf16.xpose.msra.mxu0 %v1487
        %1497 = vmatmul.bf16.gmra.mxu0 %v1484
        %v1498 = vpop.f32.mrf.mxu0
        %v1499 = vadd.f32 0.0, %v1498
        %v1500 = vpop.f32.mrf.mxu0
        %1501 = vdwg.mxu0
        %v1503 = vsel %vm999, %v1422, 0
        %v1506 = vsel %vm999, %v1401, 0
        %1508 = vmatpush.bf16.xpose.msra.mxu0 0
        %1509 = vmatpush.bf16.xpose.msra.mxu0 0
        %1510 = vmatpush.bf16.xpose.msra.mxu0 0
        %1511 = vmatpush.bf16.xpose.msra.mxu0 0
        %1512 = vmatpush.bf16.xpose.msra.mxu0 0
        %1513 = vmatpush.bf16.xpose.msra.mxu0 0
        %1514 = vmatpush.bf16.xpose.msra.mxu0 0
        %1515 = vmatpush.bf16.xpose.msra.mxu0 %v1506
        %1516 = vmatmul.bf16.gmra.mxu0 %v1503
        %v1517 = vpop.f32.mrf.mxu0
        %v1518 = vadd.f32 0.0, %v1517
        %v1519 = vpop.f32.mrf.mxu0
        %1520 = vdwg.mxu0
        %v1522 = vsel %vm999, %v1423, 0
        %v1525 = vsel %vm999, %v1402, 0
        %1527 = vmatpush.bf16.xpose.msra.mxu0 0
        %1528 = vmatpush.bf16.xpose.msra.mxu0 0
        %1529 = vmatpush.bf16.xpose.msra.mxu0 0
        %1530 = vmatpush.bf16.xpose.msra.mxu0 0
        %1531 = vmatpush.bf16.xpose.msra.mxu0 0
        %1532 = vmatpush.bf16.xpose.msra.mxu0 0
        %1533 = vmatpush.bf16.xpose.msra.mxu0 0
        %1534 = vmatpush.bf16.xpose.msra.mxu0 %v1525
        %1535 = vmatmul.bf16.gmra.mxu0 %v1522
        %v1536 = vpop.f32.mrf.mxu0
        %v1537 = vadd.f32 0.0, %v1536
        %v1538 = vpop.f32.mrf.mxu0
        %1539 = vdwg.mxu0
        %v1541 = vsel %vm999, %v1424, 0
        %v1544 = vsel %vm999, %v1403, 0
        %1546 = vmatpush.bf16.xpose.msra.mxu0 0
        %1547 = vmatpush.bf16.xpose.msra.mxu0 0
        %1548 = vmatpush.bf16.xpose.msra.mxu0 0
        %1549 = vmatpush.bf16.xpose.msra.mxu0 0
        %1550 = vmatpush.bf16.xpose.msra.mxu0 0
        %1551 = vmatpush.bf16.xpose.msra.mxu0 0
        %1552 = vmatpush.bf16.xpose.msra.mxu0 0
        %1553 = vmatpush.bf16.xpose.msra.mxu0 %v1544
        %1554 = vmatmul.bf16.gmra.mxu0 %v1541
        %v1555 = vpop.f32.mrf.mxu0
        %v1556 = vadd.f32 0.0, %v1555
        %v1557 = vpop.f32.mrf.mxu0
        %1558 = vdwg.mxu0
        %v1560 = vsel %vm999, %v1425, 0
        %v1563 = vsel %vm999, %v1404, 0
        %1565 = vmatpush.bf16.xpose.msra.mxu0 0
        %1566 = vmatpush.bf16.xpose.msra.mxu0 0
        %1567 = vmatpush.bf16.xpose.msra.mxu0 0
        %1568 = vmatpush.bf16.xpose.msra.mxu0 0
        %1569 = vmatpush.bf16.xpose.msra.mxu0 0
        %1570 = vmatpush.bf16.xpose.msra.mxu0 0
        %1571 = vmatpush.bf16.xpose.msra.mxu0 0
        %1572 = vmatpush.bf16.xpose.msra.mxu0 %v1563
        %1573 = vmatmul.bf16.gmra.mxu0 %v1560
        %v1574 = vpop.f32.mrf.mxu0
        %v1575 = vadd.f32 0.0, %v1574
        %v1576 = vpop.f32.mrf.mxu0
        %1577 = vdwg.mxu0
        %v1578 = vmul.f32 %v1442, 0.28867513
        %v1579 = vmul.f32 %v1461, 0.28867513
        %v1580 = vmul.f32 %v1480, 0.28867513
        %v1581 = vmul.f32 %v1499, 0.28867513
        %v1582 = vmul.f32 %v1518, 0.28867513
        %v1583 = vmul.f32 %v1537, 0.28867513
        %v1584 = vmul.f32 %v1556, 0.28867513
        %v1585 = vmul.f32 %v1575, 0.28867513
        %v1586 = vsel %vm1396, 1, 0
        %vm1587 = vcmp.eq.s32.totalorder %v1586, 1
        %v1588 = vsel %vm1587, %v1578, -1e+30
        %v1589 = vsel %vm1587, %v1579, -1e+30
        %v1590 = vsel %vm1587, %v1580, -1e+30
        %v1591 = vsel %vm1587, %v1581, -1e+30
        %v1592 = vsel %vm1587, %v1582, -1e+30
        %v1593 = vsel %vm1587, %v1583, -1e+30
        %v1594 = vsel %vm1587, %v1584, -1e+30
        %v1595 = vsel %vm1587, %v1585, -1e+30
        %vm1596 = vcmask 64512
        %v1597 = vsel %vm1596, %v1588, -inf
        %1598 = vmax.xlane.f32.xlu0 %v1597
        %v1599 = vpop.xlane.xlu0 %1598
        %v1600 = vsel %vm1596, %v1589, -inf
        %1601 = vmax.xlane.f32.xlu0 %v1600
        %v1602 = vpop.xlane.xlu0 %1601
        %v1603 = vsel %vm1596, %v1590, -inf
        %1604 = vmax.xlane.f32.xlu0 %v1603
        %v1605 = vpop.xlane.xlu0 %1604
        %v1606 = vsel %vm1596, %v1591, -inf
        %1607 = vmax.xlane.f32.xlu0 %v1606
        %v1608 = vpop.xlane.xlu0 %1607
        %v1609 = vsel %vm1596, %v1592, -inf
        %1610 = vmax.xlane.f32.xlu0 %v1609
        %v1611 = vpop.xlane.xlu0 %1610
        %v1612 = vsel %vm1596, %v1593, -inf
        %1613 = vmax.xlane.f32.xlu0 %v1612
        %v1614 = vpop.xlane.xlu0 %1613
        %v1615 = vsel %vm1596, %v1594, -inf
        %1616 = vmax.xlane.f32.xlu0 %v1615
        %v1617 = vpop.xlane.xlu0 %1616
        %v1618 = vsel %vm1596, %v1595, -inf
        %1619 = vmax.xlane.f32.xlu0 %v1618
        %v1620 = vpop.xlane.xlu0 %1619
        %v1621 = vsub.f32 %v1588, %v1599
        %v1622 = vsub.f32 %v1589, %v1602
        %v1623 = vsub.f32 %v1590, %v1605
        %v1624 = vsub.f32 %v1591, %v1608
        %v1625 = vsub.f32 %v1592, %v1611
        %v1626 = vsub.f32 %v1593, %v1614
        %v1627 = vsub.f32 %v1594, %v1617
        %v1628 = vsub.f32 %v1595, %v1620
        %v1629 = vmul.f32 %v1621, 1.442695
        %v1630 = vpow.pop %v1629
        %v1631 = vmul.f32 %v1622, 1.442695
        %v1632 = vpow.pop %v1631
        %v1633 = vmul.f32 %v1623, 1.442695
        %v1634 = vpow.pop %v1633
        %v1635 = vmul.f32 %v1624, 1.442695
        %v1636 = vpow.pop %v1635
        %v1637 = vmul.f32 %v1625, 1.442695
        %v1638 = vpow.pop %v1637
        %v1639 = vmul.f32 %v1626, 1.442695
        %v1640 = vpow.pop %v1639
        %v1641 = vmul.f32 %v1627, 1.442695
        %v1642 = vpow.pop %v1641
        %v1643 = vmul.f32 %v1628, 1.442695
        %v1644 = vpow.pop %v1643
        %v1645 = vsel %vm1596, %v1630, 0.0
        %1646 = vadd.xlane.f32.xlu0 %v1645
        %v1647 = vpop.xlane.xlu0 %1646
        %v1648 = vsel %vm1596, %v1632, 0.0
        %1649 = vadd.xlane.f32.xlu0 %v1648
        %v1650 = vpop.xlane.xlu0 %1649
        %v1651 = vsel %vm1596, %v1634, 0.0
        %1652 = vadd.xlane.f32.xlu0 %v1651
        %v1653 = vpop.xlane.xlu0 %1652
        %v1654 = vsel %vm1596, %v1636, 0.0
        %1655 = vadd.xlane.f32.xlu0 %v1654
        %v1656 = vpop.xlane.xlu0 %1655
        %v1657 = vsel %vm1596, %v1638, 0.0
        %1658 = vadd.xlane.f32.xlu0 %v1657
        %v1659 = vpop.xlane.xlu0 %1658
        %v1660 = vsel %vm1596, %v1640, 0.0
        %1661 = vadd.xlane.f32.xlu0 %v1660
        %v1662 = vpop.xlane.xlu0 %1661
        %v1663 = vsel %vm1596, %v1642, 0.0
        %1664 = vadd.xlane.f32.xlu0 %v1663
        %v1665 = vpop.xlane.xlu0 %1664
        %v1666 = vsel %vm1596, %v1644, 0.0
        %1667 = vadd.xlane.f32.xlu0 %v1666
        %v1668 = vpop.xlane.xlu0 %1667
        %v1669 = vrcp.pop %v1647
        %v1670 = vrcp.pop %v1650
        %v1671 = vrcp.pop %v1653
        %v1672 = vrcp.pop %v1656
        %v1673 = vrcp.pop %v1659
        %v1674 = vrcp.pop %v1662
        %v1675 = vrcp.pop %v1665
        %v1676 = vrcp.pop %v1668
        %v1677 = vmul.f32 %v1630, %v1669
        %v1678 = vmul.f32 %v1632, %v1670
        %v1679 = vmul.f32 %v1634, %v1671
        %v1680 = vmul.f32 %v1636, %v1672
        %v1681 = vmul.f32 %v1638, %v1673
        %v1682 = vmul.f32 %v1640, %v1674
        %v1683 = vmul.f32 %v1642, %v1675
        %v1684 = vmul.f32 %v1644, %v1676
        %v1685 = vpack.c.bf16 %v1677, %v1677
        %v1686 = vpack.c.bf16 %v1678, %v1678
        %v1687 = vpack.c.bf16 %v1679, %v1679
        %v1688 = vpack.c.bf16 %v1680, %v1680
        %v1689 = vpack.c.bf16 %v1681, %v1681
        %v1690 = vpack.c.bf16 %v1682, %v1682
        %v1691 = vpack.c.bf16 %v1683, %v1683
        %v1692 = vpack.c.bf16 %v1684, %v1684
        %v1693 = vmul.f32 %v1373, %v1409
        %v1694 = vmul.f32 %v1375, %v1409
        %v1695 = vmul.f32 %v1378, %v1409
        %v1696 = vmul.f32 %v1380, %v1409
        %v1697 = vmul.f32 %v1383, %v1409
        %v1698 = vmul.f32 %v1385, %v1409
        %v1699 = vmul.f32 %v1388, %v1409
        %v1700 = vmul.f32 %v1390, %v1409
        %v1701 = vpack.c.bf16 %v1693, %v1693
        %v1702 = vpack.c.bf16 %v1694, %v1694
        %v1703 = vpack.c.bf16 %v1695, %v1695
        %v1704 = vpack.c.bf16 %v1696, %v1696
        %v1705 = vpack.c.bf16 %v1697, %v1697
        %v1706 = vpack.c.bf16 %v1698, %v1698
        %v1707 = vpack.c.bf16 %v1699, %v1699
        %v1708 = vpack.c.bf16 %v1700, %v1700
        %vm1709 = vcmp.ge.s32.totalorder %v1395, 12
        %vm1710 = vcmp.lt.s32.totalorder %v1395, 24
        %vm1711 = vmand %vm1709, %vm1710
        %v1712 = vsel %vm1711, 1, 0
        %v1713 = vcvt.s32.f32 %v1712
        %v1714 = vmul.f32 %v1259, %v1713
        %v1715 = vmul.f32 %v1261, %v1713
        %v1716 = vmul.f32 %v1264, %v1713
        %v1717 = vmul.f32 %v1266, %v1713
        %v1718 = vmul.f32 %v1269, %v1713
        %v1719 = vmul.f32 %v1271, %v1713
        %v1720 = vmul.f32 %v1274, %v1713
        %v1721 = vmul.f32 %v1276, %v1713
        %v1722 = vpack.c.bf16 %v1714, %v1714
        %v1723 = vpack.c.bf16 %v1715, %v1715
        %v1724 = vpack.c.bf16 %v1716, %v1716
        %v1725 = vpack.c.bf16 %v1717, %v1717
        %v1726 = vpack.c.bf16 %v1718, %v1718
        %v1727 = vpack.c.bf16 %v1719, %v1719
        %v1728 = vpack.c.bf16 %v1720, %v1720
        %v1729 = vpack.c.bf16 %v1721, %v1721
        %v1731 = vsel %vm999, %v1722, 0
        %1733 = vmatpush.bf16.xpose.msra.mxu0 0
        %1734 = vmatpush.bf16.xpose.msra.mxu0 0
        %1735 = vmatpush.bf16.xpose.msra.mxu0 0
        %1736 = vmatpush.bf16.xpose.msra.mxu0 0
        %1737 = vmatpush.bf16.xpose.msra.mxu0 0
        %1738 = vmatpush.bf16.xpose.msra.mxu0 0
        %1739 = vmatpush.bf16.xpose.msra.mxu0 0
        %1740 = vmatpush.bf16.xpose.msra.mxu0 %v1430
        %1741 = vmatmul.bf16.gmra.mxu0 %v1731
        %v1742 = vpop.f32.mrf.mxu0
        %v1743 = vadd.f32 0.0, %v1742
        %v1744 = vpop.f32.mrf.mxu0
        %1745 = vdwg.mxu0
        %v1747 = vsel %vm999, %v1723, 0
        %1749 = vmatpush.bf16.xpose.msra.mxu0 0
        %1750 = vmatpush.bf16.xpose.msra.mxu0 0
        %1751 = vmatpush.bf16.xpose.msra.mxu0 0
        %1752 = vmatpush.bf16.xpose.msra.mxu0 0
        %1753 = vmatpush.bf16.xpose.msra.mxu0 0
        %1754 = vmatpush.bf16.xpose.msra.mxu0 0
        %1755 = vmatpush.bf16.xpose.msra.mxu0 0
        %1756 = vmatpush.bf16.xpose.msra.mxu0 %v1449
        %1757 = vmatmul.bf16.gmra.mxu0 %v1747
        %v1758 = vpop.f32.mrf.mxu0
        %v1759 = vadd.f32 0.0, %v1758
        %v1760 = vpop.f32.mrf.mxu0
        %1761 = vdwg.mxu0
        %v1763 = vsel %vm999, %v1724, 0
        %1765 = vmatpush.bf16.xpose.msra.mxu0 0
        %1766 = vmatpush.bf16.xpose.msra.mxu0 0
        %1767 = vmatpush.bf16.xpose.msra.mxu0 0
        %1768 = vmatpush.bf16.xpose.msra.mxu0 0
        %1769 = vmatpush.bf16.xpose.msra.mxu0 0
        %1770 = vmatpush.bf16.xpose.msra.mxu0 0
        %1771 = vmatpush.bf16.xpose.msra.mxu0 0
        %1772 = vmatpush.bf16.xpose.msra.mxu0 %v1468
        %1773 = vmatmul.bf16.gmra.mxu0 %v1763
        %v1774 = vpop.f32.mrf.mxu0
        %v1775 = vadd.f32 0.0, %v1774
        %v1776 = vpop.f32.mrf.mxu0
        %1777 = vdwg.mxu0
        %v1779 = vsel %vm999, %v1725, 0
        %1781 = vmatpush.bf16.xpose.msra.mxu0 0
        %1782 = vmatpush.bf16.xpose.msra.mxu0 0
        %1783 = vmatpush.bf16.xpose.msra.mxu0 0
        %1784 = vmatpush.bf16.xpose.msra.mxu0 0
        %1785 = vmatpush.bf16.xpose.msra.mxu0 0
        %1786 = vmatpush.bf16.xpose.msra.mxu0 0
        %1787 = vmatpush.bf16.xpose.msra.mxu0 0
        %1788 = vmatpush.bf16.xpose.msra.mxu0 %v1487
        %1789 = vmatmul.bf16.gmra.mxu0 %v1779
        %v1790 = vpop.f32.mrf.mxu0
        %v1791 = vadd.f32 0.0, %v1790
        %v1792 = vpop.f32.mrf.mxu0
        %1793 = vdwg.mxu0
        %v1795 = vsel %vm999, %v1726, 0
        %1797 = vmatpush.bf16.xpose.msra.mxu0 0
        %1798 = vmatpush.bf16.xpose.msra.mxu0 0
        %1799 = vmatpush.bf16.xpose.msra.mxu0 0
        %1800 = vmatpush.bf16.xpose.msra.mxu0 0
        %1801 = vmatpush.bf16.xpose.msra.mxu0 0
        %1802 = vmatpush.bf16.xpose.msra.mxu0 0
        %1803 = vmatpush.bf16.xpose.msra.mxu0 0
        %1804 = vmatpush.bf16.xpose.msra.mxu0 %v1506
        %1805 = vmatmul.bf16.gmra.mxu0 %v1795
        %v1806 = vpop.f32.mrf.mxu0
        %v1807 = vadd.f32 0.0, %v1806
        %v1808 = vpop.f32.mrf.mxu0
        %1809 = vdwg.mxu0
        %v1811 = vsel %vm999, %v1727, 0
        %1813 = vmatpush.bf16.xpose.msra.mxu0 0
        %1814 = vmatpush.bf16.xpose.msra.mxu0 0
        %1815 = vmatpush.bf16.xpose.msra.mxu0 0
        %1816 = vmatpush.bf16.xpose.msra.mxu0 0
        %1817 = vmatpush.bf16.xpose.msra.mxu0 0
        %1818 = vmatpush.bf16.xpose.msra.mxu0 0
        %1819 = vmatpush.bf16.xpose.msra.mxu0 0
        %1820 = vmatpush.bf16.xpose.msra.mxu0 %v1525
        %1821 = vmatmul.bf16.gmra.mxu0 %v1811
        %v1822 = vpop.f32.mrf.mxu0
        %v1823 = vadd.f32 0.0, %v1822
        %v1824 = vpop.f32.mrf.mxu0
        %1825 = vdwg.mxu0
        %v1827 = vsel %vm999, %v1728, 0
        %1829 = vmatpush.bf16.xpose.msra.mxu0 0
        %1830 = vmatpush.bf16.xpose.msra.mxu0 0
        %1831 = vmatpush.bf16.xpose.msra.mxu0 0
        %1832 = vmatpush.bf16.xpose.msra.mxu0 0
        %1833 = vmatpush.bf16.xpose.msra.mxu0 0
        %1834 = vmatpush.bf16.xpose.msra.mxu0 0
        %1835 = vmatpush.bf16.xpose.msra.mxu0 0
        %1836 = vmatpush.bf16.xpose.msra.mxu0 %v1544
        %1837 = vmatmul.bf16.gmra.mxu0 %v1827
        %v1838 = vpop.f32.mrf.mxu0
        %v1839 = vadd.f32 0.0, %v1838
        %v1840 = vpop.f32.mrf.mxu0
        %1841 = vdwg.mxu0
        %v1843 = vsel %vm999, %v1729, 0
        %1845 = vmatpush.bf16.xpose.msra.mxu0 0
        %1846 = vmatpush.bf16.xpose.msra.mxu0 0
        %1847 = vmatpush.bf16.xpose.msra.mxu0 0
        %1848 = vmatpush.bf16.xpose.msra.mxu0 0
        %1849 = vmatpush.bf16.xpose.msra.mxu0 0
        %1850 = vmatpush.bf16.xpose.msra.mxu0 0
        %1851 = vmatpush.bf16.xpose.msra.mxu0 0
        %1852 = vmatpush.bf16.xpose.msra.mxu0 %v1563
        %1853 = vmatmul.bf16.gmra.mxu0 %v1843
        %v1854 = vpop.f32.mrf.mxu0
        %v1855 = vadd.f32 0.0, %v1854
        %v1856 = vpop.f32.mrf.mxu0
        %1857 = vdwg.mxu0
        %v1858 = vmul.f32 %v1743, 0.28867513
        %v1859 = vmul.f32 %v1759, 0.28867513
        %v1860 = vmul.f32 %v1775, 0.28867513
        %v1861 = vmul.f32 %v1791, 0.28867513
        %v1862 = vmul.f32 %v1807, 0.28867513
        %v1863 = vmul.f32 %v1823, 0.28867513
        %v1864 = vmul.f32 %v1839, 0.28867513
        %v1865 = vmul.f32 %v1855, 0.28867513
        %v1866 = vsel %vm1587, %v1858, -1e+30
        %v1867 = vsel %vm1587, %v1859, -1e+30
        %v1868 = vsel %vm1587, %v1860, -1e+30
        %v1869 = vsel %vm1587, %v1861, -1e+30
        %v1870 = vsel %vm1587, %v1862, -1e+30
        %v1871 = vsel %vm1587, %v1863, -1e+30
        %v1872 = vsel %vm1587, %v1864, -1e+30
        %v1873 = vsel %vm1587, %v1865, -1e+30
        %v1874 = vsel %vm1596, %v1866, -inf
        %1875 = vmax.xlane.f32.xlu0 %v1874
        %v1876 = vpop.xlane.xlu0 %1875
        %v1877 = vsel %vm1596, %v1867, -inf
        %1878 = vmax.xlane.f32.xlu0 %v1877
        %v1879 = vpop.xlane.xlu0 %1878
        %v1880 = vsel %vm1596, %v1868, -inf
        %1881 = vmax.xlane.f32.xlu0 %v1880
        %v1882 = vpop.xlane.xlu0 %1881
        %v1883 = vsel %vm1596, %v1869, -inf
        %1884 = vmax.xlane.f32.xlu0 %v1883
        %v1885 = vpop.xlane.xlu0 %1884
        %v1886 = vsel %vm1596, %v1870, -inf
        %1887 = vmax.xlane.f32.xlu0 %v1886
        %v1888 = vpop.xlane.xlu0 %1887
        %v1889 = vsel %vm1596, %v1871, -inf
        %1890 = vmax.xlane.f32.xlu0 %v1889
        %v1891 = vpop.xlane.xlu0 %1890
        %v1892 = vsel %vm1596, %v1872, -inf
        %1893 = vmax.xlane.f32.xlu0 %v1892
        %v1894 = vpop.xlane.xlu0 %1893
        %v1895 = vsel %vm1596, %v1873, -inf
        %1896 = vmax.xlane.f32.xlu0 %v1895
        %v1897 = vpop.xlane.xlu0 %1896
        %v1898 = vsub.f32 %v1866, %v1876
        %v1899 = vsub.f32 %v1867, %v1879
        %v1900 = vsub.f32 %v1868, %v1882
        %v1901 = vsub.f32 %v1869, %v1885
        %v1902 = vsub.f32 %v1870, %v1888
        %v1903 = vsub.f32 %v1871, %v1891
        %v1904 = vsub.f32 %v1872, %v1894
        %v1905 = vsub.f32 %v1873, %v1897
        %v1906 = vmul.f32 %v1898, 1.442695
        %v1907 = vpow.pop %v1906
        %v1908 = vmul.f32 %v1899, 1.442695
        %v1909 = vpow.pop %v1908
        %v1910 = vmul.f32 %v1900, 1.442695
        %v1911 = vpow.pop %v1910
        %v1912 = vmul.f32 %v1901, 1.442695
        %v1913 = vpow.pop %v1912
        %v1914 = vmul.f32 %v1902, 1.442695
        %v1915 = vpow.pop %v1914
        %v1916 = vmul.f32 %v1903, 1.442695
        %v1917 = vpow.pop %v1916
        %v1918 = vmul.f32 %v1904, 1.442695
        %v1919 = vpow.pop %v1918
        %v1920 = vmul.f32 %v1905, 1.442695
        %v1921 = vpow.pop %v1920
        %v1922 = vsel %vm1596, %v1907, 0.0
        %1923 = vadd.xlane.f32.xlu0 %v1922
        %v1924 = vpop.xlane.xlu0 %1923
        %v1925 = vsel %vm1596, %v1909, 0.0
        %1926 = vadd.xlane.f32.xlu0 %v1925
        %v1927 = vpop.xlane.xlu0 %1926
        %v1928 = vsel %vm1596, %v1911, 0.0
        %1929 = vadd.xlane.f32.xlu0 %v1928
        %v1930 = vpop.xlane.xlu0 %1929
        %v1931 = vsel %vm1596, %v1913, 0.0
        %1932 = vadd.xlane.f32.xlu0 %v1931
        %v1933 = vpop.xlane.xlu0 %1932
        %v1934 = vsel %vm1596, %v1915, 0.0
        %1935 = vadd.xlane.f32.xlu0 %v1934
        %v1936 = vpop.xlane.xlu0 %1935
        %v1937 = vsel %vm1596, %v1917, 0.0
        %1938 = vadd.xlane.f32.xlu0 %v1937
        %v1939 = vpop.xlane.xlu0 %1938
        %v1940 = vsel %vm1596, %v1919, 0.0
        %1941 = vadd.xlane.f32.xlu0 %v1940
        %v1942 = vpop.xlane.xlu0 %1941
        %v1943 = vsel %vm1596, %v1921, 0.0
        %1944 = vadd.xlane.f32.xlu0 %v1943
        %v1945 = vpop.xlane.xlu0 %1944
        %v1946 = vrcp.pop %v1924
        %v1947 = vrcp.pop %v1927
        %v1948 = vrcp.pop %v1930
        %v1949 = vrcp.pop %v1933
        %v1950 = vrcp.pop %v1936
        %v1951 = vrcp.pop %v1939
        %v1952 = vrcp.pop %v1942
        %v1953 = vrcp.pop %v1945
        %v1954 = vmul.f32 %v1907, %v1946
        %v1955 = vmul.f32 %v1909, %v1947
        %v1956 = vmul.f32 %v1911, %v1948
        %v1957 = vmul.f32 %v1913, %v1949
        %v1958 = vmul.f32 %v1915, %v1950
        %v1959 = vmul.f32 %v1917, %v1951
        %v1960 = vmul.f32 %v1919, %v1952
        %v1961 = vmul.f32 %v1921, %v1953
        %v1962 = vpack.c.bf16 %v1954, %v1954
        %v1963 = vpack.c.bf16 %v1955, %v1955
        %v1964 = vpack.c.bf16 %v1956, %v1956
        %v1965 = vpack.c.bf16 %v1957, %v1957
        %v1966 = vpack.c.bf16 %v1958, %v1958
        %v1967 = vpack.c.bf16 %v1959, %v1959
        %v1968 = vpack.c.bf16 %v1960, %v1960
        %v1969 = vpack.c.bf16 %v1961, %v1961
        %v1970 = vmul.f32 %v1373, %v1713
        %v1971 = vmul.f32 %v1375, %v1713
        %v1972 = vmul.f32 %v1378, %v1713
        %v1973 = vmul.f32 %v1380, %v1713
        %v1974 = vmul.f32 %v1383, %v1713
        %v1975 = vmul.f32 %v1385, %v1713
        %v1976 = vmul.f32 %v1388, %v1713
        %v1977 = vmul.f32 %v1390, %v1713
        %v1978 = vpack.c.bf16 %v1970, %v1970
        %v1979 = vpack.c.bf16 %v1971, %v1971
        %v1980 = vpack.c.bf16 %v1972, %v1972
        %v1981 = vpack.c.bf16 %v1973, %v1973
        %v1982 = vpack.c.bf16 %v1974, %v1974
        %v1983 = vpack.c.bf16 %v1975, %v1975
        %v1984 = vpack.c.bf16 %v1976, %v1976
        %v1985 = vpack.c.bf16 %v1977, %v1977
        %v1987 = vsel %vm1596, %v1962, 0
        %vm1989 = vcmask 1043456
        %v1991 = vsel %vm1989, %v1978, 0
        %1993 = vmatpush.bf16.msra.mxu0 0
        %1994 = vmatpush.bf16.msra.mxu0 0
        %1995 = vmatpush.bf16.msra.mxu0 0
        %1996 = vmatpush.bf16.msra.mxu0 0
        %1997 = vmatpush.bf16.msra.mxu0 0
        %1998 = vmatpush.bf16.msra.mxu0 0
        %1999 = vmatpush.bf16.msra.mxu0 0
        %2000 = vmatpush.bf16.msra.mxu0 %v1991
        %2001 = vmatmul.bf16.gmra.mxu0 %v1987
        %v2002 = vpop.f32.mrf.mxu0
        %v2003 = vadd.f32 0.0, %v2002
        %v2004 = vpop.f32.mrf.mxu0
        %2005 = vdwg.mxu0
        %v2007 = vsel %vm1596, %v1963, 0
        %v2010 = vsel %vm1989, %v1979, 0
        %2012 = vmatpush.bf16.msra.mxu0 0
        %2013 = vmatpush.bf16.msra.mxu0 0
        %2014 = vmatpush.bf16.msra.mxu0 0
        %2015 = vmatpush.bf16.msra.mxu0 0
        %2016 = vmatpush.bf16.msra.mxu0 0
        %2017 = vmatpush.bf16.msra.mxu0 0
        %2018 = vmatpush.bf16.msra.mxu0 0
        %2019 = vmatpush.bf16.msra.mxu0 %v2010
        %2020 = vmatmul.bf16.gmra.mxu0 %v2007
        %v2021 = vpop.f32.mrf.mxu0
        %v2022 = vadd.f32 0.0, %v2021
        %v2023 = vpop.f32.mrf.mxu0
        %2024 = vdwg.mxu0
        %v2026 = vsel %vm1596, %v1964, 0
        %v2029 = vsel %vm1989, %v1980, 0
        %2031 = vmatpush.bf16.msra.mxu0 0
        %2032 = vmatpush.bf16.msra.mxu0 0
        %2033 = vmatpush.bf16.msra.mxu0 0
        %2034 = vmatpush.bf16.msra.mxu0 0
        %2035 = vmatpush.bf16.msra.mxu0 0
        %2036 = vmatpush.bf16.msra.mxu0 0
        %2037 = vmatpush.bf16.msra.mxu0 0
        %2038 = vmatpush.bf16.msra.mxu0 %v2029
        %2039 = vmatmul.bf16.gmra.mxu0 %v2026
        %v2040 = vpop.f32.mrf.mxu0
        %v2041 = vadd.f32 0.0, %v2040
        %v2042 = vpop.f32.mrf.mxu0
        %2043 = vdwg.mxu0
        %v2045 = vsel %vm1596, %v1965, 0
        %v2048 = vsel %vm1989, %v1981, 0
        %2050 = vmatpush.bf16.msra.mxu0 0
        %2051 = vmatpush.bf16.msra.mxu0 0
        %2052 = vmatpush.bf16.msra.mxu0 0
        %2053 = vmatpush.bf16.msra.mxu0 0
        %2054 = vmatpush.bf16.msra.mxu0 0
        %2055 = vmatpush.bf16.msra.mxu0 0
        %2056 = vmatpush.bf16.msra.mxu0 0
        %2057 = vmatpush.bf16.msra.mxu0 %v2048
        %2058 = vmatmul.bf16.gmra.mxu0 %v2045
        %v2059 = vpop.f32.mrf.mxu0
        %v2060 = vadd.f32 0.0, %v2059
        %v2061 = vpop.f32.mrf.mxu0
        %2062 = vdwg.mxu0
        %v2064 = vsel %vm1596, %v1966, 0
        %v2067 = vsel %vm1989, %v1982, 0
        %2069 = vmatpush.bf16.msra.mxu0 0
        %2070 = vmatpush.bf16.msra.mxu0 0
        %2071 = vmatpush.bf16.msra.mxu0 0
        %2072 = vmatpush.bf16.msra.mxu0 0
        %2073 = vmatpush.bf16.msra.mxu0 0
        %2074 = vmatpush.bf16.msra.mxu0 0
        %2075 = vmatpush.bf16.msra.mxu0 0
        %2076 = vmatpush.bf16.msra.mxu0 %v2067
        %2077 = vmatmul.bf16.gmra.mxu0 %v2064
        %v2078 = vpop.f32.mrf.mxu0
        %v2079 = vadd.f32 0.0, %v2078
        %v2080 = vpop.f32.mrf.mxu0
        %2081 = vdwg.mxu0
        %v2083 = vsel %vm1596, %v1967, 0
        %v2086 = vsel %vm1989, %v1983, 0
        %2088 = vmatpush.bf16.msra.mxu0 0
        %2089 = vmatpush.bf16.msra.mxu0 0
        %2090 = vmatpush.bf16.msra.mxu0 0
        %2091 = vmatpush.bf16.msra.mxu0 0
        %2092 = vmatpush.bf16.msra.mxu0 0
        %2093 = vmatpush.bf16.msra.mxu0 0
        %2094 = vmatpush.bf16.msra.mxu0 0
        %2095 = vmatpush.bf16.msra.mxu0 %v2086
        %2096 = vmatmul.bf16.gmra.mxu0 %v2083
        %v2097 = vpop.f32.mrf.mxu0
        %v2098 = vadd.f32 0.0, %v2097
        %v2099 = vpop.f32.mrf.mxu0
        %2100 = vdwg.mxu0
        %v2102 = vsel %vm1596, %v1968, 0
        %v2105 = vsel %vm1989, %v1984, 0
        %2107 = vmatpush.bf16.msra.mxu0 0
        %2108 = vmatpush.bf16.msra.mxu0 0
        %2109 = vmatpush.bf16.msra.mxu0 0
        %2110 = vmatpush.bf16.msra.mxu0 0
        %2111 = vmatpush.bf16.msra.mxu0 0
        %2112 = vmatpush.bf16.msra.mxu0 0
        %2113 = vmatpush.bf16.msra.mxu0 0
        %2114 = vmatpush.bf16.msra.mxu0 %v2105
        %2115 = vmatmul.bf16.gmra.mxu0 %v2102
        %v2116 = vpop.f32.mrf.mxu0
        %v2117 = vadd.f32 0.0, %v2116
        %v2118 = vpop.f32.mrf.mxu0
        %2119 = vdwg.mxu0
        %v2121 = vsel %vm1596, %v1969, 0
        %v2124 = vsel %vm1989, %v1985, 0
        %2126 = vmatpush.bf16.msra.mxu0 0
        %2127 = vmatpush.bf16.msra.mxu0 0
        %2128 = vmatpush.bf16.msra.mxu0 0
        %2129 = vmatpush.bf16.msra.mxu0 0
        %2130 = vmatpush.bf16.msra.mxu0 0
        %2131 = vmatpush.bf16.msra.mxu0 0
        %2132 = vmatpush.bf16.msra.mxu0 0
        %2133 = vmatpush.bf16.msra.mxu0 %v2124
        %2134 = vmatmul.bf16.gmra.mxu0 %v2121
        %v2135 = vpop.f32.mrf.mxu0
        %v2136 = vadd.f32 0.0, %v2135
        %v2137 = vpop.f32.mrf.mxu0
        %2138 = vdwg.mxu0
        %v2140 = vsel %vm1596, %v1685, 0
        %v2143 = vsel %vm1989, %v1701, 0
        %2145 = vmatpush.bf16.msra.mxu0 0
        %2146 = vmatpush.bf16.msra.mxu0 0
        %2147 = vmatpush.bf16.msra.mxu0 0
        %2148 = vmatpush.bf16.msra.mxu0 0
        %2149 = vmatpush.bf16.msra.mxu0 0
        %2150 = vmatpush.bf16.msra.mxu0 0
        %2151 = vmatpush.bf16.msra.mxu0 0
        %2152 = vmatpush.bf16.msra.mxu0 %v2143
        %2153 = vmatmul.bf16.gmra.mxu0 %v2140
        %v2154 = vpop.f32.mrf.mxu0
        %v2155 = vadd.f32 %v2003, %v2154
        %v2156 = vpop.f32.mrf.mxu0
        %2157 = vdwg.mxu0
        %v2159 = vsel %vm1596, %v1686, 0
        %v2162 = vsel %vm1989, %v1702, 0
        %2164 = vmatpush.bf16.msra.mxu0 0
        %2165 = vmatpush.bf16.msra.mxu0 0
        %2166 = vmatpush.bf16.msra.mxu0 0
        %2167 = vmatpush.bf16.msra.mxu0 0
        %2168 = vmatpush.bf16.msra.mxu0 0
        %2169 = vmatpush.bf16.msra.mxu0 0
        %2170 = vmatpush.bf16.msra.mxu0 0
        %2171 = vmatpush.bf16.msra.mxu0 %v2162
        %2172 = vmatmul.bf16.gmra.mxu0 %v2159
        %v2173 = vpop.f32.mrf.mxu0
        %v2174 = vadd.f32 %v2022, %v2173
        %v2175 = vpop.f32.mrf.mxu0
        %2176 = vdwg.mxu0
        %v2178 = vsel %vm1596, %v1687, 0
        %v2181 = vsel %vm1989, %v1703, 0
        %2183 = vmatpush.bf16.msra.mxu0 0
        %2184 = vmatpush.bf16.msra.mxu0 0
        %2185 = vmatpush.bf16.msra.mxu0 0
        %2186 = vmatpush.bf16.msra.mxu0 0
        %2187 = vmatpush.bf16.msra.mxu0 0
        %2188 = vmatpush.bf16.msra.mxu0 0
        %2189 = vmatpush.bf16.msra.mxu0 0
        %2190 = vmatpush.bf16.msra.mxu0 %v2181
        %2191 = vmatmul.bf16.gmra.mxu0 %v2178
        %v2192 = vpop.f32.mrf.mxu0
        %v2193 = vadd.f32 %v2041, %v2192
        %v2194 = vpop.f32.mrf.mxu0
        %2195 = vdwg.mxu0
        %v2197 = vsel %vm1596, %v1688, 0
        %v2200 = vsel %vm1989, %v1704, 0
        %2202 = vmatpush.bf16.msra.mxu0 0
        %2203 = vmatpush.bf16.msra.mxu0 0
        %2204 = vmatpush.bf16.msra.mxu0 0
        %2205 = vmatpush.bf16.msra.mxu0 0
        %2206 = vmatpush.bf16.msra.mxu0 0
        %2207 = vmatpush.bf16.msra.mxu0 0
        %2208 = vmatpush.bf16.msra.mxu0 0
        %2209 = vmatpush.bf16.msra.mxu0 %v2200
        %2210 = vmatmul.bf16.gmra.mxu0 %v2197
        %v2211 = vpop.f32.mrf.mxu0
        %v2212 = vadd.f32 %v2060, %v2211
        %v2213 = vpop.f32.mrf.mxu0
        %2214 = vdwg.mxu0
        %v2216 = vsel %vm1596, %v1689, 0
        %v2219 = vsel %vm1989, %v1705, 0
        %2221 = vmatpush.bf16.msra.mxu0 0
        %2222 = vmatpush.bf16.msra.mxu0 0
        %2223 = vmatpush.bf16.msra.mxu0 0
        %2224 = vmatpush.bf16.msra.mxu0 0
        %2225 = vmatpush.bf16.msra.mxu0 0
        %2226 = vmatpush.bf16.msra.mxu0 0
        %2227 = vmatpush.bf16.msra.mxu0 0
        %2228 = vmatpush.bf16.msra.mxu0 %v2219
        %2229 = vmatmul.bf16.gmra.mxu0 %v2216
        %v2230 = vpop.f32.mrf.mxu0
        %v2231 = vadd.f32 %v2079, %v2230
        %v2232 = vpop.f32.mrf.mxu0
        %2233 = vdwg.mxu0
        %v2235 = vsel %vm1596, %v1690, 0
        %v2238 = vsel %vm1989, %v1706, 0
        %2240 = vmatpush.bf16.msra.mxu0 0
        %2241 = vmatpush.bf16.msra.mxu0 0
        %2242 = vmatpush.bf16.msra.mxu0 0
        %2243 = vmatpush.bf16.msra.mxu0 0
        %2244 = vmatpush.bf16.msra.mxu0 0
        %2245 = vmatpush.bf16.msra.mxu0 0
        %2246 = vmatpush.bf16.msra.mxu0 0
        %2247 = vmatpush.bf16.msra.mxu0 %v2238
        %2248 = vmatmul.bf16.gmra.mxu0 %v2235
        %v2249 = vpop.f32.mrf.mxu0
        %v2250 = vadd.f32 %v2098, %v2249
        %v2251 = vpop.f32.mrf.mxu0
        %2252 = vdwg.mxu0
        %v2254 = vsel %vm1596, %v1691, 0
        %v2257 = vsel %vm1989, %v1707, 0
        %2259 = vmatpush.bf16.msra.mxu0 0
        %2260 = vmatpush.bf16.msra.mxu0 0
        %2261 = vmatpush.bf16.msra.mxu0 0
        %2262 = vmatpush.bf16.msra.mxu0 0
        %2263 = vmatpush.bf16.msra.mxu0 0
        %2264 = vmatpush.bf16.msra.mxu0 0
        %2265 = vmatpush.bf16.msra.mxu0 0
        %2266 = vmatpush.bf16.msra.mxu0 %v2257
        %2267 = vmatmul.bf16.gmra.mxu0 %v2254
        %v2268 = vpop.f32.mrf.mxu0
        %v2269 = vadd.f32 %v2117, %v2268
        %v2270 = vpop.f32.mrf.mxu0
        %2271 = vdwg.mxu0
        %v2273 = vsel %vm1596, %v1692, 0
        %v2276 = vsel %vm1989, %v1708, 0
        %2278 = vmatpush.bf16.msra.mxu0 0
        %2279 = vmatpush.bf16.msra.mxu0 0
        %2280 = vmatpush.bf16.msra.mxu0 0
        %2281 = vmatpush.bf16.msra.mxu0 0
        %2282 = vmatpush.bf16.msra.mxu0 0
        %2283 = vmatpush.bf16.msra.mxu0 0
        %2284 = vmatpush.bf16.msra.mxu0 0
        %2285 = vmatpush.bf16.msra.mxu0 %v2276
        %2286 = vmatmul.bf16.gmra.mxu0 %v2273
        %v2287 = vpop.f32.mrf.mxu0
        %v2288 = vadd.f32 %v2136, %v2287
        %v2289 = vpop.f32.mrf.mxu0
        %2290 = vdwg.mxu0
        %vm2291 = vcmp.ge.s32.totalorder %v1395, 24
        %vm2292 = vcmp.lt.s32.totalorder %v1395, 36
        %vm2293 = vmand %vm2291, %vm2292
        %v2294 = vsel %vm2293, 1, 0
        %v2295 = vcvt.s32.f32 %v2294
        %v2296 = vmul.f32 %v1259, %v2295
        %v2297 = vmul.f32 %v1261, %v2295
        %v2298 = vmul.f32 %v1264, %v2295
        %v2299 = vmul.f32 %v1266, %v2295
        %v2300 = vmul.f32 %v1269, %v2295
        %v2301 = vmul.f32 %v1271, %v2295
        %v2302 = vmul.f32 %v1274, %v2295
        %v2303 = vmul.f32 %v1276, %v2295
        %v2304 = vpack.c.bf16 %v2296, %v2296
        %v2305 = vpack.c.bf16 %v2297, %v2297
        %v2306 = vpack.c.bf16 %v2298, %v2298
        %v2307 = vpack.c.bf16 %v2299, %v2299
        %v2308 = vpack.c.bf16 %v2300, %v2300
        %v2309 = vpack.c.bf16 %v2301, %v2301
        %v2310 = vpack.c.bf16 %v2302, %v2302
        %v2311 = vpack.c.bf16 %v2303, %v2303
        %v2313 = vsel %vm999, %v2304, 0
        %2315 = vmatpush.bf16.xpose.msra.mxu0 0
        %2316 = vmatpush.bf16.xpose.msra.mxu0 0
        %2317 = vmatpush.bf16.xpose.msra.mxu0 0
        %2318 = vmatpush.bf16.xpose.msra.mxu0 0
        %2319 = vmatpush.bf16.xpose.msra.mxu0 0
        %2320 = vmatpush.bf16.xpose.msra.mxu0 0
        %2321 = vmatpush.bf16.xpose.msra.mxu0 0
        %2322 = vmatpush.bf16.xpose.msra.mxu0 %v1430
        %2323 = vmatmul.bf16.gmra.mxu0 %v2313
        %v2324 = vpop.f32.mrf.mxu0
        %v2325 = vadd.f32 0.0, %v2324
        %v2326 = vpop.f32.mrf.mxu0
        %2327 = vdwg.mxu0
        %v2329 = vsel %vm999, %v2305, 0
        %2331 = vmatpush.bf16.xpose.msra.mxu0 0
        %2332 = vmatpush.bf16.xpose.msra.mxu0 0
        %2333 = vmatpush.bf16.xpose.msra.mxu0 0
        %2334 = vmatpush.bf16.xpose.msra.mxu0 0
        %2335 = vmatpush.bf16.xpose.msra.mxu0 0
        %2336 = vmatpush.bf16.xpose.msra.mxu0 0
        %2337 = vmatpush.bf16.xpose.msra.mxu0 0
        %2338 = vmatpush.bf16.xpose.msra.mxu0 %v1449
        %2339 = vmatmul.bf16.gmra.mxu0 %v2329
        %v2340 = vpop.f32.mrf.mxu0
        %v2341 = vadd.f32 0.0, %v2340
        %v2342 = vpop.f32.mrf.mxu0
        %2343 = vdwg.mxu0
        %v2345 = vsel %vm999, %v2306, 0
        %2347 = vmatpush.bf16.xpose.msra.mxu0 0
        %2348 = vmatpush.bf16.xpose.msra.mxu0 0
        %2349 = vmatpush.bf16.xpose.msra.mxu0 0
        %2350 = vmatpush.bf16.xpose.msra.mxu0 0
        %2351 = vmatpush.bf16.xpose.msra.mxu0 0
        %2352 = vmatpush.bf16.xpose.msra.mxu0 0
        %2353 = vmatpush.bf16.xpose.msra.mxu0 0
        %2354 = vmatpush.bf16.xpose.msra.mxu0 %v1468
        %2355 = vmatmul.bf16.gmra.mxu0 %v2345
        %v2356 = vpop.f32.mrf.mxu0
        %v2357 = vadd.f32 0.0, %v2356
        %v2358 = vpop.f32.mrf.mxu0
        %2359 = vdwg.mxu0
        %v2361 = vsel %vm999, %v2307, 0
        %2363 = vmatpush.bf16.xpose.msra.mxu0 0
        %2364 = vmatpush.bf16.xpose.msra.mxu0 0
        %2365 = vmatpush.bf16.xpose.msra.mxu0 0
        %2366 = vmatpush.bf16.xpose.msra.mxu0 0
        %2367 = vmatpush.bf16.xpose.msra.mxu0 0
        %2368 = vmatpush.bf16.xpose.msra.mxu0 0
        %2369 = vmatpush.bf16.xpose.msra.mxu0 0
        %2370 = vmatpush.bf16.xpose.msra.mxu0 %v1487
        %2371 = vmatmul.bf16.gmra.mxu0 %v2361
        %v2372 = vpop.f32.mrf.mxu0
        %v2373 = vadd.f32 0.0, %v2372
        %v2374 = vpop.f32.mrf.mxu0
        %2375 = vdwg.mxu0
        %v2377 = vsel %vm999, %v2308, 0
        %2379 = vmatpush.bf16.xpose.msra.mxu0 0
        %2380 = vmatpush.bf16.xpose.msra.mxu0 0
        %2381 = vmatpush.bf16.xpose.msra.mxu0 0
        %2382 = vmatpush.bf16.xpose.msra.mxu0 0
        %2383 = vmatpush.bf16.xpose.msra.mxu0 0
        %2384 = vmatpush.bf16.xpose.msra.mxu0 0
        %2385 = vmatpush.bf16.xpose.msra.mxu0 0
        %2386 = vmatpush.bf16.xpose.msra.mxu0 %v1506
        %2387 = vmatmul.bf16.gmra.mxu0 %v2377
        %v2388 = vpop.f32.mrf.mxu0
        %v2389 = vadd.f32 0.0, %v2388
        %v2390 = vpop.f32.mrf.mxu0
        %2391 = vdwg.mxu0
        %v2393 = vsel %vm999, %v2309, 0
        %2395 = vmatpush.bf16.xpose.msra.mxu0 0
        %2396 = vmatpush.bf16.xpose.msra.mxu0 0
        %2397 = vmatpush.bf16.xpose.msra.mxu0 0
        %2398 = vmatpush.bf16.xpose.msra.mxu0 0
        %2399 = vmatpush.bf16.xpose.msra.mxu0 0
        %2400 = vmatpush.bf16.xpose.msra.mxu0 0
        %2401 = vmatpush.bf16.xpose.msra.mxu0 0
        %2402 = vmatpush.bf16.xpose.msra.mxu0 %v1525
        %2403 = vmatmul.bf16.gmra.mxu0 %v2393
        %v2404 = vpop.f32.mrf.mxu0
        %v2405 = vadd.f32 0.0, %v2404
        %v2406 = vpop.f32.mrf.mxu0
        %2407 = vdwg.mxu0
        %v2409 = vsel %vm999, %v2310, 0
        %2411 = vmatpush.bf16.xpose.msra.mxu0 0
        %2412 = vmatpush.bf16.xpose.msra.mxu0 0
        %2413 = vmatpush.bf16.xpose.msra.mxu0 0
        %2414 = vmatpush.bf16.xpose.msra.mxu0 0
        %2415 = vmatpush.bf16.xpose.msra.mxu0 0
        %2416 = vmatpush.bf16.xpose.msra.mxu0 0
        %2417 = vmatpush.bf16.xpose.msra.mxu0 0
        %2418 = vmatpush.bf16.xpose.msra.mxu0 %v1544
        %2419 = vmatmul.bf16.gmra.mxu0 %v2409
        %v2420 = vpop.f32.mrf.mxu0
        %v2421 = vadd.f32 0.0, %v2420
        %v2422 = vpop.f32.mrf.mxu0
        %2423 = vdwg.mxu0
        %v2425 = vsel %vm999, %v2311, 0
        %2427 = vmatpush.bf16.xpose.msra.mxu0 0
        %2428 = vmatpush.bf16.xpose.msra.mxu0 0
        %2429 = vmatpush.bf16.xpose.msra.mxu0 0
        %2430 = vmatpush.bf16.xpose.msra.mxu0 0
        %2431 = vmatpush.bf16.xpose.msra.mxu0 0
        %2432 = vmatpush.bf16.xpose.msra.mxu0 0
        %2433 = vmatpush.bf16.xpose.msra.mxu0 0
        %2434 = vmatpush.bf16.xpose.msra.mxu0 %v1563
        %2435 = vmatmul.bf16.gmra.mxu0 %v2425
        %v2436 = vpop.f32.mrf.mxu0
        %v2437 = vadd.f32 0.0, %v2436
        %v2438 = vpop.f32.mrf.mxu0
        %2439 = vdwg.mxu0
        %v2440 = vmul.f32 %v2325, 0.28867513
        %v2441 = vmul.f32 %v2341, 0.28867513
        %v2442 = vmul.f32 %v2357, 0.28867513
        %v2443 = vmul.f32 %v2373, 0.28867513
        %v2444 = vmul.f32 %v2389, 0.28867513
        %v2445 = vmul.f32 %v2405, 0.28867513
        %v2446 = vmul.f32 %v2421, 0.28867513
        %v2447 = vmul.f32 %v2437, 0.28867513
        %v2448 = vsel %vm1587, %v2440, -1e+30
        %v2449 = vsel %vm1587, %v2441, -1e+30
        %v2450 = vsel %vm1587, %v2442, -1e+30
        %v2451 = vsel %vm1587, %v2443, -1e+30
        %v2452 = vsel %vm1587, %v2444, -1e+30
        %v2453 = vsel %vm1587, %v2445, -1e+30
        %v2454 = vsel %vm1587, %v2446, -1e+30
        %v2455 = vsel %vm1587, %v2447, -1e+30
        %v2456 = vsel %vm1596, %v2448, -inf
        %2457 = vmax.xlane.f32.xlu0 %v2456
        %v2458 = vpop.xlane.xlu0 %2457
        %v2459 = vsel %vm1596, %v2449, -inf
        %2460 = vmax.xlane.f32.xlu0 %v2459
        %v2461 = vpop.xlane.xlu0 %2460
        %v2462 = vsel %vm1596, %v2450, -inf
        %2463 = vmax.xlane.f32.xlu0 %v2462
        %v2464 = vpop.xlane.xlu0 %2463
        %v2465 = vsel %vm1596, %v2451, -inf
        %2466 = vmax.xlane.f32.xlu0 %v2465
        %v2467 = vpop.xlane.xlu0 %2466
        %v2468 = vsel %vm1596, %v2452, -inf
        %2469 = vmax.xlane.f32.xlu0 %v2468
        %v2470 = vpop.xlane.xlu0 %2469
        %v2471 = vsel %vm1596, %v2453, -inf
        %2472 = vmax.xlane.f32.xlu0 %v2471
        %v2473 = vpop.xlane.xlu0 %2472
        %v2474 = vsel %vm1596, %v2454, -inf
        %2475 = vmax.xlane.f32.xlu0 %v2474
        %v2476 = vpop.xlane.xlu0 %2475
        %v2477 = vsel %vm1596, %v2455, -inf
        %2478 = vmax.xlane.f32.xlu0 %v2477
        %v2479 = vpop.xlane.xlu0 %2478
        %v2480 = vsub.f32 %v2448, %v2458
        %v2481 = vsub.f32 %v2449, %v2461
        %v2482 = vsub.f32 %v2450, %v2464
        %v2483 = vsub.f32 %v2451, %v2467
        %v2484 = vsub.f32 %v2452, %v2470
        %v2485 = vsub.f32 %v2453, %v2473
        %v2486 = vsub.f32 %v2454, %v2476
        %v2487 = vsub.f32 %v2455, %v2479
        %v2488 = vmul.f32 %v2480, 1.442695
        %v2489 = vpow.pop %v2488
        %v2490 = vmul.f32 %v2481, 1.442695
        %v2491 = vpow.pop %v2490
        %v2492 = vmul.f32 %v2482, 1.442695
        %v2493 = vpow.pop %v2492
        %v2494 = vmul.f32 %v2483, 1.442695
        %v2495 = vpow.pop %v2494
        %v2496 = vmul.f32 %v2484, 1.442695
        %v2497 = vpow.pop %v2496
        %v2498 = vmul.f32 %v2485, 1.442695
        %v2499 = vpow.pop %v2498
        %v2500 = vmul.f32 %v2486, 1.442695
        %v2501 = vpow.pop %v2500
        %v2502 = vmul.f32 %v2487, 1.442695
        %v2503 = vpow.pop %v2502
        %v2504 = vsel %vm1596, %v2489, 0.0
        %2505 = vadd.xlane.f32.xlu0 %v2504
        %v2506 = vpop.xlane.xlu0 %2505
        %v2507 = vsel %vm1596, %v2491, 0.0
        %2508 = vadd.xlane.f32.xlu0 %v2507
        %v2509 = vpop.xlane.xlu0 %2508
        %v2510 = vsel %vm1596, %v2493, 0.0
        %2511 = vadd.xlane.f32.xlu0 %v2510
        %v2512 = vpop.xlane.xlu0 %2511
        %v2513 = vsel %vm1596, %v2495, 0.0
        %2514 = vadd.xlane.f32.xlu0 %v2513
        %v2515 = vpop.xlane.xlu0 %2514
        %v2516 = vsel %vm1596, %v2497, 0.0
        %2517 = vadd.xlane.f32.xlu0 %v2516
        %v2518 = vpop.xlane.xlu0 %2517
        %v2519 = vsel %vm1596, %v2499, 0.0
        %2520 = vadd.xlane.f32.xlu0 %v2519
        %v2521 = vpop.xlane.xlu0 %2520
        %v2522 = vsel %vm1596, %v2501, 0.0
        %2523 = vadd.xlane.f32.xlu0 %v2522
        %v2524 = vpop.xlane.xlu0 %2523
        %v2525 = vsel %vm1596, %v2503, 0.0
        %2526 = vadd.xlane.f32.xlu0 %v2525
        %v2527 = vpop.xlane.xlu0 %2526
        %v2528 = vrcp.pop %v2506
        %v2529 = vrcp.pop %v2509
        %v2530 = vrcp.pop %v2512
        %v2531 = vrcp.pop %v2515
        %v2532 = vrcp.pop %v2518
        %v2533 = vrcp.pop %v2521
        %v2534 = vrcp.pop %v2524
        %v2535 = vrcp.pop %v2527
        %v2536 = vmul.f32 %v2489, %v2528
        %v2537 = vmul.f32 %v2491, %v2529
        %v2538 = vmul.f32 %v2493, %v2530
        %v2539 = vmul.f32 %v2495, %v2531
        %v2540 = vmul.f32 %v2497, %v2532
        %v2541 = vmul.f32 %v2499, %v2533
        %v2542 = vmul.f32 %v2501, %v2534
        %v2543 = vmul.f32 %v2503, %v2535
        %v2544 = vpack.c.bf16 %v2536, %v2536
        %v2545 = vpack.c.bf16 %v2537, %v2537
        %v2546 = vpack.c.bf16 %v2538, %v2538
        %v2547 = vpack.c.bf16 %v2539, %v2539
        %v2548 = vpack.c.bf16 %v2540, %v2540
        %v2549 = vpack.c.bf16 %v2541, %v2541
        %v2550 = vpack.c.bf16 %v2542, %v2542
        %v2551 = vpack.c.bf16 %v2543, %v2543
        %v2552 = vmul.f32 %v1373, %v2295
        %v2553 = vmul.f32 %v1375, %v2295
        %v2554 = vmul.f32 %v1378, %v2295
        %v2555 = vmul.f32 %v1380, %v2295
        %v2556 = vmul.f32 %v1383, %v2295
        %v2557 = vmul.f32 %v1385, %v2295
        %v2558 = vmul.f32 %v1388, %v2295
        %v2559 = vmul.f32 %v1390, %v2295
        %v2560 = vpack.c.bf16 %v2552, %v2552
        %v2561 = vpack.c.bf16 %v2553, %v2553
        %v2562 = vpack.c.bf16 %v2554, %v2554
        %v2563 = vpack.c.bf16 %v2555, %v2555
        %v2564 = vpack.c.bf16 %v2556, %v2556
        %v2565 = vpack.c.bf16 %v2557, %v2557
        %v2566 = vpack.c.bf16 %v2558, %v2558
        %v2567 = vpack.c.bf16 %v2559, %v2559
        %v2569 = vsel %vm1596, %v2544, 0
        %v2572 = vsel %vm1989, %v2560, 0
        %2574 = vmatpush.bf16.msra.mxu0 0
        %2575 = vmatpush.bf16.msra.mxu0 0
        %2576 = vmatpush.bf16.msra.mxu0 0
        %2577 = vmatpush.bf16.msra.mxu0 0
        %2578 = vmatpush.bf16.msra.mxu0 0
        %2579 = vmatpush.bf16.msra.mxu0 0
        %2580 = vmatpush.bf16.msra.mxu0 0
        %2581 = vmatpush.bf16.msra.mxu0 %v2572
        %2582 = vmatmul.bf16.gmra.mxu0 %v2569
        %v2583 = vpop.f32.mrf.mxu0
        %v2584 = vadd.f32 0.0, %v2583
        %v2585 = vpop.f32.mrf.mxu0
        %2586 = vdwg.mxu0
        %v2588 = vsel %vm1596, %v2545, 0
        %v2591 = vsel %vm1989, %v2561, 0
        %2593 = vmatpush.bf16.msra.mxu0 0
        %2594 = vmatpush.bf16.msra.mxu0 0
        %2595 = vmatpush.bf16.msra.mxu0 0
        %2596 = vmatpush.bf16.msra.mxu0 0
        %2597 = vmatpush.bf16.msra.mxu0 0
        %2598 = vmatpush.bf16.msra.mxu0 0
        %2599 = vmatpush.bf16.msra.mxu0 0
        %2600 = vmatpush.bf16.msra.mxu0 %v2591
        %2601 = vmatmul.bf16.gmra.mxu0 %v2588
        %v2602 = vpop.f32.mrf.mxu0
        %v2603 = vadd.f32 0.0, %v2602
        %v2604 = vpop.f32.mrf.mxu0
        %2605 = vdwg.mxu0
        %v2607 = vsel %vm1596, %v2546, 0
        %v2610 = vsel %vm1989, %v2562, 0
        %2612 = vmatpush.bf16.msra.mxu0 0
        %2613 = vmatpush.bf16.msra.mxu0 0
        %2614 = vmatpush.bf16.msra.mxu0 0
        %2615 = vmatpush.bf16.msra.mxu0 0
        %2616 = vmatpush.bf16.msra.mxu0 0
        %2617 = vmatpush.bf16.msra.mxu0 0
        %2618 = vmatpush.bf16.msra.mxu0 0
        %2619 = vmatpush.bf16.msra.mxu0 %v2610
        %2620 = vmatmul.bf16.gmra.mxu0 %v2607
        %v2621 = vpop.f32.mrf.mxu0
        %v2622 = vadd.f32 0.0, %v2621
        %v2623 = vpop.f32.mrf.mxu0
        %2624 = vdwg.mxu0
        %v2626 = vsel %vm1596, %v2547, 0
        %v2629 = vsel %vm1989, %v2563, 0
        %2631 = vmatpush.bf16.msra.mxu0 0
        %2632 = vmatpush.bf16.msra.mxu0 0
        %2633 = vmatpush.bf16.msra.mxu0 0
        %2634 = vmatpush.bf16.msra.mxu0 0
        %2635 = vmatpush.bf16.msra.mxu0 0
        %2636 = vmatpush.bf16.msra.mxu0 0
        %2637 = vmatpush.bf16.msra.mxu0 0
        %2638 = vmatpush.bf16.msra.mxu0 %v2629
        %2639 = vmatmul.bf16.gmra.mxu0 %v2626
        %v2640 = vpop.f32.mrf.mxu0
        %v2641 = vadd.f32 0.0, %v2640
        %v2642 = vpop.f32.mrf.mxu0
        %2643 = vdwg.mxu0
        %v2645 = vsel %vm1596, %v2548, 0
        %v2648 = vsel %vm1989, %v2564, 0
        %2650 = vmatpush.bf16.msra.mxu0 0
        %2651 = vmatpush.bf16.msra.mxu0 0
        %2652 = vmatpush.bf16.msra.mxu0 0
        %2653 = vmatpush.bf16.msra.mxu0 0
        %2654 = vmatpush.bf16.msra.mxu0 0
        %2655 = vmatpush.bf16.msra.mxu0 0
        %2656 = vmatpush.bf16.msra.mxu0 0
        %2657 = vmatpush.bf16.msra.mxu0 %v2648
        %2658 = vmatmul.bf16.gmra.mxu0 %v2645
        %v2659 = vpop.f32.mrf.mxu0
        %v2660 = vadd.f32 0.0, %v2659
        %v2661 = vpop.f32.mrf.mxu0
        %2662 = vdwg.mxu0
        %v2664 = vsel %vm1596, %v2549, 0
        %v2667 = vsel %vm1989, %v2565, 0
        %2669 = vmatpush.bf16.msra.mxu0 0
        %2670 = vmatpush.bf16.msra.mxu0 0
        %2671 = vmatpush.bf16.msra.mxu0 0
        %2672 = vmatpush.bf16.msra.mxu0 0
        %2673 = vmatpush.bf16.msra.mxu0 0
        %2674 = vmatpush.bf16.msra.mxu0 0
        %2675 = vmatpush.bf16.msra.mxu0 0
        %2676 = vmatpush.bf16.msra.mxu0 %v2667
        %2677 = vmatmul.bf16.gmra.mxu0 %v2664
        %v2678 = vpop.f32.mrf.mxu0
        %v2679 = vadd.f32 0.0, %v2678
        %v2680 = vpop.f32.mrf.mxu0
        %2681 = vdwg.mxu0
        %v2683 = vsel %vm1596, %v2550, 0
        %v2686 = vsel %vm1989, %v2566, 0
        %2688 = vmatpush.bf16.msra.mxu0 0
        %2689 = vmatpush.bf16.msra.mxu0 0
        %2690 = vmatpush.bf16.msra.mxu0 0
        %2691 = vmatpush.bf16.msra.mxu0 0
        %2692 = vmatpush.bf16.msra.mxu0 0
        %2693 = vmatpush.bf16.msra.mxu0 0
        %2694 = vmatpush.bf16.msra.mxu0 0
        %2695 = vmatpush.bf16.msra.mxu0 %v2686
        %2696 = vmatmul.bf16.gmra.mxu0 %v2683
        %v2697 = vpop.f32.mrf.mxu0
        %v2698 = vadd.f32 0.0, %v2697
        %v2699 = vpop.f32.mrf.mxu0
        %2700 = vdwg.mxu0
        %v2702 = vsel %vm1596, %v2551, 0
        %v2705 = vsel %vm1989, %v2567, 0
        %2707 = vmatpush.bf16.msra.mxu0 0
        %2708 = vmatpush.bf16.msra.mxu0 0
        %2709 = vmatpush.bf16.msra.mxu0 0
        %2710 = vmatpush.bf16.msra.mxu0 0
        %2711 = vmatpush.bf16.msra.mxu0 0
        %2712 = vmatpush.bf16.msra.mxu0 0
        %2713 = vmatpush.bf16.msra.mxu0 0
        %2714 = vmatpush.bf16.msra.mxu0 %v2705
        %2715 = vmatmul.bf16.gmra.mxu0 %v2702
        %v2716 = vpop.f32.mrf.mxu0
        %v2717 = vadd.f32 0.0, %v2716
        %v2718 = vpop.f32.mrf.mxu0
        %2719 = vdwg.mxu0
        %v2720 = vadd.f32 %v2155, %v2584
        %v2721 = vadd.f32 %v2174, %v2603
        %v2722 = vadd.f32 %v2193, %v2622
        %v2723 = vadd.f32 %v2212, %v2641
        %v2724 = vadd.f32 %v2231, %v2660
        %v2725 = vadd.f32 %v2250, %v2679
        %v2726 = vadd.f32 %v2269, %v2698
        %v2727 = vadd.f32 %v2288, %v2717
        %vm2728 = vcmp.ge.s32.totalorder %v1395, 36
        %vm2729 = vcmp.lt.s32.totalorder %v1395, 48
        %vm2730 = vmand %vm2728, %vm2729
        %v2731 = vsel %vm2730, 1, 0
        %v2732 = vcvt.s32.f32 %v2731
        %v2733 = vmul.f32 %v1259, %v2732
        %v2734 = vmul.f32 %v1261, %v2732
        %v2735 = vmul.f32 %v1264, %v2732
        %v2736 = vmul.f32 %v1266, %v2732
        %v2737 = vmul.f32 %v1269, %v2732
        %v2738 = vmul.f32 %v1271, %v2732
        %v2739 = vmul.f32 %v1274, %v2732
        %v2740 = vmul.f32 %v1276, %v2732
        %v2741 = vpack.c.bf16 %v2733, %v2733
        %v2742 = vpack.c.bf16 %v2734, %v2734
        %v2743 = vpack.c.bf16 %v2735, %v2735
        %v2744 = vpack.c.bf16 %v2736, %v2736
        %v2745 = vpack.c.bf16 %v2737, %v2737
        %v2746 = vpack.c.bf16 %v2738, %v2738
        %v2747 = vpack.c.bf16 %v2739, %v2739
        %v2748 = vpack.c.bf16 %v2740, %v2740
        %v2750 = vsel %vm999, %v2741, 0
        %2752 = vmatpush.bf16.xpose.msra.mxu0 0
        %2753 = vmatpush.bf16.xpose.msra.mxu0 0
        %2754 = vmatpush.bf16.xpose.msra.mxu0 0
        %2755 = vmatpush.bf16.xpose.msra.mxu0 0
        %2756 = vmatpush.bf16.xpose.msra.mxu0 0
        %2757 = vmatpush.bf16.xpose.msra.mxu0 0
        %2758 = vmatpush.bf16.xpose.msra.mxu0 0
        %2759 = vmatpush.bf16.xpose.msra.mxu0 %v1430
        %2760 = vmatmul.bf16.gmra.mxu0 %v2750
        %v2761 = vpop.f32.mrf.mxu0
        %v2762 = vadd.f32 0.0, %v2761
        %v2763 = vpop.f32.mrf.mxu0
        %2764 = vdwg.mxu0
        %v2766 = vsel %vm999, %v2742, 0
        %2768 = vmatpush.bf16.xpose.msra.mxu0 0
        %2769 = vmatpush.bf16.xpose.msra.mxu0 0
        %2770 = vmatpush.bf16.xpose.msra.mxu0 0
        %2771 = vmatpush.bf16.xpose.msra.mxu0 0
        %2772 = vmatpush.bf16.xpose.msra.mxu0 0
        %2773 = vmatpush.bf16.xpose.msra.mxu0 0
        %2774 = vmatpush.bf16.xpose.msra.mxu0 0
        %2775 = vmatpush.bf16.xpose.msra.mxu0 %v1449
        %2776 = vmatmul.bf16.gmra.mxu0 %v2766
        %v2777 = vpop.f32.mrf.mxu0
        %v2778 = vadd.f32 0.0, %v2777
        %v2779 = vpop.f32.mrf.mxu0
        %2780 = vdwg.mxu0
        %v2782 = vsel %vm999, %v2743, 0
        %2784 = vmatpush.bf16.xpose.msra.mxu0 0
        %2785 = vmatpush.bf16.xpose.msra.mxu0 0
        %2786 = vmatpush.bf16.xpose.msra.mxu0 0
        %2787 = vmatpush.bf16.xpose.msra.mxu0 0
        %2788 = vmatpush.bf16.xpose.msra.mxu0 0
        %2789 = vmatpush.bf16.xpose.msra.mxu0 0
        %2790 = vmatpush.bf16.xpose.msra.mxu0 0
        %2791 = vmatpush.bf16.xpose.msra.mxu0 %v1468
        %2792 = vmatmul.bf16.gmra.mxu0 %v2782
        %v2793 = vpop.f32.mrf.mxu0
        %v2794 = vadd.f32 0.0, %v2793
        %v2795 = vpop.f32.mrf.mxu0
        %2796 = vdwg.mxu0
        %v2798 = vsel %vm999, %v2744, 0
        %2800 = vmatpush.bf16.xpose.msra.mxu0 0
        %2801 = vmatpush.bf16.xpose.msra.mxu0 0
        %2802 = vmatpush.bf16.xpose.msra.mxu0 0
        %2803 = vmatpush.bf16.xpose.msra.mxu0 0
        %2804 = vmatpush.bf16.xpose.msra.mxu0 0
        %2805 = vmatpush.bf16.xpose.msra.mxu0 0
        %2806 = vmatpush.bf16.xpose.msra.mxu0 0
        %2807 = vmatpush.bf16.xpose.msra.mxu0 %v1487
        %2808 = vmatmul.bf16.gmra.mxu0 %v2798
        %v2809 = vpop.f32.mrf.mxu0
        %v2810 = vadd.f32 0.0, %v2809
        %v2811 = vpop.f32.mrf.mxu0
        %2812 = vdwg.mxu0
        %v2814 = vsel %vm999, %v2745, 0
        %2816 = vmatpush.bf16.xpose.msra.mxu0 0
        %2817 = vmatpush.bf16.xpose.msra.mxu0 0
        %2818 = vmatpush.bf16.xpose.msra.mxu0 0
        %2819 = vmatpush.bf16.xpose.msra.mxu0 0
        %2820 = vmatpush.bf16.xpose.msra.mxu0 0
        %2821 = vmatpush.bf16.xpose.msra.mxu0 0
        %2822 = vmatpush.bf16.xpose.msra.mxu0 0
        %2823 = vmatpush.bf16.xpose.msra.mxu0 %v1506
        %2824 = vmatmul.bf16.gmra.mxu0 %v2814
        %v2825 = vpop.f32.mrf.mxu0
        %v2826 = vadd.f32 0.0, %v2825
        %v2827 = vpop.f32.mrf.mxu0
        %2828 = vdwg.mxu0
        %v2830 = vsel %vm999, %v2746, 0
        %2832 = vmatpush.bf16.xpose.msra.mxu0 0
        %2833 = vmatpush.bf16.xpose.msra.mxu0 0
        %2834 = vmatpush.bf16.xpose.msra.mxu0 0
        %2835 = vmatpush.bf16.xpose.msra.mxu0 0
        %2836 = vmatpush.bf16.xpose.msra.mxu0 0
        %2837 = vmatpush.bf16.xpose.msra.mxu0 0
        %2838 = vmatpush.bf16.xpose.msra.mxu0 0
        %2839 = vmatpush.bf16.xpose.msra.mxu0 %v1525
        %2840 = vmatmul.bf16.gmra.mxu0 %v2830
        %v2841 = vpop.f32.mrf.mxu0
        %v2842 = vadd.f32 0.0, %v2841
        %v2843 = vpop.f32.mrf.mxu0
        %2844 = vdwg.mxu0
        %v2846 = vsel %vm999, %v2747, 0
        %2848 = vmatpush.bf16.xpose.msra.mxu0 0
        %2849 = vmatpush.bf16.xpose.msra.mxu0 0
        %2850 = vmatpush.bf16.xpose.msra.mxu0 0
        %2851 = vmatpush.bf16.xpose.msra.mxu0 0
        %2852 = vmatpush.bf16.xpose.msra.mxu0 0
        %2853 = vmatpush.bf16.xpose.msra.mxu0 0
        %2854 = vmatpush.bf16.xpose.msra.mxu0 0
        %2855 = vmatpush.bf16.xpose.msra.mxu0 %v1544
        %2856 = vmatmul.bf16.gmra.mxu0 %v2846
        %v2857 = vpop.f32.mrf.mxu0
        %v2858 = vadd.f32 0.0, %v2857
        %v2859 = vpop.f32.mrf.mxu0
        %2860 = vdwg.mxu0
        %v2862 = vsel %vm999, %v2748, 0
        %2864 = vmatpush.bf16.xpose.msra.mxu0 0
        %2865 = vmatpush.bf16.xpose.msra.mxu0 0
        %2866 = vmatpush.bf16.xpose.msra.mxu0 0
        %2867 = vmatpush.bf16.xpose.msra.mxu0 0
        %2868 = vmatpush.bf16.xpose.msra.mxu0 0
        %2869 = vmatpush.bf16.xpose.msra.mxu0 0
        %2870 = vmatpush.bf16.xpose.msra.mxu0 0
        %2871 = vmatpush.bf16.xpose.msra.mxu0 %v1563
        %2872 = vmatmul.bf16.gmra.mxu0 %v2862
        %v2873 = vpop.f32.mrf.mxu0
        %v2874 = vadd.f32 0.0, %v2873
        %v2875 = vpop.f32.mrf.mxu0
        %2876 = vdwg.mxu0
        %v2877 = vmul.f32 %v2762, 0.28867513
        %v2878 = vmul.f32 %v2778, 0.28867513
        %v2879 = vmul.f32 %v2794, 0.28867513
        %v2880 = vmul.f32 %v2810, 0.28867513
        %v2881 = vmul.f32 %v2826, 0.28867513
        %v2882 = vmul.f32 %v2842, 0.28867513
        %v2883 = vmul.f32 %v2858, 0.28867513
        %v2884 = vmul.f32 %v2874, 0.28867513
        %v2885 = vsel %vm1587, %v2877, -1e+30
        %v2886 = vsel %vm1587, %v2878, -1e+30
        %v2887 = vsel %vm1587, %v2879, -1e+30
        %v2888 = vsel %vm1587, %v2880, -1e+30
        %v2889 = vsel %vm1587, %v2881, -1e+30
        %v2890 = vsel %vm1587, %v2882, -1e+30
        %v2891 = vsel %vm1587, %v2883, -1e+30
        %v2892 = vsel %vm1587, %v2884, -1e+30
        %v2893 = vsel %vm1596, %v2885, -inf
        %2894 = vmax.xlane.f32.xlu0 %v2893
        %v2895 = vpop.xlane.xlu0 %2894
        %v2896 = vsel %vm1596, %v2886, -inf
        %2897 = vmax.xlane.f32.xlu0 %v2896
        %v2898 = vpop.xlane.xlu0 %2897
        %v2899 = vsel %vm1596, %v2887, -inf
        %2900 = vmax.xlane.f32.xlu0 %v2899
        %v2901 = vpop.xlane.xlu0 %2900
        %v2902 = vsel %vm1596, %v2888, -inf
        %2903 = vmax.xlane.f32.xlu0 %v2902
        %v2904 = vpop.xlane.xlu0 %2903
        %v2905 = vsel %vm1596, %v2889, -inf
        %2906 = vmax.xlane.f32.xlu0 %v2905
        %v2907 = vpop.xlane.xlu0 %2906
        %v2908 = vsel %vm1596, %v2890, -inf
        %2909 = vmax.xlane.f32.xlu0 %v2908
        %v2910 = vpop.xlane.xlu0 %2909
        %v2911 = vsel %vm1596, %v2891, -inf
        %2912 = vmax.xlane.f32.xlu0 %v2911
        %v2913 = vpop.xlane.xlu0 %2912
        %v2914 = vsel %vm1596, %v2892, -inf
        %2915 = vmax.xlane.f32.xlu0 %v2914
        %v2916 = vpop.xlane.xlu0 %2915
        %v2917 = vsub.f32 %v2885, %v2895
        %v2918 = vsub.f32 %v2886, %v2898
        %v2919 = vsub.f32 %v2887, %v2901
        %v2920 = vsub.f32 %v2888, %v2904
        %v2921 = vsub.f32 %v2889, %v2907
        %v2922 = vsub.f32 %v2890, %v2910
        %v2923 = vsub.f32 %v2891, %v2913
        %v2924 = vsub.f32 %v2892, %v2916
        %v2925 = vmul.f32 %v2917, 1.442695
        %v2926 = vpow.pop %v2925
        %v2927 = vmul.f32 %v2918, 1.442695
        %v2928 = vpow.pop %v2927
        %v2929 = vmul.f32 %v2919, 1.442695
        %v2930 = vpow.pop %v2929
        %v2931 = vmul.f32 %v2920, 1.442695
        %v2932 = vpow.pop %v2931
        %v2933 = vmul.f32 %v2921, 1.442695
        %v2934 = vpow.pop %v2933
        %v2935 = vmul.f32 %v2922, 1.442695
        %v2936 = vpow.pop %v2935
        %v2937 = vmul.f32 %v2923, 1.442695
        %v2938 = vpow.pop %v2937
        %v2939 = vmul.f32 %v2924, 1.442695
        %v2940 = vpow.pop %v2939
        %v2941 = vsel %vm1596, %v2926, 0.0
        %2942 = vadd.xlane.f32.xlu0 %v2941
        %v2943 = vpop.xlane.xlu0 %2942
        %v2944 = vsel %vm1596, %v2928, 0.0
        %2945 = vadd.xlane.f32.xlu0 %v2944
        %v2946 = vpop.xlane.xlu0 %2945
        %v2947 = vsel %vm1596, %v2930, 0.0
        %2948 = vadd.xlane.f32.xlu0 %v2947
        %v2949 = vpop.xlane.xlu0 %2948
        %v2950 = vsel %vm1596, %v2932, 0.0
        %2951 = vadd.xlane.f32.xlu0 %v2950
        %v2952 = vpop.xlane.xlu0 %2951
        %v2953 = vsel %vm1596, %v2934, 0.0
        %2954 = vadd.xlane.f32.xlu0 %v2953
        %v2955 = vpop.xlane.xlu0 %2954
        %v2956 = vsel %vm1596, %v2936, 0.0
        %2957 = vadd.xlane.f32.xlu0 %v2956
        %v2958 = vpop.xlane.xlu0 %2957
        %v2959 = vsel %vm1596, %v2938, 0.0
        %2960 = vadd.xlane.f32.xlu0 %v2959
        %v2961 = vpop.xlane.xlu0 %2960
        %v2962 = vsel %vm1596, %v2940, 0.0
        %2963 = vadd.xlane.f32.xlu0 %v2962
        %v2964 = vpop.xlane.xlu0 %2963
        %v2965 = vrcp.pop %v2943
        %v2966 = vrcp.pop %v2946
        %v2967 = vrcp.pop %v2949
        %v2968 = vrcp.pop %v2952
        %v2969 = vrcp.pop %v2955
        %v2970 = vrcp.pop %v2958
        %v2971 = vrcp.pop %v2961
        %v2972 = vrcp.pop %v2964
        %v2973 = vmul.f32 %v2926, %v2965
        %v2974 = vmul.f32 %v2928, %v2966
        %v2975 = vmul.f32 %v2930, %v2967
        %v2976 = vmul.f32 %v2932, %v2968
        %v2977 = vmul.f32 %v2934, %v2969
        %v2978 = vmul.f32 %v2936, %v2970
        %v2979 = vmul.f32 %v2938, %v2971
        %v2980 = vmul.f32 %v2940, %v2972
        %v2981 = vpack.c.bf16 %v2973, %v2973
        %v2982 = vpack.c.bf16 %v2974, %v2974
        %v2983 = vpack.c.bf16 %v2975, %v2975
        %v2984 = vpack.c.bf16 %v2976, %v2976
        %v2985 = vpack.c.bf16 %v2977, %v2977
        %v2986 = vpack.c.bf16 %v2978, %v2978
        %v2987 = vpack.c.bf16 %v2979, %v2979
        %v2988 = vpack.c.bf16 %v2980, %v2980
        %v2989 = vmul.f32 %v1373, %v2732
        %v2990 = vmul.f32 %v1375, %v2732
        %v2991 = vmul.f32 %v1378, %v2732
        %v2992 = vmul.f32 %v1380, %v2732
        %v2993 = vmul.f32 %v1383, %v2732
        %v2994 = vmul.f32 %v1385, %v2732
        %v2995 = vmul.f32 %v1388, %v2732
        %v2996 = vmul.f32 %v1390, %v2732
        %v2997 = vpack.c.bf16 %v2989, %v2989
        %v2998 = vpack.c.bf16 %v2990, %v2990
        %v2999 = vpack.c.bf16 %v2991, %v2991
        %v3000 = vpack.c.bf16 %v2992, %v2992
        %v3001 = vpack.c.bf16 %v2993, %v2993
        %v3002 = vpack.c.bf16 %v2994, %v2994
        %v3003 = vpack.c.bf16 %v2995, %v2995
        %v3004 = vpack.c.bf16 %v2996, %v2996
        %v3006 = vsel %vm1596, %v2981, 0
        %v3009 = vsel %vm1989, %v2997, 0
        %3011 = vmatpush.bf16.msra.mxu0 0
        %3012 = vmatpush.bf16.msra.mxu0 0
        %3013 = vmatpush.bf16.msra.mxu0 0
        %3014 = vmatpush.bf16.msra.mxu0 0
        %3015 = vmatpush.bf16.msra.mxu0 0
        %3016 = vmatpush.bf16.msra.mxu0 0
        %3017 = vmatpush.bf16.msra.mxu0 0
        %3018 = vmatpush.bf16.msra.mxu0 %v3009
        %3019 = vmatmul.bf16.gmra.mxu0 %v3006
        %v3020 = vpop.f32.mrf.mxu0
        %v3021 = vadd.f32 0.0, %v3020
        %v3022 = vpop.f32.mrf.mxu0
        %3023 = vdwg.mxu0
        %v3025 = vsel %vm1596, %v2982, 0
        %v3028 = vsel %vm1989, %v2998, 0
        %3030 = vmatpush.bf16.msra.mxu0 0
        %3031 = vmatpush.bf16.msra.mxu0 0
        %3032 = vmatpush.bf16.msra.mxu0 0
        %3033 = vmatpush.bf16.msra.mxu0 0
        %3034 = vmatpush.bf16.msra.mxu0 0
        %3035 = vmatpush.bf16.msra.mxu0 0
        %3036 = vmatpush.bf16.msra.mxu0 0
        %3037 = vmatpush.bf16.msra.mxu0 %v3028
        %3038 = vmatmul.bf16.gmra.mxu0 %v3025
        %v3039 = vpop.f32.mrf.mxu0
        %v3040 = vadd.f32 0.0, %v3039
        %v3041 = vpop.f32.mrf.mxu0
        %3042 = vdwg.mxu0
        %v3044 = vsel %vm1596, %v2983, 0
        %v3047 = vsel %vm1989, %v2999, 0
        %3049 = vmatpush.bf16.msra.mxu0 0
        %3050 = vmatpush.bf16.msra.mxu0 0
        %3051 = vmatpush.bf16.msra.mxu0 0
        %3052 = vmatpush.bf16.msra.mxu0 0
        %3053 = vmatpush.bf16.msra.mxu0 0
        %3054 = vmatpush.bf16.msra.mxu0 0
        %3055 = vmatpush.bf16.msra.mxu0 0
        %3056 = vmatpush.bf16.msra.mxu0 %v3047
        %3057 = vmatmul.bf16.gmra.mxu0 %v3044
        %v3058 = vpop.f32.mrf.mxu0
        %v3059 = vadd.f32 0.0, %v3058
        %v3060 = vpop.f32.mrf.mxu0
        %3061 = vdwg.mxu0
        %v3063 = vsel %vm1596, %v2984, 0
        %v3066 = vsel %vm1989, %v3000, 0
        %3068 = vmatpush.bf16.msra.mxu0 0
        %3069 = vmatpush.bf16.msra.mxu0 0
        %3070 = vmatpush.bf16.msra.mxu0 0
        %3071 = vmatpush.bf16.msra.mxu0 0
        %3072 = vmatpush.bf16.msra.mxu0 0
        %3073 = vmatpush.bf16.msra.mxu0 0
        %3074 = vmatpush.bf16.msra.mxu0 0
        %3075 = vmatpush.bf16.msra.mxu0 %v3066
        %3076 = vmatmul.bf16.gmra.mxu0 %v3063
        %v3077 = vpop.f32.mrf.mxu0
        %v3078 = vadd.f32 0.0, %v3077
        %v3079 = vpop.f32.mrf.mxu0
        %3080 = vdwg.mxu0
        %v3082 = vsel %vm1596, %v2985, 0
        %v3085 = vsel %vm1989, %v3001, 0
        %3087 = vmatpush.bf16.msra.mxu0 0
        %3088 = vmatpush.bf16.msra.mxu0 0
        %3089 = vmatpush.bf16.msra.mxu0 0
        %3090 = vmatpush.bf16.msra.mxu0 0
        %3091 = vmatpush.bf16.msra.mxu0 0
        %3092 = vmatpush.bf16.msra.mxu0 0
        %3093 = vmatpush.bf16.msra.mxu0 0
        %3094 = vmatpush.bf16.msra.mxu0 %v3085
        %3095 = vmatmul.bf16.gmra.mxu0 %v3082
        %v3096 = vpop.f32.mrf.mxu0
        %v3097 = vadd.f32 0.0, %v3096
        %v3098 = vpop.f32.mrf.mxu0
        %3099 = vdwg.mxu0
        %v3101 = vsel %vm1596, %v2986, 0
        %v3104 = vsel %vm1989, %v3002, 0
        %3106 = vmatpush.bf16.msra.mxu0 0
        %3107 = vmatpush.bf16.msra.mxu0 0
        %3108 = vmatpush.bf16.msra.mxu0 0
        %3109 = vmatpush.bf16.msra.mxu0 0
        %3110 = vmatpush.bf16.msra.mxu0 0
        %3111 = vmatpush.bf16.msra.mxu0 0
        %3112 = vmatpush.bf16.msra.mxu0 0
        %3113 = vmatpush.bf16.msra.mxu0 %v3104
        %3114 = vmatmul.bf16.gmra.mxu0 %v3101
        %v3115 = vpop.f32.mrf.mxu0
        %v3116 = vadd.f32 0.0, %v3115
        %v3117 = vpop.f32.mrf.mxu0
        %3118 = vdwg.mxu0
        %v3120 = vsel %vm1596, %v2987, 0
        %v3123 = vsel %vm1989, %v3003, 0
        %3125 = vmatpush.bf16.msra.mxu0 0
        %3126 = vmatpush.bf16.msra.mxu0 0
        %3127 = vmatpush.bf16.msra.mxu0 0
        %3128 = vmatpush.bf16.msra.mxu0 0
        %3129 = vmatpush.bf16.msra.mxu0 0
        %3130 = vmatpush.bf16.msra.mxu0 0
        %3131 = vmatpush.bf16.msra.mxu0 0
        %3132 = vmatpush.bf16.msra.mxu0 %v3123
        %3133 = vmatmul.bf16.gmra.mxu0 %v3120
        %v3134 = vpop.f32.mrf.mxu0
        %v3135 = vadd.f32 0.0, %v3134
        %v3136 = vpop.f32.mrf.mxu0
        %3137 = vdwg.mxu0
        %v3139 = vsel %vm1596, %v2988, 0
        %v3142 = vsel %vm1989, %v3004, 0
        %3144 = vmatpush.bf16.msra.mxu0 0
        %3145 = vmatpush.bf16.msra.mxu0 0
        %3146 = vmatpush.bf16.msra.mxu0 0
        %3147 = vmatpush.bf16.msra.mxu0 0
        %3148 = vmatpush.bf16.msra.mxu0 0
        %3149 = vmatpush.bf16.msra.mxu0 0
        %3150 = vmatpush.bf16.msra.mxu0 0
        %3151 = vmatpush.bf16.msra.mxu0 %v3142
        %3152 = vmatmul.bf16.gmra.mxu0 %v3139
        %v3153 = vpop.f32.mrf.mxu0
        %v3154 = vadd.f32 0.0, %v3153
        %v3155 = vpop.f32.mrf.mxu0
        %3156 = vdwg.mxu0
        %v3157 = vadd.f32 %v2720, %v3021
        %v3158 = vadd.f32 %v2721, %v3040
        %v3159 = vadd.f32 %v2722, %v3059
        %v3160 = vadd.f32 %v2723, %v3078
        %v3161 = vadd.f32 %v2724, %v3097
        %v3162 = vadd.f32 %v2725, %v3116
        %v3163 = vadd.f32 %v2726, %v3135
        %v3164 = vadd.f32 %v2727, %v3154
        %v3165 = vld [vmem:[%s940] sm:$0xf]
        %v3166 = vld [vmem:[%s940 + $0x4] sm:$0xf]
        %v3167 = vld [vmem:[%s940 + $0x8] sm:$0xf]
        %v3168 = vld [vmem:[%s940 + $0xc] sm:$0xf]
        %v3169 = vld [vmem:[%s940 + $0x10] sm:$0xf]
        %v3170 = vld [vmem:[%s940 + $0x14] sm:$0xf]
        %v3171 = vpack.c.bf16 %v3158, %v3157
        %v3172 = vpack.c.bf16 %v3160, %v3159
        %v3173 = vpack.c.bf16 %v3162, %v3161
        %v3174 = vpack.c.bf16 %v3164, %v3163
        %v3175 = vld [vmem:[%s943] sm:$0x1]
        %v3177 = vperm.slane %v3175, 0
        %v3185 = vunpack.c.l.b16 %v3165
        %v3186 = vunpack.c.l.b16 %v3166
        %v3187 = vunpack.c.l.b16 %v3167
        %v3188 = vunpack.c.l.b16 %v3168
        %v3189 = vunpack.c.l.b16 %v3169
        %v3190 = vunpack.c.l.b16 %v3170
        %v3191 = vpack.c.b16 %v3186, %v3185
        %v3192 = vpack.c.b16 %v3188, %v3187
        %v3193 = vpack.c.b16 %v3190, %v3189
        %v3198 = vsel %vm999, %v3171, 0
        %v3201 = vsel %vm999, %v3172, 0
        %v3204 = vsel %vm999, %v3173, 0
        %v3207 = vsel %vm999, %v3174, 0
        %3209 = vmatpush.bf16.msra.mxu0 0
        %3210 = vmatpush.bf16.msra.mxu0 0
        %3211 = vmatpush.bf16.msra.mxu0 0
        %3212 = vmatpush.bf16.msra.mxu0 0
        %3213 = vmatpush.bf16.msra.mxu0 0
        %3214 = vmatpush.bf16.msra.mxu0 %v3193
        %3215 = vmatpush.bf16.msra.mxu0 %v3192
        %3216 = vmatpush.bf16.msra.mxu0 %v3191
        %3217 = vmatmul.bf16.gmra.mxu0 %v3198
        %v3218 = vpop.f32.mrf.mxu0
        %v3219 = vadd.f32 %v3177, %v3218
        %v3220 = vpop.f32.mrf.mxu0
        %v3221 = vadd.f32 %v3177, %v3220
        %3222 = vmatmul.bf16.gmra.mxu0 %v3201
        %v3223 = vpop.f32.mrf.mxu0
        %v3224 = vadd.f32 %v3177, %v3223
        %v3225 = vpop.f32.mrf.mxu0
        %v3226 = vadd.f32 %v3177, %v3225
        %3227 = vmatmul.bf16.gmra.mxu0 %v3204
        %v3228 = vpop.f32.mrf.mxu0
        %v3229 = vadd.f32 %v3177, %v3228
        %v3230 = vpop.f32.mrf.mxu0
        %v3231 = vadd.f32 %v3177, %v3230
        %3232 = vmatmul.bf16.gmra.mxu0 %v3207
        %v3233 = vpop.f32.mrf.mxu0
        %v3234 = vadd.f32 %v3177, %v3233
        %v3235 = vpop.f32.mrf.mxu0
        %v3236 = vadd.f32 %v3177, %v3235
        %3237 = vdwg.mxu0
        %v3238 = vadd.f32 %v989, %v3219
        %v3239 = vadd.f32 %v990, %v3221
        %v3240 = vadd.f32 %v991, %v3224
        %v3241 = vadd.f32 %v992, %v3226
        %v3242 = vadd.f32 %v993, %v3229
        %v3243 = vadd.f32 %v994, %v3231
        %v3244 = vadd.f32 %v995, %v3234
        %v3245 = vadd.f32 %v996, %v3236
        %v3246 = vld [vmem:[%s946] sm:$0x1]
        %v3247 = vld [vmem:[%s949] sm:$0x1]
        %v3248 = vsel %vm999, %v3238, 0.0
        %3249 = vadd.xlane.f32.xlu0 %v3248
        %v3250 = vpop.xlane.xlu0 %3249
        %v3251 = vsel %vm999, %v3239, 0.0
        %3252 = vadd.xlane.f32.xlu0 %v3251
        %v3253 = vpop.xlane.xlu0 %3252
        %v3254 = vsel %vm999, %v3240, 0.0
        %3255 = vadd.xlane.f32.xlu0 %v3254
        %v3256 = vpop.xlane.xlu0 %3255
        %v3257 = vsel %vm999, %v3241, 0.0
        %3258 = vadd.xlane.f32.xlu0 %v3257
        %v3259 = vpop.xlane.xlu0 %3258
        %v3260 = vsel %vm999, %v3242, 0.0
        %3261 = vadd.xlane.f32.xlu0 %v3260
        %v3262 = vpop.xlane.xlu0 %3261
        %v3263 = vsel %vm999, %v3243, 0.0
        %3264 = vadd.xlane.f32.xlu0 %v3263
        %v3265 = vpop.xlane.xlu0 %3264
        %v3266 = vsel %vm999, %v3244, 0.0
        %3267 = vadd.xlane.f32.xlu0 %v3266
        %v3268 = vpop.xlane.xlu0 %3267
        %v3269 = vsel %vm999, %v3245, 0.0
        %3270 = vadd.xlane.f32.xlu0 %v3269
        %v3271 = vpop.xlane.xlu0 %3270
        %v3272 = vmul.f32 %v3250, %v1030
        %v3273 = vmul.f32 %v3253, %v1030
        %v3274 = vmul.f32 %v3256, %v1030
        %v3275 = vmul.f32 %v3259, %v1030
        %v3276 = vmul.f32 %v3262, %v1030
        %v3277 = vmul.f32 %v3265, %v1030
        %v3278 = vmul.f32 %v3268, %v1030
        %v3279 = vmul.f32 %v3271, %v1030
        %v3280 = vsub.f32 %v3238, %v3272
        %v3281 = vsub.f32 %v3239, %v3273
        %v3282 = vsub.f32 %v3240, %v3274
        %v3283 = vsub.f32 %v3241, %v3275
        %v3284 = vsub.f32 %v3242, %v3276
        %v3285 = vsub.f32 %v3243, %v3277
        %v3286 = vsub.f32 %v3244, %v3278
        %v3287 = vsub.f32 %v3245, %v3279
        %v3288 = vmul.f32 %v3280, %v3280
        %v3289 = vmul.f32 %v3281, %v3281
        %v3290 = vmul.f32 %v3282, %v3282
        %v3291 = vmul.f32 %v3283, %v3283
        %v3292 = vmul.f32 %v3284, %v3284
        %v3293 = vmul.f32 %v3285, %v3285
        %v3294 = vmul.f32 %v3286, %v3286
        %v3295 = vmul.f32 %v3287, %v3287
        %v3296 = vsel %vm999, %v3288, 0.0
        %3297 = vadd.xlane.f32.xlu0 %v3296
        %v3298 = vpop.xlane.xlu0 %3297
        %v3299 = vsel %vm999, %v3289, 0.0
        %3300 = vadd.xlane.f32.xlu0 %v3299
        %v3301 = vpop.xlane.xlu0 %3300
        %v3302 = vsel %vm999, %v3290, 0.0
        %3303 = vadd.xlane.f32.xlu0 %v3302
        %v3304 = vpop.xlane.xlu0 %3303
        %v3305 = vsel %vm999, %v3291, 0.0
        %3306 = vadd.xlane.f32.xlu0 %v3305
        %v3307 = vpop.xlane.xlu0 %3306
        %v3308 = vsel %vm999, %v3292, 0.0
        %3309 = vadd.xlane.f32.xlu0 %v3308
        %v3310 = vpop.xlane.xlu0 %3309
        %v3311 = vsel %vm999, %v3293, 0.0
        %3312 = vadd.xlane.f32.xlu0 %v3311
        %v3313 = vpop.xlane.xlu0 %3312
        %v3314 = vsel %vm999, %v3294, 0.0
        %3315 = vadd.xlane.f32.xlu0 %v3314
        %v3316 = vpop.xlane.xlu0 %3315
        %v3317 = vsel %vm999, %v3295, 0.0
        %3318 = vadd.xlane.f32.xlu0 %v3317
        %v3319 = vpop.xlane.xlu0 %3318
        %v3320 = vmul.f32 %v3298, %v1030
        %v3321 = vmul.f32 %v3301, %v1030
        %v3322 = vmul.f32 %v3304, %v1030
        %v3323 = vmul.f32 %v3307, %v1030
        %v3324 = vmul.f32 %v3310, %v1030
        %v3325 = vmul.f32 %v3313, %v1030
        %v3326 = vmul.f32 %v3316, %v1030
        %v3327 = vmul.f32 %v3319, %v1030
        %v3328 = vadd.f32 %v3320, 1e-05
        %v3329 = vadd.f32 %v3321, 1e-05
        %v3330 = vadd.f32 %v3322, 1e-05
        %v3331 = vadd.f32 %v3323, 1e-05
        %v3332 = vadd.f32 %v3324, 1e-05
        %v3333 = vadd.f32 %v3325, 1e-05
        %v3334 = vadd.f32 %v3326, 1e-05
        %v3335 = vadd.f32 %v3327, 1e-05
        %v3336 = vrsqrt.pop %v3328
        %v3337 = vmul.f32 %v3336, %v3328
        %v3338 = vmul.f32 %v3337, %v3336
        %v3339 = vmul.f32 0.5, %v3338
        %v3340 = vsub.f32 1.5, %v3339
        %v3341 = vmul.f32 %v3336, %v3340
        %vm3342 = vweird.f32 %v3328
        %vm3343 = vweird.f32 %v3336
        %vm3344 = vmor %vm3342, %vm3343
        %v3345 = vsel %vm3344, %v3336, %v3341
        %v3346 = vrsqrt.pop %v3329
        %v3347 = vmul.f32 %v3346, %v3329
        %v3348 = vmul.f32 %v3347, %v3346
        %v3349 = vmul.f32 0.5, %v3348
        %v3350 = vsub.f32 1.5, %v3349
        %v3351 = vmul.f32 %v3346, %v3350
        %vm3352 = vweird.f32 %v3329
        %vm3353 = vweird.f32 %v3346
        %vm3354 = vmor %vm3352, %vm3353
        %v3355 = vsel %vm3354, %v3346, %v3351
        %v3356 = vrsqrt.pop %v3330
        %v3357 = vmul.f32 %v3356, %v3330
        %v3358 = vmul.f32 %v3357, %v3356
        %v3359 = vmul.f32 0.5, %v3358
        %v3360 = vsub.f32 1.5, %v3359
        %v3361 = vmul.f32 %v3356, %v3360
        %vm3362 = vweird.f32 %v3330
        %vm3363 = vweird.f32 %v3356
        %vm3364 = vmor %vm3362, %vm3363
        %v3365 = vsel %vm3364, %v3356, %v3361
        %v3366 = vrsqrt.pop %v3331
        %v3367 = vmul.f32 %v3366, %v3331
        %v3368 = vmul.f32 %v3367, %v3366
        %v3369 = vmul.f32 0.5, %v3368
        %v3370 = vsub.f32 1.5, %v3369
        %v3371 = vmul.f32 %v3366, %v3370
        %vm3372 = vweird.f32 %v3331
        %vm3373 = vweird.f32 %v3366
        %vm3374 = vmor %vm3372, %vm3373
        %v3375 = vsel %vm3374, %v3366, %v3371
        %v3376 = vrsqrt.pop %v3332
        %v3377 = vmul.f32 %v3376, %v3332
        %v3378 = vmul.f32 %v3377, %v3376
        %v3379 = vmul.f32 0.5, %v3378
        %v3380 = vsub.f32 1.5, %v3379
        %v3381 = vmul.f32 %v3376, %v3380
        %vm3382 = vweird.f32 %v3332
        %vm3383 = vweird.f32 %v3376
        %vm3384 = vmor %vm3382, %vm3383
        %v3385 = vsel %vm3384, %v3376, %v3381
        %v3386 = vrsqrt.pop %v3333
        %v3387 = vmul.f32 %v3386, %v3333
        %v3388 = vmul.f32 %v3387, %v3386
        %v3389 = vmul.f32 0.5, %v3388
        %v3390 = vsub.f32 1.5, %v3389
        %v3391 = vmul.f32 %v3386, %v3390
        %vm3392 = vweird.f32 %v3333
        %vm3393 = vweird.f32 %v3386
        %vm3394 = vmor %vm3392, %vm3393
        %v3395 = vsel %vm3394, %v3386, %v3391
        %v3396 = vrsqrt.pop %v3334
        %v3397 = vmul.f32 %v3396, %v3334
        %v3398 = vmul.f32 %v3397, %v3396
        %v3399 = vmul.f32 0.5, %v3398
        %v3400 = vsub.f32 1.5, %v3399
        %v3401 = vmul.f32 %v3396, %v3400
        %vm3402 = vweird.f32 %v3334
        %vm3403 = vweird.f32 %v3396
        %vm3404 = vmor %vm3402, %vm3403
        %v3405 = vsel %vm3404, %v3396, %v3401
        %v3406 = vrsqrt.pop %v3335
        %v3407 = vmul.f32 %v3406, %v3335
        %v3408 = vmul.f32 %v3407, %v3406
        %v3409 = vmul.f32 0.5, %v3408
        %v3410 = vsub.f32 1.5, %v3409
        %v3411 = vmul.f32 %v3406, %v3410
        %vm3412 = vweird.f32 %v3335
        %vm3413 = vweird.f32 %v3406
        %vm3414 = vmor %vm3412, %vm3413
        %v3415 = vsel %vm3414, %v3406, %v3411
        %v3416 = vmul.f32 %v3280, %v3345
        %v3417 = vmul.f32 %v3281, %v3355
        %v3418 = vmul.f32 %v3282, %v3365
        %v3419 = vmul.f32 %v3283, %v3375
        %v3420 = vmul.f32 %v3284, %v3385
        %v3421 = vmul.f32 %v3285, %v3395
        %v3422 = vmul.f32 %v3286, %v3405
        %v3423 = vmul.f32 %v3287, %v3415
        %v3425 = vperm.slane %v3246, 0
        %v3427 = vmul.f32 %v3416, %v3425
        %v3428 = vmul.f32 %v3417, %v3425
        %v3429 = vmul.f32 %v3418, %v3425
        %v3430 = vmul.f32 %v3419, %v3425
        %v3431 = vmul.f32 %v3420, %v3425
        %v3432 = vmul.f32 %v3421, %v3425
        %v3433 = vmul.f32 %v3422, %v3425
        %v3434 = vmul.f32 %v3423, %v3425
        %v3436 = vperm.slane %v3247, 0
        %v3438 = vadd.f32 %v3427, %v3436
        %v3439 = vadd.f32 %v3428, %v3436
        %v3440 = vadd.f32 %v3429, %v3436
        %v3441 = vadd.f32 %v3430, %v3436
        %v3442 = vadd.f32 %v3431, %v3436
        %v3443 = vadd.f32 %v3432, %v3436
        %v3444 = vadd.f32 %v3433, %v3436
        %v3445 = vadd.f32 %v3434, %v3436
        %v3446 = vld [vmem:[%s954] sm:$0xff]
        %v3447 = vld [vmem:[%s954 + $0x8] sm:$0xff]
        %v3448 = vld [vmem:[%s954 + $0x10] sm:$0xff]
        %v3449 = vld [vmem:[%s954 + $0x18] sm:$0xff]
        %v3450 = vld [vmem:[%s954 + $0x20] sm:$0xff]
        %v3451 = vld [vmem:[%s954 + $0x28] sm:$0xff]
        %v3452 = vpack.c.bf16 %v3439, %v3438
        %v3453 = vpack.c.bf16 %v3441, %v3440
        %v3454 = vpack.c.bf16 %v3443, %v3442
        %v3455 = vpack.c.bf16 %v3445, %v3444
        %v3456 = vld [vmem:[%s958] sm:$0x3]
        %v3458 = vperm.slane %v3456, 0
        %v3459 = vperm.slane %v3456, 1
        %v3468 = vunpack.c.l.b16 %v3446
        %v3469 = vunpack.c.h.b16 %v3446
        %v3470 = vunpack.c.l.b16 %v3447
        %v3471 = vunpack.c.h.b16 %v3447
        %v3472 = vunpack.c.l.b16 %v3448
        %v3473 = vunpack.c.h.b16 %v3448
        %v3474 = vunpack.c.l.b16 %v3449
        %v3475 = vunpack.c.h.b16 %v3449
        %v3476 = vunpack.c.l.b16 %v3450
        %v3477 = vunpack.c.h.b16 %v3450
        %v3478 = vunpack.c.l.b16 %v3451
        %v3479 = vunpack.c.h.b16 %v3451
        %v3480 = vpack.c.b16 %v3470, %v3468
        %v3481 = vpack.c.b16 %v3471, %v3469
        %v3482 = vpack.c.b16 %v3474, %v3472
        %v3483 = vpack.c.b16 %v3475, %v3473
        %v3484 = vpack.c.b16 %v3478, %v3476
        %v3485 = vpack.c.b16 %v3479, %v3477
        %v3493 = vsel %vm999, %v3452, 0
        %v3496 = vsel %vm999, %v3453, 0
        %v3499 = vsel %vm999, %v3454, 0
        %v3502 = vsel %vm999, %v3455, 0
        %3504 = vmatpush.bf16.msra.mxu0 0
        %3505 = vmatpush.bf16.msra.mxu0 0
        %3506 = vmatpush.bf16.msra.mxu0 0
        %3507 = vmatpush.bf16.msra.mxu0 0
        %3508 = vmatpush.bf16.msra.mxu0 0
        %3509 = vmatpush.bf16.msra.mxu0 %v3484
        %3510 = vmatpush.bf16.msra.mxu0 %v3482
        %3511 = vmatpush.bf16.msra.mxu0 %v3480
        %3512 = vmatmul.bf16.gmra.mxu0 %v3493
        %v3513 = vpop.f32.mrf.mxu0
        %v3514 = vadd.f32 %v3458, %v3513
        %v3515 = vpop.f32.mrf.mxu0
        %v3516 = vadd.f32 %v3458, %v3515
        %3517 = vmatmul.bf16.gmra.mxu0 %v3496
        %v3518 = vpop.f32.mrf.mxu0
        %v3519 = vadd.f32 %v3458, %v3518
        %v3520 = vpop.f32.mrf.mxu0
        %v3521 = vadd.f32 %v3458, %v3520
        %3522 = vmatmul.bf16.gmra.mxu0 %v3499
        %v3523 = vpop.f32.mrf.mxu0
        %v3524 = vadd.f32 %v3458, %v3523
        %v3525 = vpop.f32.mrf.mxu0
        %v3526 = vadd.f32 %v3458, %v3525
        %3527 = vmatmul.bf16.gmra.mxu0 %v3502
        %v3528 = vpop.f32.mrf.mxu0
        %v3529 = vadd.f32 %v3458, %v3528
        %v3530 = vpop.f32.mrf.mxu0
        %v3531 = vadd.f32 %v3458, %v3530
        %3532 = vdwg.mxu0
        %3533 = vmatpush.bf16.msra.mxu0 0
        %3534 = vmatpush.bf16.msra.mxu0 0
        %3535 = vmatpush.bf16.msra.mxu0 0
        %3536 = vmatpush.bf16.msra.mxu0 0
        %3537 = vmatpush.bf16.msra.mxu0 0
        %3538 = vmatpush.bf16.msra.mxu0 %v3485
        %3539 = vmatpush.bf16.msra.mxu0 %v3483
        %3540 = vmatpush.bf16.msra.mxu0 %v3481
        %3541 = vmatmul.bf16.gmra.mxu0 %v3493
        %v3542 = vpop.f32.mrf.mxu0
        %v3543 = vadd.f32 %v3459, %v3542
        %v3544 = vpop.f32.mrf.mxu0
        %v3545 = vadd.f32 %v3459, %v3544
        %3546 = vmatmul.bf16.gmra.mxu0 %v3496
        %v3547 = vpop.f32.mrf.mxu0
        %v3548 = vadd.f32 %v3459, %v3547
        %v3549 = vpop.f32.mrf.mxu0
        %v3550 = vadd.f32 %v3459, %v3549
        %3551 = vmatmul.bf16.gmra.mxu0 %v3499
        %v3552 = vpop.f32.mrf.mxu0
        %v3553 = vadd.f32 %v3459, %v3552
        %v3554 = vpop.f32.mrf.mxu0
        %v3555 = vadd.f32 %v3459, %v3554
        %3556 = vmatmul.bf16.gmra.mxu0 %v3502
        %v3557 = vpop.f32.mrf.mxu0
        %v3558 = vadd.f32 %v3459, %v3557
        %v3559 = vpop.f32.mrf.mxu0
        %v3560 = vadd.f32 %v3459, %v3559
        %3561 = vdwg.mxu0
        %v3562 = vmul.f32 %v3514, 0.5
        %v3563 = vmul.f32 %v3543, 0.5
        %v3564 = vmul.f32 %v3516, 0.5
        %v3565 = vmul.f32 %v3545, 0.5
        %v3566 = vmul.f32 %v3519, 0.5
        %v3567 = vmul.f32 %v3548, 0.5
        %v3568 = vmul.f32 %v3521, 0.5
        %v3569 = vmul.f32 %v3550, 0.5
        %v3570 = vmul.f32 %v3524, 0.5
        %v3571 = vmul.f32 %v3553, 0.5
        %v3572 = vmul.f32 %v3526, 0.5
        %v3573 = vmul.f32 %v3555, 0.5
        %v3574 = vmul.f32 %v3529, 0.5
        %v3575 = vmul.f32 %v3558, 0.5
        %v3576 = vmul.f32 %v3531, 0.5
        %v3577 = vmul.f32 %v3560, 0.5
        %v3578 = vmul.f32 %v3514, 0.044715
        %v3579 = vmul.f32 %v3543, 0.044715
        %v3580 = vmul.f32 %v3516, 0.044715
        %v3581 = vmul.f32 %v3545, 0.044715
        %v3582 = vmul.f32 %v3519, 0.044715
        %v3583 = vmul.f32 %v3548, 0.044715
        %v3584 = vmul.f32 %v3521, 0.044715
        %v3585 = vmul.f32 %v3550, 0.044715
        %v3586 = vmul.f32 %v3524, 0.044715
        %v3587 = vmul.f32 %v3553, 0.044715
        %v3588 = vmul.f32 %v3526, 0.044715
        %v3589 = vmul.f32 %v3555, 0.044715
        %v3590 = vmul.f32 %v3529, 0.044715
        %v3591 = vmul.f32 %v3558, 0.044715
        %v3592 = vmul.f32 %v3531, 0.044715
        %v3593 = vmul.f32 %v3560, 0.044715
        %v3594 = vmul.f32 %v3578, %v3514
        %v3595 = vmul.f32 %v3579, %v3543
        %v3596 = vmul.f32 %v3580, %v3516
        %v3597 = vmul.f32 %v3581, %v3545
        %v3598 = vmul.f32 %v3582, %v3519
        %v3599 = vmul.f32 %v3583, %v3548
        %v3600 = vmul.f32 %v3584, %v3521
        %v3601 = vmul.f32 %v3585, %v3550
        %v3602 = vmul.f32 %v3586, %v3524
        %v3603 = vmul.f32 %v3587, %v3553
        %v3604 = vmul.f32 %v3588, %v3526
        %v3605 = vmul.f32 %v3589, %v3555
        %v3606 = vmul.f32 %v3590, %v3529
        %v3607 = vmul.f32 %v3591, %v3558
        %v3608 = vmul.f32 %v3592, %v3531
        %v3609 = vmul.f32 %v3593, %v3560
        %v3610 = vmul.f32 %v3594, %v3514
        %v3611 = vmul.f32 %v3595, %v3543
        %v3612 = vmul.f32 %v3596, %v3516
        %v3613 = vmul.f32 %v3597, %v3545
        %v3614 = vmul.f32 %v3598, %v3519
        %v3615 = vmul.f32 %v3599, %v3548
        %v3616 = vmul.f32 %v3600, %v3521
        %v3617 = vmul.f32 %v3601, %v3550
        %v3618 = vmul.f32 %v3602, %v3524
        %v3619 = vmul.f32 %v3603, %v3553
        %v3620 = vmul.f32 %v3604, %v3526
        %v3621 = vmul.f32 %v3605, %v3555
        %v3622 = vmul.f32 %v3606, %v3529
        %v3623 = vmul.f32 %v3607, %v3558
        %v3624 = vmul.f32 %v3608, %v3531
        %v3625 = vmul.f32 %v3609, %v3560
        %v3626 = vadd.f32 %v3514, %v3610
        %v3627 = vadd.f32 %v3543, %v3611
        %v3628 = vadd.f32 %v3516, %v3612
        %v3629 = vadd.f32 %v3545, %v3613
        %v3630 = vadd.f32 %v3519, %v3614
        %v3631 = vadd.f32 %v3548, %v3615
        %v3632 = vadd.f32 %v3521, %v3616
        %v3633 = vadd.f32 %v3550, %v3617
        %v3634 = vadd.f32 %v3524, %v3618
        %v3635 = vadd.f32 %v3553, %v3619
        %v3636 = vadd.f32 %v3526, %v3620
        %v3637 = vadd.f32 %v3555, %v3621
        %v3638 = vadd.f32 %v3529, %v3622
        %v3639 = vadd.f32 %v3558, %v3623
        %v3640 = vadd.f32 %v3531, %v3624
        %v3641 = vadd.f32 %v3560, %v3625
        %v3642 = vmul.f32 %v3626, 0.7978846
        %v3643 = vmul.f32 %v3627, 0.7978846
        %v3644 = vmul.f32 %v3628, 0.7978846
        %v3645 = vmul.f32 %v3629, 0.7978846
        %v3646 = vmul.f32 %v3630, 0.7978846
        %v3647 = vmul.f32 %v3631, 0.7978846
        %v3648 = vmul.f32 %v3632, 0.7978846
        %v3649 = vmul.f32 %v3633, 0.7978846
        %v3650 = vmul.f32 %v3634, 0.7978846
        %v3651 = vmul.f32 %v3635, 0.7978846
        %v3652 = vmul.f32 %v3636, 0.7978846
        %v3653 = vmul.f32 %v3637, 0.7978846
        %v3654 = vmul.f32 %v3638, 0.7978846
        %v3655 = vmul.f32 %v3639, 0.7978846
        %v3656 = vmul.f32 %v3640, 0.7978846
        %v3657 = vmul.f32 %v3641, 0.7978846
        %v3658 = vtanh.pop %v3642
        %v3659 = vtanh.pop %v3643
        %v3660 = vtanh.pop %v3644
        %v3661 = vtanh.pop %v3645
        %v3662 = vtanh.pop %v3646
        %v3663 = vtanh.pop %v3647
        %v3664 = vtanh.pop %v3648
        %v3665 = vtanh.pop %v3649
        %v3666 = vtanh.pop %v3650
        %v3667 = vtanh.pop %v3651
        %v3668 = vtanh.pop %v3652
        %v3669 = vtanh.pop %v3653
        %v3670 = vtanh.pop %v3654
        %v3671 = vtanh.pop %v3655
        %v3672 = vtanh.pop %v3656
        %v3673 = vtanh.pop %v3657
        %v3674 = vadd.f32 %v3658, 1.0
        %v3675 = vadd.f32 %v3659, 1.0
        %v3676 = vadd.f32 %v3660, 1.0
        %v3677 = vadd.f32 %v3661, 1.0
        %v3678 = vadd.f32 %v3662, 1.0
        %v3679 = vadd.f32 %v3663, 1.0
        %v3680 = vadd.f32 %v3664, 1.0
        %v3681 = vadd.f32 %v3665, 1.0
        %v3682 = vadd.f32 %v3666, 1.0
        %v3683 = vadd.f32 %v3667, 1.0
        %v3684 = vadd.f32 %v3668, 1.0
        %v3685 = vadd.f32 %v3669, 1.0
        %v3686 = vadd.f32 %v3670, 1.0
        %v3687 = vadd.f32 %v3671, 1.0
        %v3688 = vadd.f32 %v3672, 1.0
        %v3689 = vadd.f32 %v3673, 1.0
        %v3690 = vmul.f32 %v3562, %v3674
        %v3691 = vmul.f32 %v3563, %v3675
        %v3692 = vmul.f32 %v3564, %v3676
        %v3693 = vmul.f32 %v3565, %v3677
        %v3694 = vmul.f32 %v3566, %v3678
        %v3695 = vmul.f32 %v3567, %v3679
        %v3696 = vmul.f32 %v3568, %v3680
        %v3697 = vmul.f32 %v3569, %v3681
        %v3698 = vmul.f32 %v3570, %v3682
        %v3699 = vmul.f32 %v3571, %v3683
        %v3700 = vmul.f32 %v3572, %v3684
        %v3701 = vmul.f32 %v3573, %v3685
        %v3702 = vmul.f32 %v3574, %v3686
        %v3703 = vmul.f32 %v3575, %v3687
        %v3704 = vmul.f32 %v3576, %v3688
        %v3705 = vmul.f32 %v3577, %v3689
        %v3706 = vld [vmem:[%s963] sm:$0xf]
        %v3707 = vld [vmem:[%s963 + $0x4] sm:$0xf]
        %v3708 = vld [vmem:[%s963 + $0x8] sm:$0xf]
        %v3709 = vld [vmem:[%s963 + $0xc] sm:$0xf]
        %v3710 = vld [vmem:[%s963 + $0x10] sm:$0xf]
        %v3711 = vld [vmem:[%s963 + $0x14] sm:$0xf]
        %v3712 = vld [vmem:[%s963 + $0x18] sm:$0xf]
        %v3713 = vld [vmem:[%s963 + $0x1c] sm:$0xf]
        %v3714 = vld [vmem:[%s963 + $0x20] sm:$0xf]
        %v3715 = vld [vmem:[%s963 + $0x24] sm:$0xf]
        %v3716 = vld [vmem:[%s963 + $0x28] sm:$0xf]
        %v3717 = vld [vmem:[%s963 + $0x2c] sm:$0xf]
        %v3718 = vld [vmem:[%s963 + $0x30] sm:$0xf]
        %v3719 = vld [vmem:[%s963 + $0x34] sm:$0xf]
        %v3720 = vld [vmem:[%s963 + $0x38] sm:$0xf]
        %v3721 = vld [vmem:[%s963 + $0x3c] sm:$0xf]
        %v3722 = vld [vmem:[%s963 + $0x40] sm:$0xf]
        %v3723 = vld [vmem:[%s963 + $0x44] sm:$0xf]
        %v3724 = vld [vmem:[%s963 + $0x48] sm:$0xf]
        %v3725 = vld [vmem:[%s963 + $0x4c] sm:$0xf]
        %v3726 = vld [vmem:[%s963 + $0x50] sm:$0xf]
        %v3727 = vld [vmem:[%s963 + $0x54] sm:$0xf]
        %v3728 = vld [vmem:[%s963 + $0x58] sm:$0xf]
        %v3729 = vld [vmem:[%s963 + $0x5c] sm:$0xf]
        %v3730 = vpack.c.bf16 %v3692, %v3690
        %v3731 = vpack.c.bf16 %v3693, %v3691
        %v3732 = vpack.c.bf16 %v3696, %v3694
        %v3733 = vpack.c.bf16 %v3697, %v3695
        %v3734 = vpack.c.bf16 %v3700, %v3698
        %v3735 = vpack.c.bf16 %v3701, %v3699
        %v3736 = vpack.c.bf16 %v3704, %v3702
        %v3737 = vpack.c.bf16 %v3705, %v3703
        %v3738 = vld [vmem:[%s966] sm:$0x1]
        %v3740 = vperm.slane %v3738, 0
        %v3766 = vunpack.c.l.b16 %v3706
        %v3767 = vunpack.c.l.b16 %v3707
        %v3768 = vunpack.c.l.b16 %v3708
        %v3769 = vunpack.c.l.b16 %v3709
        %v3770 = vunpack.c.l.b16 %v3710
        %v3771 = vunpack.c.l.b16 %v3711
        %v3772 = vunpack.c.l.b16 %v3712
        %v3773 = vunpack.c.l.b16 %v3713
        %v3774 = vunpack.c.l.b16 %v3714
        %v3775 = vunpack.c.l.b16 %v3715
        %v3776 = vunpack.c.l.b16 %v3716
        %v3777 = vunpack.c.l.b16 %v3717
        %v3778 = vunpack.c.l.b16 %v3718
        %v3779 = vunpack.c.l.b16 %v3719
        %v3780 = vunpack.c.l.b16 %v3720
        %v3781 = vunpack.c.l.b16 %v3721
        %v3782 = vunpack.c.l.b16 %v3722
        %v3783 = vunpack.c.l.b16 %v3723
        %v3784 = vunpack.c.l.b16 %v3724
        %v3785 = vunpack.c.l.b16 %v3725
        %v3786 = vunpack.c.l.b16 %v3726
        %v3787 = vunpack.c.l.b16 %v3727
        %v3788 = vunpack.c.l.b16 %v3728
        %v3789 = vunpack.c.l.b16 %v3729
        %v3790 = vpack.c.b16 %v3767, %v3766
        %v3791 = vpack.c.b16 %v3769, %v3768
        %v3792 = vpack.c.b16 %v3771, %v3770
        %v3793 = vpack.c.b16 %v3773, %v3772
        %v3794 = vpack.c.b16 %v3775, %v3774
        %v3795 = vpack.c.b16 %v3777, %v3776
        %v3796 = vpack.c.b16 %v3779, %v3778
        %v3797 = vpack.c.b16 %v3781, %v3780
        %v3798 = vpack.c.b16 %v3783, %v3782
        %v3799 = vpack.c.b16 %v3785, %v3784
        %v3800 = vpack.c.b16 %v3787, %v3786
        %v3801 = vpack.c.b16 %v3789, %v3788
        %vm3814 = vcmask 523264
        %v3816 = vsel %vm3814, %v3731, 0
        %v3819 = vsel %vm3814, %v3733, 0
        %v3822 = vsel %vm3814, %v3735, 0
        %v3825 = vsel %vm3814, %v3737, 0
        %3827 = vmatpush.bf16.msra.mxu0 %v3797
        %3828 = vmatpush.bf16.msra.mxu0 %v3796
        %3829 = vmatpush.bf16.msra.mxu0 %v3795
        %3830 = vmatpush.bf16.msra.mxu0 %v3794
        %3831 = vmatpush.bf16.msra.mxu0 %v3793
        %3832 = vmatpush.bf16.msra.mxu0 %v3792
        %3833 = vmatpush.bf16.msra.mxu0 %v3791
        %3834 = vmatpush.bf16.msra.mxu0 %v3790
        %3835 = vmatmul.bf16.gmra.mxu0 %v3730
        %v3836 = vpop.f32.mrf.mxu0
        %v3837 = vadd.f32 %v3740, %v3836
        %v3838 = vpop.f32.mrf.mxu0
        %v3839 = vadd.f32 %v3740, %v3838
        %3840 = vmatmul.bf16.gmra.mxu0 %v3732
        %v3841 = vpop.f32.mrf.mxu0
        %v3842 = vadd.f32 %v3740, %v3841
        %v3843 = vpop.f32.mrf.mxu0
        %v3844 = vadd.f32 %v3740, %v3843
        %3845 = vmatmul.bf16.gmra.mxu0 %v3734
        %v3846 = vpop.f32.mrf.mxu0
        %v3847 = vadd.f32 %v3740, %v3846
        %v3848 = vpop.f32.mrf.mxu0
        %v3849 = vadd.f32 %v3740, %v3848
        %3850 = vmatmul.bf16.gmra.mxu0 %v3736
        %v3851 = vpop.f32.mrf.mxu0
        %v3852 = vadd.f32 %v3740, %v3851
        %v3853 = vpop.f32.mrf.mxu0
        %v3854 = vadd.f32 %v3740, %v3853
        %3855 = vdwg.mxu0
        %3856 = vmatpush.bf16.msra.mxu0 0
        %3857 = vmatpush.bf16.msra.mxu0 0
        %3858 = vmatpush.bf16.msra.mxu0 0
        %3859 = vmatpush.bf16.msra.mxu0 0
        %3860 = vmatpush.bf16.msra.mxu0 %v3801
        %3861 = vmatpush.bf16.msra.mxu0 %v3800
        %3862 = vmatpush.bf16.msra.mxu0 %v3799
        %3863 = vmatpush.bf16.msra.mxu0 %v3798
        %3864 = vmatmul.bf16.gmra.mxu0 %v3816
        %v3865 = vpop.f32.mrf.mxu0
        %v3866 = vadd.f32 %v3837, %v3865
        %v3867 = vpop.f32.mrf.mxu0
        %v3868 = vadd.f32 %v3839, %v3867
        %3869 = vmatmul.bf16.gmra.mxu0 %v3819
        %v3870 = vpop.f32.mrf.mxu0
        %v3871 = vadd.f32 %v3842, %v3870
        %v3872 = vpop.f32.mrf.mxu0
        %v3873 = vadd.f32 %v3844, %v3872
        %3874 = vmatmul.bf16.gmra.mxu0 %v3822
        %v3875 = vpop.f32.mrf.mxu0
        %v3876 = vadd.f32 %v3847, %v3875
        %v3877 = vpop.f32.mrf.mxu0
        %v3878 = vadd.f32 %v3849, %v3877
        %3879 = vmatmul.bf16.gmra.mxu0 %v3825
        %v3880 = vpop.f32.mrf.mxu0
        %v3881 = vadd.f32 %v3852, %v3880
        %v3882 = vpop.f32.mrf.mxu0
        %v3883 = vadd.f32 %v3854, %v3882
        %3884 = vdwg.mxu0
        %v3885 = vadd.f32 %v3238, %v3866
        %v3886 = vadd.f32 %v3239, %v3868
        %v3887 = vadd.f32 %v3240, %v3871
        %v3888 = vadd.f32 %v3241, %v3873
        %v3889 = vadd.f32 %v3242, %v3876
        %v3890 = vadd.f32 %v3243, %v3878
        %v3891 = vadd.f32 %v3244, %v3881
        %v3892 = vadd.f32 %v3245, %v3883
        %3893 = vst.msk [vmem:[#allocation2] sm:$0xff] %vm999, %v3885
        %3894 = vst.msk [vmem:[#allocation2 + $0x8] sm:$0xff] %vm999, %v3886
        %3895 = vst.msk [vmem:[#allocation2 + $0x10] sm:$0xff] %vm999, %v3887
        %3896 = vst.msk [vmem:[#allocation2 + $0x18] sm:$0xff] %vm999, %v3888
        %3897 = vst.msk [vmem:[#allocation2 + $0x20] sm:$0xff] %vm999, %v3889
        %3898 = vst.msk [vmem:[#allocation2 + $0x28] sm:$0xff] %vm999, %v3890
        %3899 = vst.msk [vmem:[#allocation2 + $0x30] sm:$0xff] %vm999, %v3891
        %3900 = vst.msk [vmem:[#allocation2 + $0x38] sm:$0xff] %vm999, %v3892
        %p3901 = scmp.eq.s32.totalorder %s39, 1
        // Predicated region
        $region113: #{_lambda_.1} parent=107 // pred_check
          %p3902 = pneg %p3901
        $region114: #{_lambda_.1} parent=107 // pred_check_branch
          %3904 = sbr.rel (%p3902) target = $region116
        $region115: #{_lambda_.1} parent=107 // pred_region
          %v3905 = vld [vmem:[%s18] sm:$0x1]
          %v3906 = vld [vmem:[%s19] sm:$0x1]
          %v3907 = vsel %vm999, %v3885, 0.0
          %3908 = vadd.xlane.f32.xlu0 %v3907
          %v3909 = vpop.xlane.xlu0 %3908
          %v3910 = vsel %vm999, %v3886, 0.0
          %3911 = vadd.xlane.f32.xlu0 %v3910
          %v3912 = vpop.xlane.xlu0 %3911
          %v3913 = vsel %vm999, %v3887, 0.0
          %3914 = vadd.xlane.f32.xlu0 %v3913
          %v3915 = vpop.xlane.xlu0 %3914
          %v3916 = vsel %vm999, %v3888, 0.0
          %3917 = vadd.xlane.f32.xlu0 %v3916
          %v3918 = vpop.xlane.xlu0 %3917
          %v3919 = vsel %vm999, %v3889, 0.0
          %3920 = vadd.xlane.f32.xlu0 %v3919
          %v3921 = vpop.xlane.xlu0 %3920
          %v3922 = vsel %vm999, %v3890, 0.0
          %3923 = vadd.xlane.f32.xlu0 %v3922
          %v3924 = vpop.xlane.xlu0 %3923
          %v3925 = vsel %vm999, %v3891, 0.0
          %3926 = vadd.xlane.f32.xlu0 %v3925
          %v3927 = vpop.xlane.xlu0 %3926
          %v3928 = vsel %vm999, %v3892, 0.0
          %3929 = vadd.xlane.f32.xlu0 %v3928
          %v3930 = vpop.xlane.xlu0 %3929
          %v3931 = vmul.f32 %v3909, %v1030
          %v3932 = vmul.f32 %v3912, %v1030
          %v3933 = vmul.f32 %v3915, %v1030
          %v3934 = vmul.f32 %v3918, %v1030
          %v3935 = vmul.f32 %v3921, %v1030
          %v3936 = vmul.f32 %v3924, %v1030
          %v3937 = vmul.f32 %v3927, %v1030
          %v3938 = vmul.f32 %v3930, %v1030
          %v3939 = vsub.f32 %v3885, %v3931
          %v3940 = vsub.f32 %v3886, %v3932
          %v3941 = vsub.f32 %v3887, %v3933
          %v3942 = vsub.f32 %v3888, %v3934
          %v3943 = vsub.f32 %v3889, %v3935
          %v3944 = vsub.f32 %v3890, %v3936
          %v3945 = vsub.f32 %v3891, %v3937
          %v3946 = vsub.f32 %v3892, %v3938
          %v3947 = vmul.f32 %v3939, %v3939
          %v3948 = vmul.f32 %v3940, %v3940
          %v3949 = vmul.f32 %v3941, %v3941
          %v3950 = vmul.f32 %v3942, %v3942
          %v3951 = vmul.f32 %v3943, %v3943
          %v3952 = vmul.f32 %v3944, %v3944
          %v3953 = vmul.f32 %v3945, %v3945
          %v3954 = vmul.f32 %v3946, %v3946
          %v3955 = vsel %vm999, %v3947, 0.0
          %3956 = vadd.xlane.f32.xlu0 %v3955
          %v3957 = vpop.xlane.xlu0 %3956
          %v3958 = vsel %vm999, %v3948, 0.0
          %3959 = vadd.xlane.f32.xlu0 %v3958
          %v3960 = vpop.xlane.xlu0 %3959
          %v3961 = vsel %vm999, %v3949, 0.0
          %3962 = vadd.xlane.f32.xlu0 %v3961
          %v3963 = vpop.xlane.xlu0 %3962
          %v3964 = vsel %vm999, %v3950, 0.0
          %3965 = vadd.xlane.f32.xlu0 %v3964
          %v3966 = vpop.xlane.xlu0 %3965
          %v3967 = vsel %vm999, %v3951, 0.0
          %3968 = vadd.xlane.f32.xlu0 %v3967
          %v3969 = vpop.xlane.xlu0 %3968
          %v3970 = vsel %vm999, %v3952, 0.0
          %3971 = vadd.xlane.f32.xlu0 %v3970
          %v3972 = vpop.xlane.xlu0 %3971
          %v3973 = vsel %vm999, %v3953, 0.0
          %3974 = vadd.xlane.f32.xlu0 %v3973
          %v3975 = vpop.xlane.xlu0 %3974
          %v3976 = vsel %vm999, %v3954, 0.0
          %3977 = vadd.xlane.f32.xlu0 %v3976
          %v3978 = vpop.xlane.xlu0 %3977
          %v3979 = vmul.f32 %v3957, %v1030
          %v3980 = vmul.f32 %v3960, %v1030
          %v3981 = vmul.f32 %v3963, %v1030
          %v3982 = vmul.f32 %v3966, %v1030
          %v3983 = vmul.f32 %v3969, %v1030
          %v3984 = vmul.f32 %v3972, %v1030
          %v3985 = vmul.f32 %v3975, %v1030
          %v3986 = vmul.f32 %v3978, %v1030
          %v3987 = vadd.f32 %v3979, 1e-05
          %v3988 = vadd.f32 %v3980, 1e-05
          %v3989 = vadd.f32 %v3981, 1e-05
          %v3990 = vadd.f32 %v3982, 1e-05
          %v3991 = vadd.f32 %v3983, 1e-05
          %v3992 = vadd.f32 %v3984, 1e-05
          %v3993 = vadd.f32 %v3985, 1e-05
          %v3994 = vadd.f32 %v3986, 1e-05
          %v3995 = vrsqrt.pop %v3987
          %v3996 = vmul.f32 %v3995, %v3987
          %v3997 = vmul.f32 %v3996, %v3995
          %v3998 = vmul.f32 0.5, %v3997
          %v3999 = vsub.f32 1.5, %v3998
          %v4000 = vmul.f32 %v3995, %v3999
          %vm4001 = vweird.f32 %v3987
          %vm4002 = vweird.f32 %v3995
          %vm4003 = vmor %vm4001, %vm4002
          %v4004 = vsel %vm4003, %v3995, %v4000
          %v4005 = vrsqrt.pop %v3988
          %v4006 = vmul.f32 %v4005, %v3988
          %v4007 = vmul.f32 %v4006, %v4005
          %v4008 = vmul.f32 0.5, %v4007
          %v4009 = vsub.f32 1.5, %v4008
          %v4010 = vmul.f32 %v4005, %v4009
          %vm4011 = vweird.f32 %v3988
          %vm4012 = vweird.f32 %v4005
          %vm4013 = vmor %vm4011, %vm4012
          %v4014 = vsel %vm4013, %v4005, %v4010
          %v4015 = vrsqrt.pop %v3989
          %v4016 = vmul.f32 %v4015, %v3989
          %v4017 = vmul.f32 %v4016, %v4015
          %v4018 = vmul.f32 0.5, %v4017
          %v4019 = vsub.f32 1.5, %v4018
          %v4020 = vmul.f32 %v4015, %v4019
          %vm4021 = vweird.f32 %v3989
          %vm4022 = vweird.f32 %v4015
          %vm4023 = vmor %vm4021, %vm4022
          %v4024 = vsel %vm4023, %v4015, %v4020
          %v4025 = vrsqrt.pop %v3990
          %v4026 = vmul.f32 %v4025, %v3990
          %v4027 = vmul.f32 %v4026, %v4025
          %v4028 = vmul.f32 0.5, %v4027
          %v4029 = vsub.f32 1.5, %v4028
          %v4030 = vmul.f32 %v4025, %v4029
          %vm4031 = vweird.f32 %v3990
          %vm4032 = vweird.f32 %v4025
          %vm4033 = vmor %vm4031, %vm4032
          %v4034 = vsel %vm4033, %v4025, %v4030
          %v4035 = vrsqrt.pop %v3991
          %v4036 = vmul.f32 %v4035, %v3991
          %v4037 = vmul.f32 %v4036, %v4035
          %v4038 = vmul.f32 0.5, %v4037
          %v4039 = vsub.f32 1.5, %v4038
          %v4040 = vmul.f32 %v4035, %v4039
          %vm4041 = vweird.f32 %v3991
          %vm4042 = vweird.f32 %v4035
          %vm4043 = vmor %vm4041, %vm4042
          %v4044 = vsel %vm4043, %v4035, %v4040
          %v4045 = vrsqrt.pop %v3992
          %v4046 = vmul.f32 %v4045, %v3992
          %v4047 = vmul.f32 %v4046, %v4045
          %v4048 = vmul.f32 0.5, %v4047
          %v4049 = vsub.f32 1.5, %v4048
          %v4050 = vmul.f32 %v4045, %v4049
          %vm4051 = vweird.f32 %v3992
          %vm4052 = vweird.f32 %v4045
          %vm4053 = vmor %vm4051, %vm4052
          %v4054 = vsel %vm4053, %v4045, %v4050
          %v4055 = vrsqrt.pop %v3993
          %v4056 = vmul.f32 %v4055, %v3993
          %v4057 = vmul.f32 %v4056, %v4055
          %v4058 = vmul.f32 0.5, %v4057
          %v4059 = vsub.f32 1.5, %v4058
          %v4060 = vmul.f32 %v4055, %v4059
          %vm4061 = vweird.f32 %v3993
          %vm4062 = vweird.f32 %v4055
          %vm4063 = vmor %vm4061, %vm4062
          %v4064 = vsel %vm4063, %v4055, %v4060
          %v4065 = vrsqrt.pop %v3994
          %v4066 = vmul.f32 %v4065, %v3994
          %v4067 = vmul.f32 %v4066, %v4065
          %v4068 = vmul.f32 0.5, %v4067
          %v4069 = vsub.f32 1.5, %v4068
          %v4070 = vmul.f32 %v4065, %v4069
          %vm4071 = vweird.f32 %v3994
          %vm4072 = vweird.f32 %v4065
          %vm4073 = vmor %vm4071, %vm4072
          %v4074 = vsel %vm4073, %v4065, %v4070
          %v4075 = vmul.f32 %v3939, %v4004
          %v4076 = vmul.f32 %v3940, %v4014
          %v4077 = vmul.f32 %v3941, %v4024
          %v4078 = vmul.f32 %v3942, %v4034
          %v4079 = vmul.f32 %v3943, %v4044
          %v4080 = vmul.f32 %v3944, %v4054
          %v4081 = vmul.f32 %v3945, %v4064
          %v4082 = vmul.f32 %v3946, %v4074
          %v4084 = vperm.slane %v3905, 0
          %v4086 = vmul.f32 %v4075, %v4084
          %v4087 = vmul.f32 %v4076, %v4084
          %v4088 = vmul.f32 %v4077, %v4084
          %v4089 = vmul.f32 %v4078, %v4084
          %v4090 = vmul.f32 %v4079, %v4084
          %v4091 = vmul.f32 %v4080, %v4084
          %v4092 = vmul.f32 %v4081, %v4084
          %v4093 = vmul.f32 %v4082, %v4084
          %v4095 = vperm.slane %v3906, 0
          %v4097 = vadd.f32 %v4086, %v4095
          %v4098 = vadd.f32 %v4087, %v4095
          %v4099 = vadd.f32 %v4088, %v4095
          %v4100 = vadd.f32 %v4089, %v4095
          %v4101 = vadd.f32 %v4090, %v4095
          %v4102 = vadd.f32 %v4091, %v4095
          %v4103 = vadd.f32 %v4092, %v4095
          %v4104 = vadd.f32 %v4093, %v4095
          %v4105 = vrot.slane %v4099, 4
          %vm4106 = vcmask 1047556
          %v4107 = vsel %vm4106, %v4105, %v4097
          %v4108 = vrot.slane %v4097, 4
          %v4109 = vsel %vm4106, %v4099, %v4108
          %v4111 = vunpack.c.l.s4 1983009808
          %v4112 = vunpack.c.0.s8 %v4111
          %v4113 = vperm.slane %v4107, %v4112
          %v4115 = vunpack.c.l.s4 1983009808
          %v4116 = vunpack.c.0.s8 %v4115
          %v4117 = vperm.slane %v4109, %v4116
          %v4118 = vrot.slane %v4100, 4
          %v4119 = vsel %vm4106, %v4118, %v4098
          %v4120 = vrot.slane %v4098, 4
          %v4121 = vsel %vm4106, %v4100, %v4120
          %v4123 = vunpack.c.l.s4 1983009808
          %v4124 = vunpack.c.0.s8 %v4123
          %v4125 = vperm.slane %v4119, %v4124
          %v4127 = vunpack.c.l.s4 1983009808
          %v4128 = vunpack.c.0.s8 %v4127
          %v4129 = vperm.slane %v4121, %v4128
          %v4130 = vrot.slane %v4103, 4
          %v4131 = vsel %vm4106, %v4130, %v4101
          %v4132 = vrot.slane %v4101, 4
          %v4133 = vsel %vm4106, %v4103, %v4132
          %v4135 = vunpack.c.l.s4 1983009808
          %v4136 = vunpack.c.0.s8 %v4135
          %v4137 = vperm.slane %v4131, %v4136
          %v4139 = vunpack.c.l.s4 1983009808
          %v4140 = vunpack.c.0.s8 %v4139
          %v4141 = vperm.slane %v4133, %v4140
          %v4142 = vrot.slane %v4104, 4
          %v4143 = vsel %vm4106, %v4142, %v4102
          %v4144 = vrot.slane %v4102, 4
          %v4145 = vsel %vm4106, %v4104, %v4144
          %v4147 = vunpack.c.l.s4 1983009808
          %v4148 = vunpack.c.0.s8 %v4147
          %v4149 = vperm.slane %v4143, %v4148
          %v4151 = vunpack.c.l.s4 1983009808
          %v4152 = vunpack.c.0.s8 %v4151
          %v4153 = vperm.slane %v4145, %v4152
          %v4154 = vrot.slane %v4125, 4
          %v4155 = vsel %vm4106, %v4154, %v4113
          %v4156 = vrot.slane %v4113, 4
          %v4157 = vsel %vm4106, %v4125, %v4156
          %v4159 = vunpack.c.l.s4 1934713408
          %v4160 = vunpack.c.0.s8 %v4159
          %v4161 = vperm.slane %v4155, %v4160
          %v4163 = vunpack.c.l.s4 1934713408
          %v4164 = vunpack.c.0.s8 %v4163
          %v4165 = vperm.slane %v4157, %v4164
          %v4166 = vrot.slane %v4129, 4
          %v4167 = vsel %vm4106, %v4166, %v4117
          %v4168 = vrot.slane %v4117, 4
          %v4169 = vsel %vm4106, %v4129, %v4168
          %v4171 = vunpack.c.l.s4 1934713408
          %v4172 = vunpack.c.0.s8 %v4171
          %v4173 = vperm.slane %v4167, %v4172
          %v4175 = vunpack.c.l.s4 1934713408
          %v4176 = vunpack.c.0.s8 %v4175
          %v4177 = vperm.slane %v4169, %v4176
          %v4178 = vrot.slane %v4149, 4
          %v4179 = vsel %vm4106, %v4178, %v4137
          %v4180 = vrot.slane %v4137, 4
          %v4181 = vsel %vm4106, %v4149, %v4180
          %v4183 = vunpack.c.l.s4 1934713408
          %v4184 = vunpack.c.0.s8 %v4183
          %v4185 = vperm.slane %v4179, %v4184
          %v4187 = vunpack.c.l.s4 1934713408
          %v4188 = vunpack.c.0.s8 %v4187
          %v4189 = vperm.slane %v4181, %v4188
          %v4190 = vrot.slane %v4153, 4
          %v4191 = vsel %vm4106, %v4190, %v4141
          %v4192 = vrot.slane %v4141, 4
          %v4193 = vsel %vm4106, %v4153, %v4192
          %v4195 = vunpack.c.l.s4 1934713408
          %v4196 = vunpack.c.0.s8 %v4195
          %v4197 = vperm.slane %v4191, %v4196
          %v4199 = vunpack.c.l.s4 1934713408
          %v4200 = vunpack.c.0.s8 %v4199
          %v4201 = vperm.slane %v4193, %v4200
          %v4202 = vrot.slane %v4185, 4
          %v4203 = vsel %vm4106, %v4202, %v4161
          %v4204 = vrot.slane %v4161, 4
          %v4205 = vsel %vm4106, %v4185, %v4204
          %v4206 = vrot.slane %v4189, 4
          %v4207 = vsel %vm4106, %v4206, %v4165
          %v4208 = vrot.slane %v4165, 4
          %v4209 = vsel %vm4106, %v4189, %v4208
          %v4210 = vrot.slane %v4197, 4
          %v4211 = vsel %vm4106, %v4210, %v4173
          %v4212 = vrot.slane %v4173, 4
          %v4213 = vsel %vm4106, %v4197, %v4212
          %v4214 = vrot.slane %v4201, 4
          %v4215 = vsel %vm4106, %v4214, %v4177
          %v4216 = vrot.slane %v4177, 4
          %v4217 = vsel %vm4106, %v4201, %v4216
          %4219 = vrot.lane.b32.xlu0 %v4205, 48
          %v4220 = vpop.permute.xlu0 %4219
          %4223 = vrot.lane.b32.xlu0 %v4207, 96
          %v4224 = vpop.permute.xlu0 %4223
          %4227 = vrot.lane.b32.xlu0 %v4209, 16
          %v4228 = vpop.permute.xlu0 %4227
          %4231 = vrot.lane.b32.xlu0 %v4211, 64
          %v4232 = vpop.permute.xlu0 %4231
          %4235 = vrot.lane.b32.xlu0 %v4213, 112
          %v4236 = vpop.permute.xlu0 %4235
          %4239 = vrot.lane.b32.xlu0 %v4215, 32
          %v4240 = vpop.permute.xlu0 %4239
          %4243 = vrot.lane.b32.xlu0 %v4217, 80
          %v4244 = vpop.permute.xlu0 %4243
          %v4246 = vsel %vm999, %v4203, %v4220
          %vm4247 = vcmask 785408
          %v4248 = vsel %vm4247, %v4246, %v4224
          %vm4249 = vcmask 130048
          %v4250 = vsel %vm4249, %v4224, %v4228
          %v4251 = vsel %vm3814, %v4250, %v4232
          %vm4252 = vcmask 916480
          %v4253 = vsel %vm4252, %v4251, %v4236
          %vm4254 = vcmask 261120
          %v4255 = vsel %vm4254, %v4236, %v4240
          %vm4256 = vcmask 654336
          %v4257 = vsel %vm4256, %v4255, %v4244
          %v4258 = vld [vmem:[%s20] sm:$0xff]
          %v4259 = vld [vmem:[%s20 + $0x8] sm:$0xff]
          %v4260 = vld [vmem:[%s20 + $0x10] sm:$0xff]
          %v4261 = vld [vmem:[%s20 + $0x18] sm:$0xff]
          %v4262 = vld [vmem:[%s20 + $0x20] sm:$0xff]
          %v4263 = vld [vmem:[%s20 + $0x28] sm:$0xff]
          %v4264 = vld [vmem:[%s20 + $0x30] sm:$0xff]
          %v4265 = vld [vmem:[%s20 + $0x38] sm:$0xff]
          %v4266 = vld [vmem:[%s20 + $0x40] sm:$0xff]
          %v4267 = vld [vmem:[%s20 + $0x48] sm:$0xff]
          %v4268 = vld [vmem:[%s20 + $0x50] sm:$0xff]
          %v4269 = vld [vmem:[%s20 + $0x58] sm:$0xff]
          %v4270 = vld [vmem:[%s20 + $0x60] sm:$0xff]
          %v4271 = vld [vmem:[%s20 + $0x68] sm:$0xff]
          %v4272 = vld [vmem:[%s20 + $0x70] sm:$0xff]
          %v4273 = vld [vmem:[%s20 + $0x78] sm:$0xff]
          %v4274 = vld [vmem:[%s20 + $0x80] sm:$0xff]
          %v4275 = vld [vmem:[%s20 + $0x88] sm:$0xff]
          %v4276 = vld [vmem:[%s20 + $0x90] sm:$0xff]
          %v4277 = vld [vmem:[%s20 + $0x98] sm:$0xff]
          %v4278 = vld [vmem:[%s20 + $0xa0] sm:$0xff]
          %v4279 = vld [vmem:[%s20 + $0xa8] sm:$0xff]
          %v4280 = vld [vmem:[%s20 + $0xb0] sm:$0xff]
          %v4281 = vld [vmem:[%s20 + $0xb8] sm:$0xff]
          %v4282 = vld [vmem:[%s20 + $0xc0] sm:$0xff]
          %v4283 = vld [vmem:[%s20 + $0xc8] sm:$0xff]
          %v4284 = vld [vmem:[%s20 + $0xd0] sm:$0xff]
          %v4285 = vld [vmem:[%s20 + $0xd8] sm:$0xff]
          %v4286 = vld [vmem:[%s20 + $0xe0] sm:$0xff]
          %v4287 = vld [vmem:[%s20 + $0xe8] sm:$0xff]
          %v4288 = vld [vmem:[%s20 + $0xf0] sm:$0xff]
          %v4289 = vld [vmem:[%s20 + $0xf8] sm:$0xff]
          %v4290 = vld [vmem:[%s20 + $0x100] sm:$0xff]
          %v4291 = vld [vmem:[%s20 + $0x108] sm:$0xff]
          %v4292 = vld [vmem:[%s20 + $0x110] sm:$0xff]
          %v4293 = vld [vmem:[%s20 + $0x118] sm:$0xff]
          %v4294 = vld [vmem:[%s20 + $0x120] sm:$0xff]
          %v4295 = vld [vmem:[%s20 + $0x128] sm:$0xff]
          %v4296 = vld [vmem:[%s20 + $0x130] sm:$0xff]
          %v4297 = vld [vmem:[%s20 + $0x138] sm:$0xff]
          %v4298 = vld [vmem:[%s20 + $0x140] sm:$0xff]
          %v4299 = vld [vmem:[%s20 + $0x148] sm:$0xff]
          %v4300 = vld [vmem:[%s20 + $0x150] sm:$0xff]
          %v4301 = vld [vmem:[%s20 + $0x158] sm:$0xff]
          %v4302 = vld [vmem:[%s20 + $0x160] sm:$0xff]
          %v4303 = vld [vmem:[%s20 + $0x168] sm:$0xff]
          %v4304 = vld [vmem:[%s20 + $0x170] sm:$0xff]
          %v4305 = vld [vmem:[%s20 + $0x178] sm:$0xff]
          %v4306 = vld [vmem:[%s21] sm:$0x1]
          %v4307 = vmul.f32 %v4306, 3.0
          %v4309 = vperm.slane %v4307, 0
          %4311 = vmatpush.msra.mxu0 %v4273
          %4312 = vmatpush.msra.mxu0 %v4272
          %4313 = vmatpush.msra.mxu0 %v4271
          %4314 = vmatpush.msra.mxu0 %v4270
          %4315 = vmatpush.msra.mxu0 %v4269
          %4316 = vmatpush.msra.mxu0 %v4268
          %4317 = vmatpush.msra.mxu0 %v4267
          %4318 = vmatpush.msra.mxu0 %v4266
          %4319 = vmatpush.msra.mxu0 %v4265
          %4320 = vmatpush.msra.mxu0 %v4264
          %4321 = vmatpush.msra.mxu0 %v4263
          %4322 = vmatpush.msra.mxu0 %v4262
          %4323 = vmatpush.msra.mxu0 %v4261
          %4324 = vmatpush.msra.mxu0 %v4260
          %4325 = vmatpush.msra.mxu0 %v4259
          %4326 = vmatpush.msra.mxu0 %v4258
          %4327 = vmatmul.f32.gmra.mxu0 %v4248
          %v4328 = vpop.f32.mrf.mxu0
          %v4329 = vadd.f32 %v4309, %v4328
          %4330 = vdwg.mxu0
          %4331 = vmatpush.msra.mxu0 %v4289
          %4332 = vmatpush.msra.mxu0 %v4288
          %4333 = vmatpush.msra.mxu0 %v4287
          %4334 = vmatpush.msra.mxu0 %v4286
          %4335 = vmatpush.msra.mxu0 %v4285
          %4336 = vmatpush.msra.mxu0 %v4284
          %4337 = vmatpush.msra.mxu0 %v4283
          %4338 = vmatpush.msra.mxu0 %v4282
          %4339 = vmatpush.msra.mxu0 %v4281
          %4340 = vmatpush.msra.mxu0 %v4280
          %4341 = vmatpush.msra.mxu0 %v4279
          %4342 = vmatpush.msra.mxu0 %v4278
          %4343 = vmatpush.msra.mxu0 %v4277
          %4344 = vmatpush.msra.mxu0 %v4276
          %4345 = vmatpush.msra.mxu0 %v4275
          %4346 = vmatpush.msra.mxu0 %v4274
          %4347 = vmatmul.f32.gmra.mxu0 %v4253
          %v4348 = vpop.f32.mrf.mxu0
          %v4349 = vadd.f32 %v4329, %v4348
          %4350 = vdwg.mxu0
          %4351 = vmatpush.msra.mxu0 %v4305
          %4352 = vmatpush.msra.mxu0 %v4304
          %4353 = vmatpush.msra.mxu0 %v4303
          %4354 = vmatpush.msra.mxu0 %v4302
          %4355 = vmatpush.msra.mxu0 %v4301
          %4356 = vmatpush.msra.mxu0 %v4300
          %4357 = vmatpush.msra.mxu0 %v4299
          %4358 = vmatpush.msra.mxu0 %v4298
          %4359 = vmatpush.msra.mxu0 %v4297
          %4360 = vmatpush.msra.mxu0 %v4296
          %4361 = vmatpush.msra.mxu0 %v4295
          %4362 = vmatpush.msra.mxu0 %v4294
          %4363 = vmatpush.msra.mxu0 %v4293
          %4364 = vmatpush.msra.mxu0 %v4292
          %4365 = vmatpush.msra.mxu0 %v4291
          %4366 = vmatpush.msra.mxu0 %v4290
          %4367 = vmatmul.f32.gmra.mxu0 %v4257
          %v4368 = vpop.f32.mrf.mxu0
          %v4369 = vadd.f32 %v4349, %v4368
          %4370 = vdwg.mxu0
          %v4371 = vld [vmem:[%s905] sm:$0xff]
          %4373 = vset.pattern.permute.xlu0 1
          %4374 = vperm.xlu0 %4373, %v4371
          %v4375 = vpop.permute.xlu0 %4374
          %v4377 = vmul.f32 %v4369, %v4375
          %4378 = vset.pattern.permute.xlu0 0
          %4379 = vperm.xlu0 %4378, %v4371
          %v4380 = vpop.permute.xlu0 %4379
          %v4382 = vadd.f32 %v4377, %v4380
          %4383 = vst.msk [vmem:[#allocation3] sm:$0xff] %vm1596, %v4382
        $region116: #{_lambda_.1} parent=107 // pred_fallthru
          _
        // Predicated region
        $region117: #{_lambda_.1} parent=107 // pred_check
          %p4384 = pneg %p616
        $region118: #{_lambda_.1} parent=107 // pred_check_branch
          %4386 = sbr.rel (%p4384) target = $region120
        $region119: #{_lambda_.1} parent=107 // pred_region
          %4388 = vsyncadd [#allocation4], 0
          %s4389 = smul.addr %s38, 8
          %s4390 = scalar_lea.hbm %s22, %s4389
          %s4392 = sshll.u32 [#allocation3], 4
          %s4393 = int_to_ptr.vmem [resolvable:$true] %s4392
          %s4394 = sshll.u32 %s4390, 4
          %s4395 = int_to_ptr.hbm [resolvable:$true] %s4394
          %4397 = dma.vmem_to_hbm [thread:$0]  %s4393, 128, %s4395, [#allocation4]
        $region120: #{_lambda_.1} parent=107 // pred_fallthru
          _
        // Predicated region
        $region121: #{_lambda_.1} parent=107 // pred_check
          %p4398 = pneg %p616
        $region122: #{_lambda_.1} parent=107 // pred_check_branch
          %4400 = sbr.rel (%p4398) target = $region124
        $region123: #{_lambda_.1} parent=107 // pred_region
          %4402 = dma.done [#allocation4], 128
        $region124: #{_lambda_.1} parent=107 // pred_fallthru
          _
      $region108: #{_lambda_.1} parent=5 // pred_fallthru
        _
      %p4403 = scmp.le.s32.totalorder 2, %s29
      // Predicated region
      $region125: #{_lambda_.1} parent=5 // pred_check
        %p4404 = pneg %p4403
      $region126: #{_lambda_.1} parent=5 // pred_check_branch
        %4406 = sbr.rel (%p4404) target = $region128
      $region127: #{_lambda_.1} parent=5 // pred_region
        %s4407 = ssub.s32 %s29, 2
      $region128: #{_lambda_.1} parent=5 // pred_fallthru
        _
    $region6: #{_lambda_.1} parent=1 // loop_footer
      %s33 = sadd.s32 1, %s29
    $region7: #{_lambda_.1} parent=1 // loop_footer_branch
      %28 = sbr.rel target = $region3
    $region8: #{_lambda_.1} parent=1 // loop_exit
      _
    %4408 = vsyncpa [#allocation4], 1
    %s4409 = scalar_lea.sflag [#allocation4], 1
    %4410 = vsyncpa %s4409, 1

</llo_original>
